<compile_context>
chip_gen: v7x
topology: tpu7x:2x2x1
jax: 0.10.0
libtpu: 0.0.40
codegen_flags: <defaults>
</compile_context>

<pallas_src>
import jax
import jax.numpy as jnp
from jax import lax
from jax.experimental import pallas as pl
from jax.experimental.pallas import tpu as pltpu

# ---------------- configuration (small synthetic Segmenter) ----------------
PATCH = 8            # encoder.patch_size
C_IN = 3             # input channels
D_MODEL = 32         # ViT embedding dim
HEADS = 2            # attention heads
HEAD_DIM = D_MODEL // HEADS
MLP_DIM = 64         # MLP hidden dim
DEPTH = 2            # number of transformer blocks
N_CLS = 4            # segmentation classes
DISTILLED = 0        # encoder.distilled -> num_extra_tokens = 1
NUM_EXTRA = 1 + DISTILLED
LN_EPS = 1e-6
HEAD_PAD = 128       # lane-dense width of the decoder-head output slab


# ---------------- in-kernel math helpers ----------------
def _layernorm(x, g, b, eps=LN_EPS):
    # one-pass statistics: var = E[x^2] - E[x]^2  (halves the XLU reductions)
    mean = jnp.mean(x, axis=-1, keepdims=True)
    mean_sq = jnp.mean(x * x, axis=-1, keepdims=True)
    var = mean_sq - mean * mean
    inv = lax.rsqrt(var + eps)
    return (x - mean) * inv * g + b


def _erf_poly(x):
    # Abramowitz & Stegun 7.1.26 polynomial erf (|abs err| < 1.5e-7, ~f32
    # precision) using only VPU/EUP-friendly ops (abs/exp/mul/add/div).
    a1, a2, a3, a4, a5 = 0.254829592, -0.284496736, 1.421413741, -1.453152027, 1.061405429
    p = 0.3275911
    sgn = jnp.where(x >= 0.0, 1.0, -1.0)
    ax = jnp.abs(x)
    t = 1.0 / (1.0 + p * ax)
    poly = ((((a5 * t + a4) * t + a3) * t + a2) * t + a1) * t
    return sgn * (1.0 - poly * jnp.exp(-(ax * ax)))


def _gelu_exact(x):
    # erf-based GELU (torch nn.GELU default), evaluated with the polynomial erf.
    return 0.5 * x * (1.0 + _erf_poly(x * 0.7071067811865476))


_NT_DIMS = (((1,), (1,)), ((), ()))   # q @ k^T as a transposed contraction


# ---------------- fused ViT encoder + linear decoder kernel ----------------
def _segmenter_kernel(
    patches_ref,                 # (1, N, K)        f32  (row 0.. = zero cls slot)
    patch_w_ref,                 # (K, D)           bf16
    tok_bias_ref,                # (N, D)           f32  (cls+pos / patch_b+pos)
    ln1_g_ref, ln1_b_ref,        # (DEPTH, 1, D)    f32
    qkv_w_ref,                   # (DEPTH, D, 3D)   bf16
    qkv_b_ref,                   # (DEPTH, 1, 3D)   f32
    proj_w_ref,                  # (DEPTH, D, D)    bf16
    proj_b_ref,                  # (DEPTH, 1, D)    f32
    ln2_g_ref, ln2_b_ref,        # (DEPTH, 1, D)    f32
    fc1_w_ref,                   # (DEPTH, D, MLP)  bf16
    fc1_b_ref,                   # (DEPTH, 1, MLP)  f32
    fc2_w_ref,                   # (DEPTH, MLP, D)  bf16
    fc2_b_ref,                   # (DEPTH, 1, D)    f32
    norm_g_ref, norm_b_ref,      # (1, D)           f32
    head_w_ref,                  # (D, HEAD_PAD)    bf16 (zero-padded past N_CLS)
    head_b_ref,                  # (1, HEAD_PAD)    f32
    out_ref,                     # (1, Np, HEAD_PAD) f32
):
    D = D_MODEL
    Dh = HEAD_DIM
    scale = float(Dh) ** -0.5

    # patch embedding; cls token + positional embedding folded into tok_bias
    x = jnp.dot(patches_ref[0].astype(jnp.bfloat16), patch_w_ref[...],
                preferred_element_type=jnp.float32) + tok_bias_ref[...]   # (N, D)

    for layer in range(DEPTH):
        # ---- multi-head self-attention ----
        h = _layernorm(x, ln1_g_ref[layer], ln1_b_ref[layer])
        qkv = jnp.dot(h.astype(jnp.bfloat16), qkv_w_ref[layer],
                      preferred_element_type=jnp.float32) + qkv_b_ref[layer]  # (N, 3D)
        proj_w = proj_w_ref[layer]                                            # (D, D) bf16
        attn_out = jnp.zeros_like(x)
        for head in range(HEADS):
            lo = head * Dh
            q = qkv[:, lo:lo + Dh] * scale              # fold 1/sqrt(Dh) into q
            k = qkv[:, D + lo:D + lo + Dh]
            v = qkv[:, 2 * D + lo:2 * D + lo + Dh]
            s = lax.dot_general(q.astype(jnp.bfloat16), k.astype(jnp.bfloat16),
                                _NT_DIMS, preferred_element_type=jnp.float32)  # (N, N)
            s = s - jnp.max(s, axis=-1, keepdims=True)
            p = jnp.exp(s)
            p = p * pl.reciprocal(jnp.sum(p, axis=-1, keepdims=True), approx=True)
            hv = jnp.dot(p.astype(jnp.bfloat16), v.astype(jnp.bfloat16),
                         preferred_element_type=jnp.float32)                   # (N, Dh)
            # merge heads by summing per-head slices of the projection matmul
            attn_out = attn_out + jnp.dot(hv.astype(jnp.bfloat16),
                                          proj_w[lo:lo + Dh, :],
                                          preferred_element_type=jnp.float32)
        x = x + attn_out + proj_b_ref[layer]

        # ---- MLP ----
        h = _layernorm(x, ln2_g_ref[layer], ln2_b_ref[layer])
        h = jnp.dot(h.astype(jnp.bfloat16), fc1_w_ref[layer],
                    preferred_element_type=jnp.float32) + fc1_b_ref[layer]
        h = _gelu_exact(h)
        h = jnp.dot(h.astype(jnp.bfloat16), fc2_w_ref[layer],
                    preferred_element_type=jnp.float32) + fc2_b_ref[layer]
        x = x + h

    # final LayerNorm, drop the extra (cls) token, lane-dense decoder head
    x = _layernorm(x, norm_g_ref[...], norm_b_ref[...])
    xp = x[NUM_EXTRA:, :]                                                  # (Np, D)
    out_ref[0] = jnp.dot(xp.astype(jnp.bfloat16), head_w_ref[...],
                         preferred_element_type=jnp.float32) + head_b_ref[...]


def vit_encode_decode(fused, patches_tok):
    """Run the fused encoder+decoder-head kernel. patches_tok: (B, N, K) f32."""
    B, N, K = patches_tok.shape
    Np = N - NUM_EXTRA
    D = D_MODEL
    D3 = 3 * D_MODEL

    def ws(shape):
        # weights: same block every grid step -> stays resident in VMEM
        return pl.BlockSpec(shape, lambda b, _n=len(shape): (0,) * _n)

    in_specs = [
        pl.BlockSpec((1, N, K), lambda b: (b, 0, 0)),       # patches (per batch)
        ws((K, D)),                                          # patch_w
        ws((N, D)),                                          # tok_bias
        ws((DEPTH, 1, D)), ws((DEPTH, 1, D)),                # ln1 g/b
        ws((DEPTH, D, D3)), ws((DEPTH, 1, D3)),              # qkv w/b
        ws((DEPTH, D, D)), ws((DEPTH, 1, D)),                # proj w/b
        ws((DEPTH, 1, D)), ws((DEPTH, 1, D)),                # ln2 g/b
        ws((DEPTH, D, MLP_DIM)), ws((DEPTH, 1, MLP_DIM)),    # fc1 w/b
        ws((DEPTH, MLP_DIM, D)), ws((DEPTH, 1, D)),          # fc2 w/b
        ws((1, D)), ws((1, D)),                              # final norm g/b
        ws((D, HEAD_PAD)), ws((1, HEAD_PAD)),                # decoder head w/b
    ]
    out_spec = pl.BlockSpec((1, Np, HEAD_PAD), lambda b: (b, 0, 0))

    return pl.pallas_call(
        _segmenter_kernel,
        grid=(B,),
        out_shape=jax.ShapeDtypeStruct((B, Np, HEAD_PAD), jnp.float32),
        in_specs=in_specs,
        out_specs=out_spec,
        compiler_params=pltpu.CompilerParams(dimension_semantics=("parallel",)),
    )(patches_tok,
      fused["patch_w"], fused["tok_bias"],
      fused["ln1_g"], fused["ln1_b"], fused["qkv_w"], fused["qkv_b"],
      fused["proj_w"], fused["proj_b"], fused["ln2_g"], fused["ln2_b"],
      fused["fc1_w"], fused["fc1_b"], fused["fc2_w"], fused["fc2_b"],
      fused["norm_g"], fused["norm_b"], fused["head_w"], fused["head_b"])


# ---------------- parameter init (deterministic, synthetic) ----------------
def init_params(key, n_tokens):
    ks = jax.random.split(key, 4 + DEPTH)
    std = 0.02

    def lin(k, fan_in, fan_out):
        kw, _ = jax.random.split(k)
        return (jax.random.normal(kw, (fan_in, fan_out), jnp.float32) * std,
                jnp.zeros((fan_out,), jnp.float32))

    params = {}
    # patch embedding: Conv2d(C_IN, D_MODEL, PATCH, stride=PATCH) as a matmul
    params["patch_w"], params["patch_b"] = lin(ks[0], C_IN * PATCH * PATCH, D_MODEL)
    params["cls_token"] = jax.random.normal(ks[1], (1, 1, D_MODEL), jnp.float32) * std
    # pos embed sized for the actual token count (cls + gh*gw patches)
    # TODO(synk): real Segmenter bilinearly resamples pos_embed when the input
    # grid differs from the training grid; here it is sized for the input grid.
    params["pos_embed"] = jax.random.normal(ks[2], (1, n_tokens, D_MODEL), jnp.float32) * std

    blocks = []
    for d in range(DEPTH):
        kb = jax.random.split(ks[3 + d], 4)
        blk = {
            "ln1_g": jnp.ones((D_MODEL,), jnp.float32),
            "ln1_b": jnp.zeros((D_MODEL,), jnp.float32),
            "ln2_g": jnp.ones((D_MODEL,), jnp.float32),
            "ln2_b": jnp.zeros((D_MODEL,), jnp.float32),
        }
        blk["qkv_w"], blk["qkv_b"] = lin(kb[0], D_MODEL, 3 * D_MODEL)
        blk["proj_w"], blk["proj_b"] = lin(kb[1], D_MODEL, D_MODEL)
        blk["fc1_w"], blk["fc1_b"] = lin(kb[2], D_MODEL, MLP_DIM)
        blk["fc2_w"], blk["fc2_b"] = lin(kb[3], MLP_DIM, D_MODEL)
        blocks.append(blk)
    params["blocks"] = blocks

    params["norm_g"] = jnp.ones((D_MODEL,), jnp.float32)
    params["norm_b"] = jnp.zeros((D_MODEL,), jnp.float32)
    # decoder (DecoderLinear): Linear(D_MODEL, N_CLS)
    params["head_w"], params["head_b"] = lin(ks[3 + DEPTH], D_MODEL, N_CLS)
    return params


def prepare_params(params):
    """One-time repacking: stack per-block weights, cast MXU inputs to bf16,
    fold cls token + pos embed + patch bias into one additive bias matrix, and
    pad the decoder head to a lane-dense 128-wide slab."""
    blocks = params["blocks"]

    def stack(name):
        return jnp.stack([blk[name] for blk in blocks], axis=0)

    tok_bias = jnp.concatenate(
        [params["cls_token"][0] + params["pos_embed"][0, :NUM_EXTRA],
         params["pos_embed"][0, NUM_EXTRA:] + params["patch_b"][None, :]],
        axis=0)                                                     # (N, D) f32

    head_w = jnp.zeros((D_MODEL, HEAD_PAD), jnp.float32).at[:, :N_CLS].set(params["head_w"])
    head_b = jnp.zeros((1, HEAD_PAD), jnp.float32).at[0, :N_CLS].set(params["head_b"])

    return {
        "patch_w": params["patch_w"].astype(jnp.bfloat16),
        "tok_bias": tok_bias,
        "ln1_g": stack("ln1_g")[:, None, :], "ln1_b": stack("ln1_b")[:, None, :],
        "qkv_w": stack("qkv_w").astype(jnp.bfloat16),
        "qkv_b": stack("qkv_b")[:, None, :],
        "proj_w": stack("proj_w").astype(jnp.bfloat16),
        "proj_b": stack("proj_b")[:, None, :],
        "ln2_g": stack("ln2_g")[:, None, :], "ln2_b": stack("ln2_b")[:, None, :],
        "fc1_w": stack("fc1_w").astype(jnp.bfloat16),
        "fc1_b": stack("fc1_b")[:, None, :],
        "fc2_w": stack("fc2_w").astype(jnp.bfloat16),
        "fc2_b": stack("fc2_b")[:, None, :],
        "norm_g": params["norm_g"][None, :], "norm_b": params["norm_b"][None, :],
        "head_w": head_w.astype(jnp.bfloat16),
        "head_b": head_b,
    }


# ---------------- layout glue (plain JAX) ----------------
def bilinear_resize_nchw(x, H_out, W_out):
    """F.interpolate(mode='bilinear', align_corners=False) via separable
    interpolation matrices (tiny glue op on a (B, n_cls, gh, gw) tensor)."""
    B, C, h, w = x.shape

    def weights(out, inp):
        o = jnp.arange(out, dtype=jnp.float32)
        src = (o + 0.5) * (inp / out) - 0.5
        src = jnp.clip(src, 0.0, float(inp - 1))
        i0 = jnp.floor(src).astype(jnp.int32)
        i1 = jnp.minimum(i0 + 1, inp - 1)
        frac = src - i0.astype(jnp.float32)
        W = jnp.zeros((out, inp), jnp.float32)
        W = W.at[jnp.arange(out), i0].add(1.0 - frac)
        W = W.at[jnp.arange(out), i1].add(frac)
        return W

    Wh = weights(H_out, h)
    Ww = weights(W_out, w)
    return jnp.einsum("oh,bchw,pw->bcop", Wh, x.astype(jnp.float32), Ww)


def segmenter_forward(fused, im):
    B, C, H_ori, W_ori = im.shape
    # padding(): pad right/bottom with zeros to a multiple of patch_size
    pad_h = (-H_ori) % PATCH
    pad_w = (-W_ori) % PATCH
    im = jnp.pad(im, ((0, 0), (0, 0), (0, pad_h), (0, pad_w)))
    H, W = im.shape[2], im.shape[3]
    gh, gw = H // PATCH, W // PATCH
    Np = gh * gw
    K = C * PATCH * PATCH

    # im2col (C, ph, pw ordering matches Conv2d weight flattening), plus a zero
    # row per extra token so the cls slot contributes 0 to the patch matmul.
    # TODO(synk): for production image sizes, fold im2col into the kernel's DMA
    # pattern via an index_map over (gh, gw) tiles instead of materializing it.
    patches = im.reshape(B, C, gh, PATCH, gw, PATCH)
    patches = patches.transpose(0, 2, 4, 1, 3, 5).reshape(B, Np, K)
    patches_tok = jnp.concatenate(
        [jnp.zeros((B, NUM_EXTRA, K), patches.dtype), patches], axis=1)   # (B, N, K)

    # ---- fused ViT encoder + DecoderLinear head (single pallas_call) ----
    out = vit_encode_decode(fused, patches_tok)          # (B, Np, 128) lane-dense
    logits = out[:, :, :N_CLS]

    # "b (h w) c -> b c h w"
    masks = logits.reshape(B, gh, gw, N_CLS).transpose(0, 3, 1, 2)

    # F.interpolate(..., size=(H, W), mode='bilinear') (align_corners=False)
    masks = bilinear_resize_nchw(masks, H, W)

    # unpadding() back to original size
    masks = masks[:, :, :H_ori, :W_ori]
    return masks


# ---------------- main ----------------
if __name__ == "__main__":
    key = jax.random.PRNGKey(0)
    k_in, k_param = jax.random.split(key)

    # small, non-multiple-of-patch spatial size so padding/unpadding is exercised
    H_in = W_in = 13
    im = jax.random.normal(k_in, (2, C_IN, H_in, W_in), jnp.float32)

    gh = (H_in + PATCH - 1) // PATCH
    gw = (W_in + PATCH - 1) // PATCH
    n_tokens = gh * gw + NUM_EXTRA

    params = init_params(k_param, n_tokens)
    fused = prepare_params(params)

    fwd = jax.jit(segmenter_forward)
    out = jax.block_until_ready(fwd(fused, im))

    assert out.shape == (2, N_CLS, H_in, W_in), out.shape
    assert bool(jnp.all(jnp.isfinite(out)))
    print("KERNEL_OK")
</pallas_src>

<mosaic_0001>
module attributes {stable_mosaic.version = 11 : i64} {
  func.func private @main(%arg0: i32) attributes {dimension_semantics = [#tpu.dimension_semantics<core_parallel>], iteration_bounds = array<i64: 2>, tpu.core_type = #tpu.core_type<sc_scalar_subcore>, window_params = []} {
    return
  }
}

module attributes {stable_mosaic.version = 11 : i64} {
  func.func private @main(%arg0: i32) attributes {dimension_semantics = [#tpu.dimension_semantics<core_parallel>], iteration_bounds = array<i64: 2>, tpu.core_type = #tpu.core_type<sc_scalar_subcore>, window_params = []} {
    return
  }
}

module attributes {stable_mosaic.version = 11 : i64} {
  func.func @_segmenter_kernel(%arg0: i32, %arg1: memref<1x5x192xf32, #tpu.memory_space<vmem>>, %arg2: memref<192x32xbf16, #tpu.memory_space<vmem>>, %arg3: memref<5x32xf32, #tpu.memory_space<vmem>>, %arg4: memref<2x1x32xf32, #tpu.memory_space<vmem>>, %arg5: memref<2x1x32xf32, #tpu.memory_space<vmem>>, %arg6: memref<2x32x96xbf16, #tpu.memory_space<vmem>>, %arg7: memref<2x1x96xf32, #tpu.memory_space<vmem>>, %arg8: memref<2x32x32xbf16, #tpu.memory_space<vmem>>, %arg9: memref<2x1x32xf32, #tpu.memory_space<vmem>>, %arg10: memref<2x1x32xf32, #tpu.memory_space<vmem>>, %arg11: memref<2x1x32xf32, #tpu.memory_space<vmem>>, %arg12: memref<2x32x64xbf16, #tpu.memory_space<vmem>>, %arg13: memref<2x1x64xf32, #tpu.memory_space<vmem>>, %arg14: memref<2x64x32xbf16, #tpu.memory_space<vmem>>, %arg15: memref<2x1x32xf32, #tpu.memory_space<vmem>>, %arg16: memref<1x32xf32, #tpu.memory_space<vmem>>, %arg17: memref<1x32xf32, #tpu.memory_space<vmem>>, %arg18: memref<32x128xbf16, #tpu.memory_space<vmem>>, %arg19: memref<1x128xf32, #tpu.memory_space<vmem>>, %arg20: memref<1x4x128xf32, #tpu.memory_space<vmem>>) attributes {dimension_semantics = [#tpu.dimension_semantics<parallel>], iteration_bounds = array<i64: 2>, scalar_prefetch = 0 : i64, scratch_operands = 0 : i64, tpu.core_type = #tpu.core_type<tc>, window_params = [{transform_indices = @transform_0, window_bounds = array<i64: 1, 5, 192>}, {pipeline_mode = #tpu.pipeline_mode<synchronous>, transform_indices = @transform_1, window_bounds = array<i64: 192, 32>}, {pipeline_mode = #tpu.pipeline_mode<synchronous>, transform_indices = @transform_2, window_bounds = array<i64: 5, 32>}, {pipeline_mode = #tpu.pipeline_mode<synchronous>, transform_indices = @transform_3, window_bounds = array<i64: 2, 1, 32>}, {pipeline_mode = #tpu.pipeline_mode<synchronous>, transform_indices = @transform_4, window_bounds = array<i64: 2, 1, 32>}, {pipeline_mode = #tpu.pipeline_mode<synchronous>, transform_indices = @transform_5, window_bounds = array<i64: 2, 32, 96>}, {pipeline_mode = #tpu.pipeline_mode<synchronous>, transform_indices = @transform_6, window_bounds = array<i64: 2, 1, 96>}, {pipeline_mode = #tpu.pipeline_mode<synchronous>, transform_indices = @transform_7, window_bounds = array<i64: 2, 32, 32>}, {pipeline_mode = #tpu.pipeline_mode<synchronous>, transform_indices = @transform_8, window_bounds = array<i64: 2, 1, 32>}, {pipeline_mode = #tpu.pipeline_mode<synchronous>, transform_indices = @transform_9, window_bounds = array<i64: 2, 1, 32>}, {pipeline_mode = #tpu.pipeline_mode<synchronous>, transform_indices = @transform_10, window_bounds = array<i64: 2, 1, 32>}, {pipeline_mode = #tpu.pipeline_mode<synchronous>, transform_indices = @transform_11, window_bounds = array<i64: 2, 32, 64>}, {pipeline_mode = #tpu.pipeline_mode<synchronous>, transform_indices = @transform_12, window_bounds = array<i64: 2, 1, 64>}, {pipeline_mode = #tpu.pipeline_mode<synchronous>, transform_indices = @transform_13, window_bounds = array<i64: 2, 64, 32>}, {pipeline_mode = #tpu.pipeline_mode<synchronous>, transform_indices = @transform_14, window_bounds = array<i64: 2, 1, 32>}, {pipeline_mode = #tpu.pipeline_mode<synchronous>, transform_indices = @transform_15, window_bounds = array<i64: 1, 32>}, {pipeline_mode = #tpu.pipeline_mode<synchronous>, transform_indices = @transform_16, window_bounds = array<i64: 1, 32>}, {pipeline_mode = #tpu.pipeline_mode<synchronous>, transform_indices = @transform_17, window_bounds = array<i64: 32, 128>}, {pipeline_mode = #tpu.pipeline_mode<synchronous>, transform_indices = @transform_18, window_bounds = array<i64: 1, 128>}, {transform_indices = @transform_19, window_bounds = array<i64: 1, 4, 128>}]} {
    %c0 = arith.constant 0 : index
    %c0_0 = arith.constant 0 : index
    %c0_1 = arith.constant 0 : index
    %0 = vector.load %arg1[%c0, %c0_0, %c0_1] : memref<1x5x192xf32, #tpu.memory_space<vmem>>, vector<1x5x192xf32>
    %1 = vector.shape_cast %0 : vector<1x5x192xf32> to vector<5x192xf32>
    %2 = arith.truncf %1 : vector<5x192xf32> to vector<5x192xbf16>
    %c0_2 = arith.constant 0 : index
    %c0_3 = arith.constant 0 : index
    %3 = vector.load %arg2[%c0_2, %c0_3] : memref<192x32xbf16, #tpu.memory_space<vmem>>, vector<192x32xbf16>
    %cst = arith.constant dense<0.000000e+00> : vector<5x32xf32>
    %4 = tpu.matmul %2, %3, %cst {dimension_numbers = #tpu.dot_dimension_numbers<[1], [0], [0], [1], [0, 0, 1, 1], [], []>} : vector<5x192xbf16>, vector<192x32xbf16>, vector<5x32xf32> -> vector<5x32xf32>
    %c0_4 = arith.constant 0 : index
    %c0_5 = arith.constant 0 : index
    %5 = vector.load %arg3[%c0_4, %c0_5] : memref<5x32xf32, #tpu.memory_space<vmem>>, vector<5x32xf32>
    %6 = arith.addf %4, %5 : vector<5x32xf32>
    %c0_6 = arith.constant 0 : index
    %c0_7 = arith.constant 0 : index
    %c0_8 = arith.constant 0 : index
    %7 = vector.load %arg4[%c0_6, %c0_7, %c0_8] : memref<2x1x32xf32, #tpu.memory_space<vmem>>, vector<1x1x32xf32>
    %8 = vector.shape_cast %7 : vector<1x1x32xf32> to vector<1x32xf32>
    %c0_9 = arith.constant 0 : index
    %c0_10 = arith.constant 0 : index
    %c0_11 = arith.constant 0 : index
    %9 = vector.load %arg5[%c0_9, %c0_10, %c0_11] : memref<2x1x32xf32, #tpu.memory_space<vmem>>, vector<1x1x32xf32>
    %10 = vector.shape_cast %9 : vector<1x1x32xf32> to vector<1x32xf32>
    %cst_12 = arith.constant dense<0.000000e+00> : vector<5xf32>
    %11 = vector.multi_reduction <add>, %6, %cst_12 [1] : vector<5x32xf32> to vector<5xf32>
    %12 = vector.shape_cast %11 : vector<5xf32> to vector<5x1xf32>
    %cst_13 = arith.constant 3.200000e+01 : f32
    %13 = vector.broadcast %cst_13 : f32 to vector<5x1xf32>
    %14 = arith.divf %12, %13 : vector<5x1xf32>
    %15 = arith.mulf %6, %6 : vector<5x32xf32>
    %cst_14 = arith.constant dense<0.000000e+00> : vector<5xf32>
    %16 = vector.multi_reduction <add>, %15, %cst_14 [1] : vector<5x32xf32> to vector<5xf32>
    %17 = vector.shape_cast %16 : vector<5xf32> to vector<5x1xf32>
    %cst_15 = arith.constant 3.200000e+01 : f32
    %18 = vector.broadcast %cst_15 : f32 to vector<5x1xf32>
    %19 = arith.divf %17, %18 : vector<5x1xf32>
    %20 = arith.mulf %14, %14 : vector<5x1xf32>
    %21 = arith.subf %19, %20 : vector<5x1xf32>
    %cst_16 = arith.constant 9.99999997E-7 : f32
    %22 = vector.broadcast %cst_16 : f32 to vector<5x1xf32>
    %23 = arith.addf %21, %22 : vector<5x1xf32>
    %24 = math.rsqrt %23 : vector<5x1xf32>
    %25 = vector.broadcast %14 : vector<5x1xf32> to vector<5x32xf32>
    %26 = arith.subf %6, %25 : vector<5x32xf32>
    %27 = vector.broadcast %24 : vector<5x1xf32> to vector<5x32xf32>
    %28 = arith.mulf %26, %27 : vector<5x32xf32>
    %29 = vector.broadcast %8 : vector<1x32xf32> to vector<5x32xf32>
    %30 = arith.mulf %28, %29 : vector<5x32xf32>
    %31 = vector.broadcast %10 : vector<1x32xf32> to vector<5x32xf32>
    %32 = arith.addf %30, %31 : vector<5x32xf32>
    %33 = arith.truncf %32 : vector<5x32xf32> to vector<5x32xbf16>
    %c0_17 = arith.constant 0 : index
    %c0_18 = arith.constant 0 : index
    %c0_19 = arith.constant 0 : index
    %34 = vector.load %arg6[%c0_17, %c0_18, %c0_19] : memref<2x32x96xbf16, #tpu.memory_space<vmem>>, vector<1x32x96xbf16>
    %35 = vector.shape_cast %34 : vector<1x32x96xbf16> to vector<32x96xbf16>
    %cst_20 = arith.constant dense<0.000000e+00> : vector<5x96xf32>
    %36 = tpu.matmul %33, %35, %cst_20 {dimension_numbers = #tpu.dot_dimension_numbers<[1], [0], [0], [1], [0, 0, 1, 1], [], []>} : vector<5x32xbf16>, vector<32x96xbf16>, vector<5x96xf32> -> vector<5x96xf32>
    %c0_21 = arith.constant 0 : index
    %c0_22 = arith.constant 0 : index
    %c0_23 = arith.constant 0 : index
    %37 = vector.load %arg7[%c0_21, %c0_22, %c0_23] : memref<2x1x96xf32, #tpu.memory_space<vmem>>, vector<1x1x96xf32>
    %38 = vector.shape_cast %37 : vector<1x1x96xf32> to vector<1x96xf32>
    %39 = vector.broadcast %38 : vector<1x96xf32> to vector<5x96xf32>
    %40 = arith.addf %36, %39 : vector<5x96xf32>
    %c0_24 = arith.constant 0 : index
    %c0_25 = arith.constant 0 : index
    %c0_26 = arith.constant 0 : index
    %41 = vector.load %arg8[%c0_24, %c0_25, %c0_26] : memref<2x32x32xbf16, #tpu.memory_space<vmem>>, vector<1x32x32xbf16>
    %42 = vector.shape_cast %41 : vector<1x32x32xbf16> to vector<32x32xbf16>
    %cst_27 = arith.constant 0.000000e+00 : f32
    %43 = vector.broadcast %cst_27 : f32 to vector<5x32xf32>
    %44 = vector.extract_strided_slice %40 {offsets = [0, 0], sizes = [5, 16], strides = [1, 1]} : vector<5x96xf32> to vector<5x16xf32>
    %cst_28 = arith.constant 2.500000e-01 : f32
    %45 = vector.broadcast %cst_28 : f32 to vector<5x16xf32>
    %46 = arith.mulf %44, %45 : vector<5x16xf32>
    %47 = vector.extract_strided_slice %40 {offsets = [0, 32], sizes = [5, 16], strides = [1, 1]} : vector<5x96xf32> to vector<5x16xf32>
    %48 = vector.extract_strided_slice %40 {offsets = [0, 64], sizes = [5, 16], strides = [1, 1]} : vector<5x96xf32> to vector<5x16xf32>
    %49 = arith.truncf %46 : vector<5x16xf32> to vector<5x16xbf16>
    %50 = arith.truncf %47 : vector<5x16xf32> to vector<5x16xbf16>
    %cst_29 = arith.constant dense<0.000000e+00> : vector<5x5xf32>
    %51 = tpu.matmul %49, %50, %cst_29 {dimension_numbers = #tpu.dot_dimension_numbers<[1], [1], [0], [0], [0, 0, 1, 0], [], []>} : vector<5x16xbf16>, vector<5x16xbf16>, vector<5x5xf32> -> vector<5x5xf32>
    %cst_30 = arith.constant dense<0xFF800000> : vector<5xf32>
    %52 = vector.multi_reduction <maximumf>, %51, %cst_30 [1] : vector<5x5xf32> to vector<5xf32>
    %53 = vector.shape_cast %52 : vector<5xf32> to vector<5x1xf32>
    %54 = vector.broadcast %53 : vector<5x1xf32> to vector<5x5xf32>
    %55 = arith.subf %51, %54 : vector<5x5xf32>
    %56 = math.exp %55 : vector<5x5xf32>
    %cst_31 = arith.constant dense<0.000000e+00> : vector<5xf32>
    %57 = vector.multi_reduction <add>, %56, %cst_31 [1] : vector<5x5xf32> to vector<5xf32>
    %58 = vector.shape_cast %57 : vector<5xf32> to vector<5x1xf32>
    %59 = tpu.reciprocal %58 {approx = true} : vector<5x1xf32> -> vector<5x1xf32>
    %60 = vector.broadcast %59 : vector<5x1xf32> to vector<5x5xf32>
    %61 = arith.mulf %56, %60 : vector<5x5xf32>
    %62 = arith.truncf %61 : vector<5x5xf32> to vector<5x5xbf16>
    %63 = arith.truncf %48 : vector<5x16xf32> to vector<5x16xbf16>
    %cst_32 = arith.constant dense<0.000000e+00> : vector<5x16xf32>
    %64 = tpu.matmul %62, %63, %cst_32 {dimension_numbers = #tpu.dot_dimension_numbers<[1], [0], [0], [1], [0, 0, 1, 1], [], []>} : vector<5x5xbf16>, vector<5x16xbf16>, vector<5x16xf32> -> vector<5x16xf32>
    %65 = arith.truncf %64 : vector<5x16xf32> to vector<5x16xbf16>
    %66 = vector.extract_strided_slice %42 {offsets = [0, 0], sizes = [16, 32], strides = [1, 1]} : vector<32x32xbf16> to vector<16x32xbf16>
    %cst_33 = arith.constant dense<0.000000e+00> : vector<5x32xf32>
    %67 = tpu.matmul %65, %66, %cst_33 {dimension_numbers = #tpu.dot_dimension_numbers<[1], [0], [0], [1], [0, 0, 1, 1], [], []>} : vector<5x16xbf16>, vector<16x32xbf16>, vector<5x32xf32> -> vector<5x32xf32>
    %68 = arith.addf %43, %67 : vector<5x32xf32>
    %69 = vector.extract_strided_slice %40 {offsets = [0, 16], sizes = [5, 16], strides = [1, 1]} : vector<5x96xf32> to vector<5x16xf32>
    %cst_34 = arith.constant 2.500000e-01 : f32
    %70 = vector.broadcast %cst_34 : f32 to vector<5x16xf32>
    %71 = arith.mulf %69, %70 : vector<5x16xf32>
    %72 = vector.extract_strided_slice %40 {offsets = [0, 48], sizes = [5, 16], strides = [1, 1]} : vector<5x96xf32> to vector<5x16xf32>
    %73 = vector.extract_strided_slice %40 {offsets = [0, 80], sizes = [5, 16], strides = [1, 1]} : vector<5x96xf32> to vector<5x16xf32>
    %74 = arith.truncf %71 : vector<5x16xf32> to vector<5x16xbf16>
    %75 = arith.truncf %72 : vector<5x16xf32> to vector<5x16xbf16>
    %cst_35 = arith.constant dense<0.000000e+00> : vector<5x5xf32>
    %76 = tpu.matmul %74, %75, %cst_35 {dimension_numbers = #tpu.dot_dimension_numbers<[1], [1], [0], [0], [0, 0, 1, 0], [], []>} : vector<5x16xbf16>, vector<5x16xbf16>, vector<5x5xf32> -> vector<5x5xf32>
    %cst_36 = arith.constant dense<0xFF800000> : vector<5xf32>
    %77 = vector.multi_reduction <maximumf>, %76, %cst_36 [1] : vector<5x5xf32> to vector<5xf32>
    %78 = vector.shape_cast %77 : vector<5xf32> to vector<5x1xf32>
    %79 = vector.broadcast %78 : vector<5x1xf32> to vector<5x5xf32>
    %80 = arith.subf %76, %79 : vector<5x5xf32>
    %81 = math.exp %80 : vector<5x5xf32>
    %cst_37 = arith.constant dense<0.000000e+00> : vector<5xf32>
    %82 = vector.multi_reduction <add>, %81, %cst_37 [1] : vector<5x5xf32> to vector<5xf32>
    %83 = vector.shape_cast %82 : vector<5xf32> to vector<5x1xf32>
    %84 = tpu.reciprocal %83 {approx = true} : vector<5x1xf32> -> vector<5x1xf32>
    %85 = vector.broadcast %84 : vector<5x1xf32> to vector<5x5xf32>
    %86 = arith.mulf %81, %85 : vector<5x5xf32>
    %87 = arith.truncf %86 : vector<5x5xf32> to vector<5x5xbf16>
    %88 = arith.truncf %73 : vector<5x16xf32> to vector<5x16xbf16>
    %cst_38 = arith.constant dense<0.000000e+00> : vector<5x16xf32>
    %89 = tpu.matmul %87, %88, %cst_38 {dimension_numbers = #tpu.dot_dimension_numbers<[1], [0], [0], [1], [0, 0, 1, 1], [], []>} : vector<5x5xbf16>, vector<5x16xbf16>, vector<5x16xf32> -> vector<5x16xf32>
    %90 = arith.truncf %89 : vector<5x16xf32> to vector<5x16xbf16>
    %91 = vector.extract_strided_slice %42 {offsets = [16, 0], sizes = [16, 32], strides = [1, 1]} : vector<32x32xbf16> to vector<16x32xbf16>
    %cst_39 = arith.constant dense<0.000000e+00> : vector<5x32xf32>
    %92 = tpu.matmul %90, %91, %cst_39 {dimension_numbers = #tpu.dot_dimension_numbers<[1], [0], [0], [1], [0, 0, 1, 1], [], []>} : vector<5x16xbf16>, vector<16x32xbf16>, vector<5x32xf32> -> vector<5x32xf32>
    %93 = arith.addf %68, %92 : vector<5x32xf32>
    %94 = arith.addf %6, %93 : vector<5x32xf32>
    %c0_40 = arith.constant 0 : index
    %c0_41 = arith.constant 0 : index
    %c0_42 = arith.constant 0 : index
    %95 = vector.load %arg9[%c0_40, %c0_41, %c0_42] : memref<2x1x32xf32, #tpu.memory_space<vmem>>, vector<1x1x32xf32>
    %96 = vector.shape_cast %95 : vector<1x1x32xf32> to vector<1x32xf32>
    %97 = vector.broadcast %96 : vector<1x32xf32> to vector<5x32xf32>
    %98 = arith.addf %94, %97 : vector<5x32xf32>
    %c0_43 = arith.constant 0 : index
    %c0_44 = arith.constant 0 : index
    %c0_45 = arith.constant 0 : index
    %99 = vector.load %arg10[%c0_43, %c0_44, %c0_45] : memref<2x1x32xf32, #tpu.memory_space<vmem>>, vector<1x1x32xf32>
    %100 = vector.shape_cast %99 : vector<1x1x32xf32> to vector<1x32xf32>
    %c0_46 = arith.constant 0 : index
    %c0_47 = arith.constant 0 : index
    %c0_48 = arith.constant 0 : index
    %101 = vector.load %arg11[%c0_46, %c0_47, %c0_48] : memref<2x1x32xf32, #tpu.memory_space<vmem>>, vector<1x1x32xf32>
    %102 = vector.shape_cast %101 : vector<1x1x32xf32> to vector<1x32xf32>
    %cst_49 = arith.constant dense<0.000000e+00> : vector<5xf32>
    %103 = vector.multi_reduction <add>, %98, %cst_49 [1] : vector<5x32xf32> to vector<5xf32>
    %104 = vector.shape_cast %103 : vector<5xf32> to vector<5x1xf32>
    %cst_50 = arith.constant 3.200000e+01 : f32
    %105 = vector.broadcast %cst_50 : f32 to vector<5x1xf32>
    %106 = arith.divf %104, %105 : vector<5x1xf32>
    %107 = arith.mulf %98, %98 : vector<5x32xf32>
    %cst_51 = arith.constant dense<0.000000e+00> : vector<5xf32>
    %108 = vector.multi_reduction <add>, %107, %cst_51 [1] : vector<5x32xf32> to vector<5xf32>
    %109 = vector.shape_cast %108 : vector<5xf32> to vector<5x1xf32>
    %cst_52 = arith.constant 3.200000e+01 : f32
    %110 = vector.broadcast %cst_52 : f32 to vector<5x1xf32>
    %111 = arith.divf %109, %110 : vector<5x1xf32>
    %112 = arith.mulf %106, %106 : vector<5x1xf32>
    %113 = arith.subf %111, %112 : vector<5x1xf32>
    %cst_53 = arith.constant 9.99999997E-7 : f32
    %114 = vector.broadcast %cst_53 : f32 to vector<5x1xf32>
    %115 = arith.addf %113, %114 : vector<5x1xf32>
    %116 = math.rsqrt %115 : vector<5x1xf32>
    %117 = vector.broadcast %106 : vector<5x1xf32> to vector<5x32xf32>
    %118 = arith.subf %98, %117 : vector<5x32xf32>
    %119 = vector.broadcast %116 : vector<5x1xf32> to vector<5x32xf32>
    %120 = arith.mulf %118, %119 : vector<5x32xf32>
    %121 = vector.broadcast %100 : vector<1x32xf32> to vector<5x32xf32>
    %122 = arith.mulf %120, %121 : vector<5x32xf32>
    %123 = vector.broadcast %102 : vector<1x32xf32> to vector<5x32xf32>
    %124 = arith.addf %122, %123 : vector<5x32xf32>
    %125 = arith.truncf %124 : vector<5x32xf32> to vector<5x32xbf16>
    %c0_54 = arith.constant 0 : index
    %c0_55 = arith.constant 0 : index
    %c0_56 = arith.constant 0 : index
    %126 = vector.load %arg12[%c0_54, %c0_55, %c0_56] : memref<2x32x64xbf16, #tpu.memory_space<vmem>>, vector<1x32x64xbf16>
    %127 = vector.shape_cast %126 : vector<1x32x64xbf16> to vector<32x64xbf16>
    %cst_57 = arith.constant dense<0.000000e+00> : vector<5x64xf32>
    %128 = tpu.matmul %125, %127, %cst_57 {dimension_numbers = #tpu.dot_dimension_numbers<[1], [0], [0], [1], [0, 0, 1, 1], [], []>} : vector<5x32xbf16>, vector<32x64xbf16>, vector<5x64xf32> -> vector<5x64xf32>
    %c0_58 = arith.constant 0 : index
    %c0_59 = arith.constant 0 : index
    %c0_60 = arith.constant 0 : index
    %129 = vector.load %arg13[%c0_58, %c0_59, %c0_60] : memref<2x1x64xf32, #tpu.memory_space<vmem>>, vector<1x1x64xf32>
    %130 = vector.shape_cast %129 : vector<1x1x64xf32> to vector<1x64xf32>
    %131 = vector.broadcast %130 : vector<1x64xf32> to vector<5x64xf32>
    %132 = arith.addf %128, %131 : vector<5x64xf32>
    %cst_61 = arith.constant 5.000000e-01 : f32
    %133 = vector.broadcast %cst_61 : f32 to vector<5x64xf32>
    %134 = arith.mulf %133, %132 : vector<5x64xf32>
    %cst_62 = arith.constant 0.707106769 : f32
    %135 = vector.broadcast %cst_62 : f32 to vector<5x64xf32>
    %136 = arith.mulf %132, %135 : vector<5x64xf32>
    %cst_63 = arith.constant 0.000000e+00 : f32
    %137 = vector.broadcast %cst_63 : f32 to vector<5x64xf32>
    %138 = arith.cmpf oge, %136, %137 : vector<5x64xf32>
    %cst_64 = arith.constant 1.000000e+00 : f32
    %cst_65 = arith.constant -1.000000e+00 : f32
    %139 = vector.broadcast %cst_64 : f32 to vector<5x64xf32>
    %140 = vector.broadcast %cst_65 : f32 to vector<5x64xf32>
    %141 = arith.select %138, %139, %140 : vector<5x64xi1>, vector<5x64xf32>
    %142 = math.absf %136 : vector<5x64xf32>
    %cst_66 = arith.constant 0.327591091 : f32
    %143 = vector.broadcast %cst_66 : f32 to vector<5x64xf32>
    %144 = arith.mulf %143, %142 : vector<5x64xf32>
    %cst_67 = arith.constant 1.000000e+00 : f32
    %145 = vector.broadcast %cst_67 : f32 to vector<5x64xf32>
    %146 = arith.addf %145, %144 : vector<5x64xf32>
    %cst_68 = arith.constant 1.000000e+00 : f32
    %147 = vector.broadcast %cst_68 : f32 to vector<5x64xf32>
    %148 = arith.divf %147, %146 : vector<5x64xf32>
    %cst_69 = arith.constant 1.06140542 : f32
    %149 = vector.broadcast %cst_69 : f32 to vector<5x64xf32>
    %150 = arith.mulf %149, %148 : vector<5x64xf32>
    %cst_70 = arith.constant -1.45315206 : f32
    %151 = vector.broadcast %cst_70 : f32 to vector<5x64xf32>
    %152 = arith.addf %150, %151 : vector<5x64xf32>
    %153 = arith.mulf %152, %148 : vector<5x64xf32>
    %cst_71 = arith.constant 1.42141378 : f32
    %154 = vector.broadcast %cst_71 : f32 to vector<5x64xf32>
    %155 = arith.addf %153, %154 : vector<5x64xf32>
    %156 = arith.mulf %155, %148 : vector<5x64xf32>
    %cst_72 = arith.constant -0.284496725 : f32
    %157 = vector.broadcast %cst_72 : f32 to vector<5x64xf32>
    %158 = arith.addf %156, %157 : vector<5x64xf32>
    %159 = arith.mulf %158, %148 : vector<5x64xf32>
    %cst_73 = arith.constant 0.254829586 : f32
    %160 = vector.broadcast %cst_73 : f32 to vector<5x64xf32>
    %161 = arith.addf %159, %160 : vector<5x64xf32>
    %162 = arith.mulf %161, %148 : vector<5x64xf32>
    %163 = arith.mulf %142, %142 : vector<5x64xf32>
    %cst_74 = arith.constant 0.000000e+00 : f32
    %164 = vector.broadcast %cst_74 : f32 to vector<5x64xf32>
    %165 = arith.subf %164, %163 : vector<5x64xf32>
    %166 = math.exp %165 : vector<5x64xf32>
    %167 = arith.mulf %162, %166 : vector<5x64xf32>
    %cst_75 = arith.constant 1.000000e+00 : f32
    %168 = vector.broadcast %cst_75 : f32 to vector<5x64xf32>
    %169 = arith.subf %168, %167 : vector<5x64xf32>
    %170 = arith.mulf %141, %169 : vector<5x64xf32>
    %cst_76 = arith.constant 1.000000e+00 : f32
    %171 = vector.broadcast %cst_76 : f32 to vector<5x64xf32>
    %172 = arith.addf %171, %170 : vector<5x64xf32>
    %173 = arith.mulf %134, %172 : vector<5x64xf32>
    %174 = arith.truncf %173 : vector<5x64xf32> to vector<5x64xbf16>
    %c0_77 = arith.constant 0 : index
    %c0_78 = arith.constant 0 : index
    %c0_79 = arith.constant 0 : index
    %175 = vector.load %arg14[%c0_77, %c0_78, %c0_79] : memref<2x64x32xbf16, #tpu.memory_space<vmem>>, vector<1x64x32xbf16>
    %176 = vector.shape_cast %175 : vector<1x64x32xbf16> to vector<64x32xbf16>
    %cst_80 = arith.constant dense<0.000000e+00> : vector<5x32xf32>
    %177 = tpu.matmul %174, %176, %cst_80 {dimension_numbers = #tpu.dot_dimension_numbers<[1], [0], [0], [1], [0, 0, 1, 1], [], []>} : vector<5x64xbf16>, vector<64x32xbf16>, vector<5x32xf32> -> vector<5x32xf32>
    %c0_81 = arith.constant 0 : index
    %c0_82 = arith.constant 0 : index
    %c0_83 = arith.constant 0 : index
    %178 = vector.load %arg15[%c0_81, %c0_82, %c0_83] : memref<2x1x32xf32, #tpu.memory_space<vmem>>, vector<1x1x32xf32>
    %179 = vector.shape_cast %178 : vector<1x1x32xf32> to vector<1x32xf32>
    %180 = vector.broadcast %179 : vector<1x32xf32> to vector<5x32xf32>
    %181 = arith.addf %177, %180 : vector<5x32xf32>
    %182 = arith.addf %98, %181 : vector<5x32xf32>
    %c1 = arith.constant 1 : index
    %c0_84 = arith.constant 0 : index
    %c0_85 = arith.constant 0 : index
    %183 = vector.load %arg4[%c1, %c0_84, %c0_85] : memref<2x1x32xf32, #tpu.memory_space<vmem>>, vector<1x1x32xf32>
    %184 = vector.shape_cast %183 : vector<1x1x32xf32> to vector<1x32xf32>
    %c1_86 = arith.constant 1 : index
    %c0_87 = arith.constant 0 : index
    %c0_88 = arith.constant 0 : index
    %185 = vector.load %arg5[%c1_86, %c0_87, %c0_88] : memref<2x1x32xf32, #tpu.memory_space<vmem>>, vector<1x1x32xf32>
    %186 = vector.shape_cast %185 : vector<1x1x32xf32> to vector<1x32xf32>
    %cst_89 = arith.constant dense<0.000000e+00> : vector<5xf32>
    %187 = vector.multi_reduction <add>, %182, %cst_89 [1] : vector<5x32xf32> to vector<5xf32>
    %188 = vector.shape_cast %187 : vector<5xf32> to vector<5x1xf32>
    %cst_90 = arith.constant 3.200000e+01 : f32
    %189 = vector.broadcast %cst_90 : f32 to vector<5x1xf32>
    %190 = arith.divf %188, %189 : vector<5x1xf32>
    %191 = arith.mulf %182, %182 : vector<5x32xf32>
    %cst_91 = arith.constant dense<0.000000e+00> : vector<5xf32>
    %192 = vector.multi_reduction <add>, %191, %cst_91 [1] : vector<5x32xf32> to vector<5xf32>
    %193 = vector.shape_cast %192 : vector<5xf32> to vector<5x1xf32>
    %cst_92 = arith.constant 3.200000e+01 : f32
    %194 = vector.broadcast %cst_92 : f32 to vector<5x1xf32>
    %195 = arith.divf %193, %194 : vector<5x1xf32>
    %196 = arith.mulf %190, %190 : vector<5x1xf32>
    %197 = arith.subf %195, %196 : vector<5x1xf32>
    %cst_93 = arith.constant 9.99999997E-7 : f32
    %198 = vector.broadcast %cst_93 : f32 to vector<5x1xf32>
    %199 = arith.addf %197, %198 : vector<5x1xf32>
    %200 = math.rsqrt %199 : vector<5x1xf32>
    %201 = vector.broadcast %190 : vector<5x1xf32> to vector<5x32xf32>
    %202 = arith.subf %182, %201 : vector<5x32xf32>
    %203 = vector.broadcast %200 : vector<5x1xf32> to vector<5x32xf32>
    %204 = arith.mulf %202, %203 : vector<5x32xf32>
    %205 = vector.broadcast %184 : vector<1x32xf32> to vector<5x32xf32>
    %206 = arith.mulf %204, %205 : vector<5x32xf32>
    %207 = vector.broadcast %186 : vector<1x32xf32> to vector<5x32xf32>
    %208 = arith.addf %206, %207 : vector<5x32xf32>
    %209 = arith.truncf %208 : vector<5x32xf32> to vector<5x32xbf16>
    %c1_94 = arith.constant 1 : index
    %c0_95 = arith.constant 0 : index
    %c0_96 = arith.constant 0 : index
    %210 = vector.load %arg6[%c1_94, %c0_95, %c0_96] : memref<2x32x96xbf16, #tpu.memory_space<vmem>>, vector<1x32x96xbf16>
    %211 = vector.shape_cast %210 : vector<1x32x96xbf16> to vector<32x96xbf16>
    %cst_97 = arith.constant dense<0.000000e+00> : vector<5x96xf32>
    %212 = tpu.matmul %209, %211, %cst_97 {dimension_numbers = #tpu.dot_dimension_numbers<[1], [0], [0], [1], [0, 0, 1, 1], [], []>} : vector<5x32xbf16>, vector<32x96xbf16>, vector<5x96xf32> -> vector<5x96xf32>
    %c1_98 = arith.constant 1 : index
    %c0_99 = arith.constant 0 : index
    %c0_100 = arith.constant 0 : index
    %213 = vector.load %arg7[%c1_98, %c0_99, %c0_100] : memref<2x1x96xf32, #tpu.memory_space<vmem>>, vector<1x1x96xf32>
    %214 = vector.shape_cast %213 : vector<1x1x96xf32> to vector<1x96xf32>
    %215 = vector.broadcast %214 : vector<1x96xf32> to vector<5x96xf32>
    %216 = arith.addf %212, %215 : vector<5x96xf32>
    %c1_101 = arith.constant 1 : index
    %c0_102 = arith.constant 0 : index
    %c0_103 = arith.constant 0 : index
    %217 = vector.load %arg8[%c1_101, %c0_102, %c0_103] : memref<2x32x32xbf16, #tpu.memory_space<vmem>>, vector<1x32x32xbf16>
    %218 = vector.shape_cast %217 : vector<1x32x32xbf16> to vector<32x32xbf16>
    %cst_104 = arith.constant 0.000000e+00 : f32
    %219 = vector.broadcast %cst_104 : f32 to vector<5x32xf32>
    %220 = vector.extract_strided_slice %216 {offsets = [0, 0], sizes = [5, 16], strides = [1, 1]} : vector<5x96xf32> to vector<5x16xf32>
    %cst_105 = arith.constant 2.500000e-01 : f32
    %221 = vector.broadcast %cst_105 : f32 to vector<5x16xf32>
    %222 = arith.mulf %220, %221 : vector<5x16xf32>
    %223 = vector.extract_strided_slice %216 {offsets = [0, 32], sizes = [5, 16], strides = [1, 1]} : vector<5x96xf32> to vector<5x16xf32>
    %224 = vector.extract_strided_slice %216 {offsets = [0, 64], sizes = [5, 16], strides = [1, 1]} : vector<5x96xf32> to vector<5x16xf32>
    %225 = arith.truncf %222 : vector<5x16xf32> to vector<5x16xbf16>
    %226 = arith.truncf %223 : vector<5x16xf32> to vector<5x16xbf16>
    %cst_106 = arith.constant dense<0.000000e+00> : vector<5x5xf32>
    %227 = tpu.matmul %225, %226, %cst_106 {dimension_numbers = #tpu.dot_dimension_numbers<[1], [1], [0], [0], [0, 0, 1, 0], [], []>} : vector<5x16xbf16>, vector<5x16xbf16>, vector<5x5xf32> -> vector<5x5xf32>
    %cst_107 = arith.constant dense<0xFF800000> : vector<5xf32>
    %228 = vector.multi_reduction <maximumf>, %227, %cst_107 [1] : vector<5x5xf32> to vector<5xf32>
    %229 = vector.shape_cast %228 : vector<5xf32> to vector<5x1xf32>
    %230 = vector.broadcast %229 : vector<5x1xf32> to vector<5x5xf32>
    %231 = arith.subf %227, %230 : vector<5x5xf32>
    %232 = math.exp %231 : vector<5x5xf32>
    %cst_108 = arith.constant dense<0.000000e+00> : vector<5xf32>
    %233 = vector.multi_reduction <add>, %232, %cst_108 [1] : vector<5x5xf32> to vector<5xf32>
    %234 = vector.shape_cast %233 : vector<5xf32> to vector<5x1xf32>
    %235 = tpu.reciprocal %234 {approx = true} : vector<5x1xf32> -> vector<5x1xf32>
    %236 = vector.broadcast %235 : vector<5x1xf32> to vector<5x5xf32>
    %237 = arith.mulf %232, %236 : vector<5x5xf32>
    %238 = arith.truncf %237 : vector<5x5xf32> to vector<5x5xbf16>
    %239 = arith.truncf %224 : vector<5x16xf32> to vector<5x16xbf16>
    %cst_109 = arith.constant dense<0.000000e+00> : vector<5x16xf32>
    %240 = tpu.matmul %238, %239, %cst_109 {dimension_numbers = #tpu.dot_dimension_numbers<[1], [0], [0], [1], [0, 0, 1, 1], [], []>} : vector<5x5xbf16>, vector<5x16xbf16>, vector<5x16xf32> -> vector<5x16xf32>
    %241 = arith.truncf %240 : vector<5x16xf32> to vector<5x16xbf16>
    %242 = vector.extract_strided_slice %218 {offsets = [0, 0], sizes = [16, 32], strides = [1, 1]} : vector<32x32xbf16> to vector<16x32xbf16>
    %cst_110 = arith.constant dense<0.000000e+00> : vector<5x32xf32>
    %243 = tpu.matmul %241, %242, %cst_110 {dimension_numbers = #tpu.dot_dimension_numbers<[1], [0], [0], [1], [0, 0, 1, 1], [], []>} : vector<5x16xbf16>, vector<16x32xbf16>, vector<5x32xf32> -> vector<5x32xf32>
    %244 = arith.addf %219, %243 : vector<5x32xf32>
    %245 = vector.extract_strided_slice %216 {offsets = [0, 16], sizes = [5, 16], strides = [1, 1]} : vector<5x96xf32> to vector<5x16xf32>
    %cst_111 = arith.constant 2.500000e-01 : f32
    %246 = vector.broadcast %cst_111 : f32 to vector<5x16xf32>
    %247 = arith.mulf %245, %246 : vector<5x16xf32>
    %248 = vector.extract_strided_slice %216 {offsets = [0, 48], sizes = [5, 16], strides = [1, 1]} : vector<5x96xf32> to vector<5x16xf32>
    %249 = vector.extract_strided_slice %216 {offsets = [0, 80], sizes = [5, 16], strides = [1, 1]} : vector<5x96xf32> to vector<5x16xf32>
    %250 = arith.truncf %247 : vector<5x16xf32> to vector<5x16xbf16>
    %251 = arith.truncf %248 : vector<5x16xf32> to vector<5x16xbf16>
    %cst_112 = arith.constant dense<0.000000e+00> : vector<5x5xf32>
    %252 = tpu.matmul %250, %251, %cst_112 {dimension_numbers = #tpu.dot_dimension_numbers<[1], [1], [0], [0], [0, 0, 1, 0], [], []>} : vector<5x16xbf16>, vector<5x16xbf16>, vector<5x5xf32> -> vector<5x5xf32>
    %cst_113 = arith.constant dense<0xFF800000> : vector<5xf32>
    %253 = vector.multi_reduction <maximumf>, %252, %cst_113 [1] : vector<5x5xf32> to vector<5xf32>
    %254 = vector.shape_cast %253 : vector<5xf32> to vector<5x1xf32>
    %255 = vector.broadcast %254 : vector<5x1xf32> to vector<5x5xf32>
    %256 = arith.subf %252, %255 : vector<5x5xf32>
    %257 = math.exp %256 : vector<5x5xf32>
    %cst_114 = arith.constant dense<0.000000e+00> : vector<5xf32>
    %258 = vector.multi_reduction <add>, %257, %cst_114 [1] : vector<5x5xf32> to vector<5xf32>
    %259 = vector.shape_cast %258 : vector<5xf32> to vector<5x1xf32>
    %260 = tpu.reciprocal %259 {approx = true} : vector<5x1xf32> -> vector<5x1xf32>
    %261 = vector.broadcast %260 : vector<5x1xf32> to vector<5x5xf32>
    %262 = arith.mulf %257, %261 : vector<5x5xf32>
    %263 = arith.truncf %262 : vector<5x5xf32> to vector<5x5xbf16>
    %264 = arith.truncf %249 : vector<5x16xf32> to vector<5x16xbf16>
    %cst_115 = arith.constant dense<0.000000e+00> : vector<5x16xf32>
    %265 = tpu.matmul %263, %264, %cst_115 {dimension_numbers = #tpu.dot_dimension_numbers<[1], [0], [0], [1], [0, 0, 1, 1], [], []>} : vector<5x5xbf16>, vector<5x16xbf16>, vector<5x16xf32> -> vector<5x16xf32>
    %266 = arith.truncf %265 : vector<5x16xf32> to vector<5x16xbf16>
    %267 = vector.extract_strided_slice %218 {offsets = [16, 0], sizes = [16, 32], strides = [1, 1]} : vector<32x32xbf16> to vector<16x32xbf16>
    %cst_116 = arith.constant dense<0.000000e+00> : vector<5x32xf32>
    %268 = tpu.matmul %266, %267, %cst_116 {dimension_numbers = #tpu.dot_dimension_numbers<[1], [0], [0], [1], [0, 0, 1, 1], [], []>} : vector<5x16xbf16>, vector<16x32xbf16>, vector<5x32xf32> -> vector<5x32xf32>
    %269 = arith.addf %244, %268 : vector<5x32xf32>
    %270 = arith.addf %182, %269 : vector<5x32xf32>
    %c1_117 = arith.constant 1 : index
    %c0_118 = arith.constant 0 : index
    %c0_119 = arith.constant 0 : index
    %271 = vector.load %arg9[%c1_117, %c0_118, %c0_119] : memref<2x1x32xf32, #tpu.memory_space<vmem>>, vector<1x1x32xf32>
    %272 = vector.shape_cast %271 : vector<1x1x32xf32> to vector<1x32xf32>
    %273 = vector.broadcast %272 : vector<1x32xf32> to vector<5x32xf32>
    %274 = arith.addf %270, %273 : vector<5x32xf32>
    %c1_120 = arith.constant 1 : index
    %c0_121 = arith.constant 0 : index
    %c0_122 = arith.constant 0 : index
    %275 = vector.load %arg10[%c1_120, %c0_121, %c0_122] : memref<2x1x32xf32, #tpu.memory_space<vmem>>, vector<1x1x32xf32>
    %276 = vector.shape_cast %275 : vector<1x1x32xf32> to vector<1x32xf32>
    %c1_123 = arith.constant 1 : index
    %c0_124 = arith.constant 0 : index
    %c0_125 = arith.constant 0 : index
    %277 = vector.load %arg11[%c1_123, %c0_124, %c0_125] : memref<2x1x32xf32, #tpu.memory_space<vmem>>, vector<1x1x32xf32>
    %278 = vector.shape_cast %277 : vector<1x1x32xf32> to vector<1x32xf32>
    %cst_126 = arith.constant dense<0.000000e+00> : vector<5xf32>
    %279 = vector.multi_reduction <add>, %274, %cst_126 [1] : vector<5x32xf32> to vector<5xf32>
    %280 = vector.shape_cast %279 : vector<5xf32> to vector<5x1xf32>
    %cst_127 = arith.constant 3.200000e+01 : f32
    %281 = vector.broadcast %cst_127 : f32 to vector<5x1xf32>
    %282 = arith.divf %280, %281 : vector<5x1xf32>
    %283 = arith.mulf %274, %274 : vector<5x32xf32>
    %cst_128 = arith.constant dense<0.000000e+00> : vector<5xf32>
    %284 = vector.multi_reduction <add>, %283, %cst_128 [1] : vector<5x32xf32> to vector<5xf32>
    %285 = vector.shape_cast %284 : vector<5xf32> to vector<5x1xf32>
    %cst_129 = arith.constant 3.200000e+01 : f32
    %286 = vector.broadcast %cst_129 : f32 to vector<5x1xf32>
    %287 = arith.divf %285, %286 : vector<5x1xf32>
    %288 = arith.mulf %282, %282 : vector<5x1xf32>
    %289 = arith.subf %287, %288 : vector<5x1xf32>
    %cst_130 = arith.constant 9.99999997E-7 : f32
    %290 = vector.broadcast %cst_130 : f32 to vector<5x1xf32>
    %291 = arith.addf %289, %290 : vector<5x1xf32>
    %292 = math.rsqrt %291 : vector<5x1xf32>
    %293 = vector.broadcast %282 : vector<5x1xf32> to vector<5x32xf32>
    %294 = arith.subf %274, %293 : vector<5x32xf32>
    %295 = vector.broadcast %292 : vector<5x1xf32> to vector<5x32xf32>
    %296 = arith.mulf %294, %295 : vector<5x32xf32>
    %297 = vector.broadcast %276 : vector<1x32xf32> to vector<5x32xf32>
    %298 = arith.mulf %296, %297 : vector<5x32xf32>
    %299 = vector.broadcast %278 : vector<1x32xf32> to vector<5x32xf32>
    %300 = arith.addf %298, %299 : vector<5x32xf32>
    %301 = arith.truncf %300 : vector<5x32xf32> to vector<5x32xbf16>
    %c1_131 = arith.constant 1 : index
    %c0_132 = arith.constant 0 : index
    %c0_133 = arith.constant 0 : index
    %302 = vector.load %arg12[%c1_131, %c0_132, %c0_133] : memref<2x32x64xbf16, #tpu.memory_space<vmem>>, vector<1x32x64xbf16>
    %303 = vector.shape_cast %302 : vector<1x32x64xbf16> to vector<32x64xbf16>
    %cst_134 = arith.constant dense<0.000000e+00> : vector<5x64xf32>
    %304 = tpu.matmul %301, %303, %cst_134 {dimension_numbers = #tpu.dot_dimension_numbers<[1], [0], [0], [1], [0, 0, 1, 1], [], []>} : vector<5x32xbf16>, vector<32x64xbf16>, vector<5x64xf32> -> vector<5x64xf32>
    %c1_135 = arith.constant 1 : index
    %c0_136 = arith.constant 0 : index
    %c0_137 = arith.constant 0 : index
    %305 = vector.load %arg13[%c1_135, %c0_136, %c0_137] : memref<2x1x64xf32, #tpu.memory_space<vmem>>, vector<1x1x64xf32>
    %306 = vector.shape_cast %305 : vector<1x1x64xf32> to vector<1x64xf32>
    %307 = vector.broadcast %306 : vector<1x64xf32> to vector<5x64xf32>
    %308 = arith.addf %304, %307 : vector<5x64xf32>
    %cst_138 = arith.constant 5.000000e-01 : f32
    %309 = vector.broadcast %cst_138 : f32 to vector<5x64xf32>
    %310 = arith.mulf %309, %308 : vector<5x64xf32>
    %cst_139 = arith.constant 0.707106769 : f32
    %311 = vector.broadcast %cst_139 : f32 to vector<5x64xf32>
    %312 = arith.mulf %308, %311 : vector<5x64xf32>
    %cst_140 = arith.constant 0.000000e+00 : f32
    %313 = vector.broadcast %cst_140 : f32 to vector<5x64xf32>
    %314 = arith.cmpf oge, %312, %313 : vector<5x64xf32>
    %cst_141 = arith.constant 1.000000e+00 : f32
    %cst_142 = arith.constant -1.000000e+00 : f32
    %315 = vector.broadcast %cst_141 : f32 to vector<5x64xf32>
    %316 = vector.broadcast %cst_142 : f32 to vector<5x64xf32>
    %317 = arith.select %314, %315, %316 : vector<5x64xi1>, vector<5x64xf32>
    %318 = math.absf %312 : vector<5x64xf32>
    %cst_143 = arith.constant 0.327591091 : f32
    %319 = vector.broadcast %cst_143 : f32 to vector<5x64xf32>
    %320 = arith.mulf %319, %318 : vector<5x64xf32>
    %cst_144 = arith.constant 1.000000e+00 : f32
    %321 = vector.broadcast %cst_144 : f32 to vector<5x64xf32>
    %322 = arith.addf %321, %320 : vector<5x64xf32>
    %cst_145 = arith.constant 1.000000e+00 : f32
    %323 = vector.broadcast %cst_145 : f32 to vector<5x64xf32>
    %324 = arith.divf %323, %322 : vector<5x64xf32>
    %cst_146 = arith.constant 1.06140542 : f32
    %325 = vector.broadcast %cst_146 : f32 to vector<5x64xf32>
    %326 = arith.mulf %325, %324 : vector<5x64xf32>
    %cst_147 = arith.constant -1.45315206 : f32
    %327 = vector.broadcast %cst_147 : f32 to vector<5x64xf32>
    %328 = arith.addf %326, %327 : vector<5x64xf32>
    %329 = arith.mulf %328, %324 : vector<5x64xf32>
    %cst_148 = arith.constant 1.42141378 : f32
    %330 = vector.broadcast %cst_148 : f32 to vector<5x64xf32>
    %331 = arith.addf %329, %330 : vector<5x64xf32>
    %332 = arith.mulf %331, %324 : vector<5x64xf32>
    %cst_149 = arith.constant -0.284496725 : f32
    %333 = vector.broadcast %cst_149 : f32 to vector<5x64xf32>
    %334 = arith.addf %332, %333 : vector<5x64xf32>
    %335 = arith.mulf %334, %324 : vector<5x64xf32>
    %cst_150 = arith.constant 0.254829586 : f32
    %336 = vector.broadcast %cst_150 : f32 to vector<5x64xf32>
    %337 = arith.addf %335, %336 : vector<5x64xf32>
    %338 = arith.mulf %337, %324 : vector<5x64xf32>
    %339 = arith.mulf %318, %318 : vector<5x64xf32>
    %cst_151 = arith.constant 0.000000e+00 : f32
    %340 = vector.broadcast %cst_151 : f32 to vector<5x64xf32>
    %341 = arith.subf %340, %339 : vector<5x64xf32>
    %342 = math.exp %341 : vector<5x64xf32>
    %343 = arith.mulf %338, %342 : vector<5x64xf32>
    %cst_152 = arith.constant 1.000000e+00 : f32
    %344 = vector.broadcast %cst_152 : f32 to vector<5x64xf32>
    %345 = arith.subf %344, %343 : vector<5x64xf32>
    %346 = arith.mulf %317, %345 : vector<5x64xf32>
    %cst_153 = arith.constant 1.000000e+00 : f32
    %347 = vector.broadcast %cst_153 : f32 to vector<5x64xf32>
    %348 = arith.addf %347, %346 : vector<5x64xf32>
    %349 = arith.mulf %310, %348 : vector<5x64xf32>
    %350 = arith.truncf %349 : vector<5x64xf32> to vector<5x64xbf16>
    %c1_154 = arith.constant 1 : index
    %c0_155 = arith.constant 0 : index
    %c0_156 = arith.constant 0 : index
    %351 = vector.load %arg14[%c1_154, %c0_155, %c0_156] : memref<2x64x32xbf16, #tpu.memory_space<vmem>>, vector<1x64x32xbf16>
    %352 = vector.shape_cast %351 : vector<1x64x32xbf16> to vector<64x32xbf16>
    %cst_157 = arith.constant dense<0.000000e+00> : vector<5x32xf32>
    %353 = tpu.matmul %350, %352, %cst_157 {dimension_numbers = #tpu.dot_dimension_numbers<[1], [0], [0], [1], [0, 0, 1, 1], [], []>} : vector<5x64xbf16>, vector<64x32xbf16>, vector<5x32xf32> -> vector<5x32xf32>
    %c1_158 = arith.constant 1 : index
    %c0_159 = arith.constant 0 : index
    %c0_160 = arith.constant 0 : index
    %354 = vector.load %arg15[%c1_158, %c0_159, %c0_160] : memref<2x1x32xf32, #tpu.memory_space<vmem>>, vector<1x1x32xf32>
    %355 = vector.shape_cast %354 : vector<1x1x32xf32> to vector<1x32xf32>
    %356 = vector.broadcast %355 : vector<1x32xf32> to vector<5x32xf32>
    %357 = arith.addf %353, %356 : vector<5x32xf32>
    %358 = arith.addf %274, %357 : vector<5x32xf32>
    %c0_161 = arith.constant 0 : index
    %c0_162 = arith.constant 0 : index
    %359 = vector.load %arg16[%c0_161, %c0_162] : memref<1x32xf32, #tpu.memory_space<vmem>>, vector<1x32xf32>
    %c0_163 = arith.constant 0 : index
    %c0_164 = arith.constant 0 : index
    %360 = vector.load %arg17[%c0_163, %c0_164] : memref<1x32xf32, #tpu.memory_space<vmem>>, vector<1x32xf32>
    %cst_165 = arith.constant dense<0.000000e+00> : vector<5xf32>
    %361 = vector.multi_reduction <add>, %358, %cst_165 [1] : vector<5x32xf32> to vector<5xf32>
    %362 = vector.shape_cast %361 : vector<5xf32> to vector<5x1xf32>
    %cst_166 = arith.constant 3.200000e+01 : f32
    %363 = vector.broadcast %cst_166 : f32 to vector<5x1xf32>
    %364 = arith.divf %362, %363 : vector<5x1xf32>
    %365 = arith.mulf %358, %358 : vector<5x32xf32>
    %cst_167 = arith.constant dense<0.000000e+00> : vector<5xf32>
    %366 = vector.multi_reduction <add>, %365, %cst_167 [1] : vector<5x32xf32> to vector<5xf32>
    %367 = vector.shape_cast %366 : vector<5xf32> to vector<5x1xf32>
    %cst_168 = arith.constant 3.200000e+01 : f32
    %368 = vector.broadcast %cst_168 : f32 to vector<5x1xf32>
    %369 = arith.divf %367, %368 : vector<5x1xf32>
    %370 = arith.mulf %364, %364 : vector<5x1xf32>
    %371 = arith.subf %369, %370 : vector<5x1xf32>
    %cst_169 = arith.constant 9.99999997E-7 : f32
    %372 = vector.broadcast %cst_169 : f32 to vector<5x1xf32>
    %373 = arith.addf %371, %372 : vector<5x1xf32>
    %374 = math.rsqrt %373 : vector<5x1xf32>
    %375 = vector.broadcast %364 : vector<5x1xf32> to vector<5x32xf32>
    %376 = arith.subf %358, %375 : vector<5x32xf32>
    %377 = vector.broadcast %374 : vector<5x1xf32> to vector<5x32xf32>
    %378 = arith.mulf %376, %377 : vector<5x32xf32>
    %379 = vector.broadcast %359 : vector<1x32xf32> to vector<5x32xf32>
    %380 = arith.mulf %378, %379 : vector<5x32xf32>
    %381 = vector.broadcast %360 : vector<1x32xf32> to vector<5x32xf32>
    %382 = arith.addf %380, %381 : vector<5x32xf32>
    %383 = vector.extract_strided_slice %382 {offsets = [1, 0], sizes = [4, 32], strides = [1, 1]} : vector<5x32xf32> to vector<4x32xf32>
    %384 = arith.truncf %383 : vector<4x32xf32> to vector<4x32xbf16>
    %c0_170 = arith.constant 0 : index
    %c0_171 = arith.constant 0 : index
    %385 = vector.load %arg18[%c0_170, %c0_171] : memref<32x128xbf16, #tpu.memory_space<vmem>>, vector<32x128xbf16>
    %cst_172 = arith.constant dense<0.000000e+00> : vector<4x128xf32>
    %386 = tpu.matmul %384, %385, %cst_172 {dimension_numbers = #tpu.dot_dimension_numbers<[1], [0], [0], [1], [0, 0, 1, 1], [], []>} : vector<4x32xbf16>, vector<32x128xbf16>, vector<4x128xf32> -> vector<4x128xf32>
    %c0_173 = arith.constant 0 : index
    %c0_174 = arith.constant 0 : index
    %387 = vector.load %arg19[%c0_173, %c0_174] : memref<1x128xf32, #tpu.memory_space<vmem>>, vector<1x128xf32>
    %388 = vector.broadcast %387 : vector<1x128xf32> to vector<4x128xf32>
    %389 = arith.addf %386, %388 : vector<4x128xf32>
    %c0_175 = arith.constant 0 : index
    %c0_176 = arith.constant 0 : index
    %c0_177 = arith.constant 0 : index
    %390 = vector.load %arg20[%c0_175, %c0_176, %c0_177] : memref<1x4x128xf32, #tpu.memory_space<vmem>>, vector<1x4x128xf32>
    %391 = vector.shape_cast %390 : vector<1x4x128xf32> to vector<4x128xf32>
    %392 = vector.shape_cast %389 : vector<4x128xf32> to vector<1x4x128xf32>
    tpu.vector_store %arg20[%c0_175, %c0_176, %c0_177], %392 {strides = array<i32>} : memref<1x4x128xf32, #tpu.memory_space<vmem>>, vector<1x4x128xf32>,
    return
  }
  func.func @transform_0(%arg0: i32) -> (i32, i32, i32) {
    %c0_i32 = arith.constant 0 : i32
    %c0_i32_0 = arith.constant 0 : i32
    %c0_i32_1 = arith.constant 0 : i32
    return %arg0, %c0_i32, %c0_i32_0 : i32, i32, i32
  }
  func.func @transform_1(%arg0: i32) -> (i32, i32) {
    %c0_i32 = arith.constant 0 : i32
    %c0_i32_0 = arith.constant 0 : i32
    %c0_i32_1 = arith.constant 0 : i32
    return %c0_i32, %c0_i32_0 : i32, i32
  }
  func.func @transform_2(%arg0: i32) -> (i32, i32) {
    %c0_i32 = arith.constant 0 : i32
    %c0_i32_0 = arith.constant 0 : i32
    %c0_i32_1 = arith.constant 0 : i32
    return %c0_i32, %c0_i32_0 : i32, i32
  }
  func.func @transform_3(%arg0: i32) -> (i32, i32, i32) {
    %c0_i32 = arith.constant 0 : i32
    %c0_i32_0 = arith.constant 0 : i32
    %c0_i32_1 = arith.constant 0 : i32
    %c0_i32_2 = arith.constant 0 : i32
    return %c0_i32, %c0_i32_0, %c0_i32_1 : i32, i32, i32
  }
  func.func @transform_4(%arg0: i32) -> (i32, i32, i32) {
    %c0_i32 = arith.constant 0 : i32
    %c0_i32_0 = arith.constant 0 : i32
    %c0_i32_1 = arith.constant 0 : i32
    %c0_i32_2 = arith.constant 0 : i32
    return %c0_i32, %c0_i32_0, %c0_i32_1 : i32, i32, i32
  }
  func.func @transform_5(%arg0: i32) -> (i32, i32, i32) {
    %c0_i32 = arith.constant 0 : i32
    %c0_i32_0 = arith.constant 0 : i32
    %c0_i32_1 = arith.constant 0 : i32
    %c0_i32_2 = arith.constant 0 : i32
    return %c0_i32, %c0_i32_0, %c0_i32_1 : i32, i32, i32
  }
  func.func @transform_6(%arg0: i32) -> (i32, i32, i32) {
    %c0_i32 = arith.constant 0 : i32
    %c0_i32_0 = arith.constant 0 : i32
    %c0_i32_1 = arith.constant 0 : i32
    %c0_i32_2 = arith.constant 0 : i32
    return %c0_i32, %c0_i32_0, %c0_i32_1 : i32, i32, i32
  }
  func.func @transform_7(%arg0: i32) -> (i32, i32, i32) {
    %c0_i32 = arith.constant 0 : i32
    %c0_i32_0 = arith.constant 0 : i32
    %c0_i32_1 = arith.constant 0 : i32
    %c0_i32_2 = arith.constant 0 : i32
    return %c0_i32, %c0_i32_0, %c0_i32_1 : i32, i32, i32
  }
  func.func @transform_8(%arg0: i32) -> (i32, i32, i32) {
    %c0_i32 = arith.constant 0 : i32
    %c0_i32_0 = arith.constant 0 : i32
    %c0_i32_1 = arith.constant 0 : i32
    %c0_i32_2 = arith.constant 0 : i32
    return %c0_i32, %c0_i32_0, %c0_i32_1 : i32, i32, i32
  }
  func.func @transform_9(%arg0: i32) -> (i32, i32, i32) {
    %c0_i32 = arith.constant 0 : i32
    %c0_i32_0 = arith.constant 0 : i32
    %c0_i32_1 = arith.constant 0 : i32
    %c0_i32_2 = arith.constant 0 : i32
    return %c0_i32, %c0_i32_0, %c0_i32_1 : i32, i32, i32
  }
  func.func @transform_10(%arg0: i32) -> (i32, i32, i32) {
    %c0_i32 = arith.constant 0 : i32
    %c0_i32_0 = arith.constant 0 : i32
    %c0_i32_1 = arith.constant 0 : i32
    %c0_i32_2 = arith.constant 0 : i32
    return %c0_i32, %c0_i32_0, %c0_i32_1 : i32, i32, i32
  }
  func.func @transform_11(%arg0: i32) -> (i32, i32, i32) {
    %c0_i32 = arith.constant 0 : i32
    %c0_i32_0 = arith.constant 0 : i32
    %c0_i32_1 = arith.constant 0 : i32
    %c0_i32_2 = arith.constant 0 : i32
    return %c0_i32, %c0_i32_0, %c0_i32_1 : i32, i32, i32
  }
  func.func @transform_12(%arg0: i32) -> (i32, i32, i32) {
    %c0_i32 = arith.constant 0 : i32
    %c0_i32_0 = arith.constant 0 : i32
    %c0_i32_1 = arith.constant 0 : i32
    %c0_i32_2 = arith.constant 0 : i32
    return %c0_i32, %c0_i32_0, %c0_i32_1 : i32, i32, i32
  }
  func.func @transform_13(%arg0: i32) -> (i32, i32, i32) {
    %c0_i32 = arith.constant 0 : i32
    %c0_i32_0 = arith.constant 0 : i32
    %c0_i32_1 = arith.constant 0 : i32
    %c0_i32_2 = arith.constant 0 : i32
    return %c0_i32, %c0_i32_0, %c0_i32_1 : i32, i32, i32
  }
  func.func @transform_14(%arg0: i32) -> (i32, i32, i32) {
    %c0_i32 = arith.constant 0 : i32
    %c0_i32_0 = arith.constant 0 : i32
    %c0_i32_1 = arith.constant 0 : i32
    %c0_i32_2 = arith.constant 0 : i32
    return %c0_i32, %c0_i32_0, %c0_i32_1 : i32, i32, i32
  }
  func.func @transform_15(%arg0: i32) -> (i32, i32) {
    %c0_i32 = arith.constant 0 : i32
    %c0_i32_0 = arith.constant 0 : i32
    %c0_i32_1 = arith.constant 0 : i32
    return %c0_i32, %c0_i32_0 : i32, i32
  }
  func.func @transform_16(%arg0: i32) -> (i32, i32) {
    %c0_i32 = arith.constant 0 : i32
    %c0_i32_0 = arith.constant 0 : i32
    %c0_i32_1 = arith.constant 0 : i32
    return %c0_i32, %c0_i32_0 : i32, i32
  }
  func.func @transform_17(%arg0: i32) -> (i32, i32) {
    %c0_i32 = arith.constant 0 : i32
    %c0_i32_0 = arith.constant 0 : i32
    %c0_i32_1 = arith.constant 0 : i32
    return %c0_i32, %c0_i32_0 : i32, i32
  }
  func.func @transform_18(%arg0: i32) -> (i32, i32) {
    %c0_i32 = arith.constant 0 : i32
    %c0_i32_0 = arith.constant 0 : i32
    %c0_i32_1 = arith.constant 0 : i32
    return %c0_i32, %c0_i32_0 : i32, i32
  }
  func.func @transform_19(%arg0: i32) -> (i32, i32, i32) {
    %c0_i32 = arith.constant 0 : i32
    %c0_i32_0 = arith.constant 0 : i32
    %c0_i32_1 = arith.constant 0 : i32
    return %arg0, %c0_i32, %c0_i32_0 : i32, i32, i32
  }
}

</mosaic_0001>

<llo_original>
// kernel: segmenter_forward.1
$region0: #{segmenter_forward.1}
  #allocation0 [shape = 'u32[]', space=smem, size = 0x4, offset = 0x4, fixed_abs, tag = 'smem constant byte address 0x4 - core index']
  #allocation1 [shape = 'u32[144,128]{1,0:T(1,128)}', space=vmem, size = 0x12000, scoped, tag = 'internal scratch']
  %s0 = inlined_call_operand.vmem [shape: f32[2,5,192], index: 0, kind: input, shape index: {}]
  %s1 = inlined_call_operand.vmem [shape: bf16[192,32], index: 1, kind: input, shape index: {}]
  %s2 = inlined_call_operand.vmem [shape: f32[5,32], index: 2, kind: input, shape index: {}]
  %s3 = inlined_call_operand.vmem [shape: f32[2,1,32], index: 3, kind: input, shape index: {}]
  %s4 = inlined_call_operand.vmem [shape: f32[2,1,32], index: 4, kind: input, shape index: {}]
  %s5 = inlined_call_operand.vmem [shape: bf16[2,32,96], index: 5, kind: input, shape index: {}]
  %s6 = inlined_call_operand.vmem [shape: f32[2,1,96], index: 6, kind: input, shape index: {}]
  %s7 = inlined_call_operand.vmem [shape: bf16[2,32,32], index: 7, kind: input, shape index: {}]
  %s8 = inlined_call_operand.vmem [shape: f32[2,1,32], index: 8, kind: input, shape index: {}]
  %s9 = inlined_call_operand.vmem [shape: f32[2,1,32], index: 9, kind: input, shape index: {}]
  %s10 = inlined_call_operand.vmem [shape: f32[2,1,32], index: 10, kind: input, shape index: {}]
  %s11 = inlined_call_operand.vmem [shape: bf16[2,32,64], index: 11, kind: input, shape index: {}]
  %s12 = inlined_call_operand.vmem [shape: f32[2,1,64], index: 12, kind: input, shape index: {}]
  %s13 = inlined_call_operand.vmem [shape: bf16[2,64,32], index: 13, kind: input, shape index: {}]
  %s14 = inlined_call_operand.vmem [shape: f32[2,1,32], index: 14, kind: input, shape index: {}]
  %s15 = inlined_call_operand.vmem [shape: f32[1,32], index: 15, kind: input, shape index: {}]
  %s16 = inlined_call_operand.vmem [shape: f32[1,32], index: 16, kind: input, shape index: {}]
  %s17 = inlined_call_operand.vmem [shape: bf16[32,128], index: 17, kind: input, shape index: {}]
  %s18 = inlined_call_operand.vmem [shape: f32[1,128], index: 18, kind: input, shape index: {}]
  %s19 = inlined_call_operand.vmem [shape: f32[2,4,128], index: 19, kind: output, shape index: {}]
  %s20 = sld [smem:[#allocation0]]
  $region109: #{segmenter_forward.1} parent=0
    _
  %s22 = ssub.s32 1, %s20
  %s23 = scalar_select 0, %s22, %s20
  loop: start=0, step=1, limit=4
  $region2: #{segmenter_forward.1} parent=0 // loop_pre_header
    _
  $region3: #{segmenter_forward.1} parent=0 // loop_header
    %s25 = sphi 0, %s29
    %p26 = scmp.ge.s32.totalorder %s25, 4
    %s35 = sphi 0, %s37
    %s38 = sphi 0, %s35
    %s39 = sphi 0, %s38
    %s55 = sphi 0, %s39
    %s59 = sphi 0, %s59
    %s61 = sphi 0, %s59
    %s62 = sphi 0, %s61
    %s76 = sphi 0, %s62
    %s80 = sphi 0, %s80
    %s82 = sphi 0, %s80
    %s83 = sphi 0, %s82
    %s97 = sphi 0, %s83
    %s101 = sphi 0, %s101
    %s103 = sphi 0, %s101
    %s104 = sphi 0, %s103
    %s118 = sphi 0, %s104
    %s122 = sphi 0, %s122
    %s124 = sphi 0, %s122
    %s125 = sphi 0, %s124
    %s139 = sphi 0, %s125
    %s143 = sphi 0, %s143
    %s145 = sphi 0, %s143
    %s146 = sphi 0, %s145
    %s160 = sphi 0, %s146
    %s164 = sphi 0, %s164
    %s166 = sphi 0, %s164
    %s167 = sphi 0, %s166
    %s181 = sphi 0, %s167
    %s185 = sphi 0, %s185
    %s187 = sphi 0, %s185
    %s188 = sphi 0, %s187
    %s202 = sphi 0, %s188
    %s206 = sphi 0, %s206
    %s208 = sphi 0, %s206
    %s209 = sphi 0, %s208
    %s223 = sphi 0, %s209
    %s227 = sphi 0, %s227
    %s229 = sphi 0, %s227
    %s230 = sphi 0, %s229
    %s244 = sphi 0, %s230
    %s248 = sphi 0, %s248
    %s250 = sphi 0, %s248
    %s251 = sphi 0, %s250
    %s265 = sphi 0, %s251
    %s269 = sphi 0, %s269
    %s271 = sphi 0, %s269
    %s272 = sphi 0, %s271
    %s286 = sphi 0, %s272
    %s290 = sphi 0, %s290
    %s292 = sphi 0, %s290
    %s293 = sphi 0, %s292
    %s307 = sphi 0, %s293
    %s311 = sphi 0, %s311
    %s313 = sphi 0, %s311
    %s314 = sphi 0, %s313
    %s328 = sphi 0, %s314
    %s332 = sphi 0, %s332
    %s334 = sphi 0, %s332
    %s335 = sphi 0, %s334
    %s349 = sphi 0, %s335
    %s353 = sphi 0, %s353
    %s355 = sphi 0, %s353
    %s356 = sphi 0, %s355
    %s370 = sphi 0, %s356
    %s374 = sphi 0, %s374
    %s376 = sphi 0, %s374
    %s377 = sphi 0, %s376
    %s391 = sphi 0, %s377
    %s395 = sphi 0, %s395
    %s397 = sphi 0, %s395
    %s398 = sphi 0, %s397
    %s412 = sphi 0, %s398
    %s416 = sphi 0, %s416
    %s418 = sphi 0, %s416
    %s419 = sphi 0, %s418
    %s433 = sphi 0, %s419
    %s439 = sphi 0, %s441
    %s442 = sphi 0, %s439
    %s443 = sphi 0, %s442
    %s459 = sphi 0, %s443
  $region4: #{segmenter_forward.1} parent=0 // loop_header_branch
    %28 = sbr.rel (%p26) target = $region8
  $region5: #{segmenter_forward.1} parent=0 // loop_body
    %s30 = ssub.s32 %s25, 1
    %s31 = ssub.s32 %s25, 2
    %s32 = sadd.s32 %s25, 1
    %s33 = ssub.s32 %s25, %s32
    %p34 = scmp.eq.s32.totalorder %s33, 0
    %s36 = sadd.s32 %s35, 1
    %s37 = scalar_select %p34, %s35, %s36
    %p40 = pneg %p34
    %p41 = scmp.eq.s32.totalorder %s25, 1
    %p42 = por %p40, %p41
    %p43 = scmp.ne.s32.totalorder %s35, %s38
    %p44 = scmp.eq.s32.totalorder %s25, 0
    %p45 = por %p43, %p44
    %p46 = scmp.ne.s32.totalorder %s35, %s38
    %p47 = scmp.eq.s32.totalorder %s30, 1
    %p48 = por %p46, %p47
    %p49 = scmp.ne.s32.totalorder %s38, %s39
    %p50 = scmp.eq.s32.totalorder %s30, 0
    %p51 = por %p49, %p50
    %p52 = scmp.ne.s32.totalorder %s38, %s39
    %p53 = scmp.eq.s32.totalorder %s31, 1
    %p54 = por %p52, %p53
    %p56 = scmp.ne.s32.totalorder %s39, %s55
    %p57 = scmp.eq.s32.totalorder %s31, 0
    %p58 = por %p56, %p57
    %s60 = sadd.s32 %s59, 1
    %p63 = scmp.eq.s32.totalorder %s25, 1
    %p64 = scmp.ne.s32.totalorder %s59, %s61
    %p65 = scmp.eq.s32.totalorder %s25, 0
    %p66 = por %p64, %p65
    %p67 = scmp.ne.s32.totalorder %s59, %s61
    %p68 = scmp.eq.s32.totalorder %s30, 1
    %p69 = por %p67, %p68
    %p70 = scmp.ne.s32.totalorder %s61, %s62
    %p71 = scmp.eq.s32.totalorder %s30, 0
    %p72 = por %p70, %p71
    %p73 = scmp.ne.s32.totalorder %s61, %s62
    %p74 = scmp.eq.s32.totalorder %s31, 1
    %p75 = por %p73, %p74
    %p77 = scmp.ne.s32.totalorder %s62, %s76
    %p78 = scmp.eq.s32.totalorder %s31, 0
    %p79 = por %p77, %p78
    %s81 = sadd.s32 %s80, 1
    %p84 = scmp.eq.s32.totalorder %s25, 1
    %p85 = scmp.ne.s32.totalorder %s80, %s82
    %p86 = scmp.eq.s32.totalorder %s25, 0
    %p87 = por %p85, %p86
    %p88 = scmp.ne.s32.totalorder %s80, %s82
    %p89 = scmp.eq.s32.totalorder %s30, 1
    %p90 = por %p88, %p89
    %p91 = scmp.ne.s32.totalorder %s82, %s83
    %p92 = scmp.eq.s32.totalorder %s30, 0
    %p93 = por %p91, %p92
    %p94 = scmp.ne.s32.totalorder %s82, %s83
    %p95 = scmp.eq.s32.totalorder %s31, 1
    %p96 = por %p94, %p95
    %p98 = scmp.ne.s32.totalorder %s83, %s97
    %p99 = scmp.eq.s32.totalorder %s31, 0
    %p100 = por %p98, %p99
    %s102 = sadd.s32 %s101, 1
    %p105 = scmp.eq.s32.totalorder %s25, 1
    %p106 = scmp.ne.s32.totalorder %s101, %s103
    %p107 = scmp.eq.s32.totalorder %s25, 0
    %p108 = por %p106, %p107
    %p109 = scmp.ne.s32.totalorder %s101, %s103
    %p110 = scmp.eq.s32.totalorder %s30, 1
    %p111 = por %p109, %p110
    %p112 = scmp.ne.s32.totalorder %s103, %s104
    %p113 = scmp.eq.s32.totalorder %s30, 0
    %p114 = por %p112, %p113
    %p115 = scmp.ne.s32.totalorder %s103, %s104
    %p116 = scmp.eq.s32.totalorder %s31, 1
    %p117 = por %p115, %p116
    %p119 = scmp.ne.s32.totalorder %s104, %s118
    %p120 = scmp.eq.s32.totalorder %s31, 0
    %p121 = por %p119, %p120
    %s123 = sadd.s32 %s122, 1
    %p126 = scmp.eq.s32.totalorder %s25, 1
    %p127 = scmp.ne.s32.totalorder %s122, %s124
    %p128 = scmp.eq.s32.totalorder %s25, 0
    %p129 = por %p127, %p128
    %p130 = scmp.ne.s32.totalorder %s122, %s124
    %p131 = scmp.eq.s32.totalorder %s30, 1
    %p132 = por %p130, %p131
    %p133 = scmp.ne.s32.totalorder %s124, %s125
    %p134 = scmp.eq.s32.totalorder %s30, 0
    %p135 = por %p133, %p134
    %p136 = scmp.ne.s32.totalorder %s124, %s125
    %p137 = scmp.eq.s32.totalorder %s31, 1
    %p138 = por %p136, %p137
    %p140 = scmp.ne.s32.totalorder %s125, %s139
    %p141 = scmp.eq.s32.totalorder %s31, 0
    %p142 = por %p140, %p141
    %s144 = sadd.s32 %s143, 1
    %p147 = scmp.eq.s32.totalorder %s25, 1
    %p148 = scmp.ne.s32.totalorder %s143, %s145
    %p149 = scmp.eq.s32.totalorder %s25, 0
    %p150 = por %p148, %p149
    %p151 = scmp.ne.s32.totalorder %s143, %s145
    %p152 = scmp.eq.s32.totalorder %s30, 1
    %p153 = por %p151, %p152
    %p154 = scmp.ne.s32.totalorder %s145, %s146
    %p155 = scmp.eq.s32.totalorder %s30, 0
    %p156 = por %p154, %p155
    %p157 = scmp.ne.s32.totalorder %s145, %s146
    %p158 = scmp.eq.s32.totalorder %s31, 1
    %p159 = por %p157, %p158
    %p161 = scmp.ne.s32.totalorder %s146, %s160
    %p162 = scmp.eq.s32.totalorder %s31, 0
    %p163 = por %p161, %p162
    %s165 = sadd.s32 %s164, 1
    %p168 = scmp.eq.s32.totalorder %s25, 1
    %p169 = scmp.ne.s32.totalorder %s164, %s166
    %p170 = scmp.eq.s32.totalorder %s25, 0
    %p171 = por %p169, %p170
    %p172 = scmp.ne.s32.totalorder %s164, %s166
    %p173 = scmp.eq.s32.totalorder %s30, 1
    %p174 = por %p172, %p173
    %p175 = scmp.ne.s32.totalorder %s166, %s167
    %p176 = scmp.eq.s32.totalorder %s30, 0
    %p177 = por %p175, %p176
    %p178 = scmp.ne.s32.totalorder %s166, %s167
    %p179 = scmp.eq.s32.totalorder %s31, 1
    %p180 = por %p178, %p179
    %p182 = scmp.ne.s32.totalorder %s167, %s181
    %p183 = scmp.eq.s32.totalorder %s31, 0
    %p184 = por %p182, %p183
    %s186 = sadd.s32 %s185, 1
    %p189 = scmp.eq.s32.totalorder %s25, 1
    %p190 = scmp.ne.s32.totalorder %s185, %s187
    %p191 = scmp.eq.s32.totalorder %s25, 0
    %p192 = por %p190, %p191
    %p193 = scmp.ne.s32.totalorder %s185, %s187
    %p194 = scmp.eq.s32.totalorder %s30, 1
    %p195 = por %p193, %p194
    %p196 = scmp.ne.s32.totalorder %s187, %s188
    %p197 = scmp.eq.s32.totalorder %s30, 0
    %p198 = por %p196, %p197
    %p199 = scmp.ne.s32.totalorder %s187, %s188
    %p200 = scmp.eq.s32.totalorder %s31, 1
    %p201 = por %p199, %p200
    %p203 = scmp.ne.s32.totalorder %s188, %s202
    %p204 = scmp.eq.s32.totalorder %s31, 0
    %p205 = por %p203, %p204
    %s207 = sadd.s32 %s206, 1
    %p210 = scmp.eq.s32.totalorder %s25, 1
    %p211 = scmp.ne.s32.totalorder %s206, %s208
    %p212 = scmp.eq.s32.totalorder %s25, 0
    %p213 = por %p211, %p212
    %p214 = scmp.ne.s32.totalorder %s206, %s208
    %p215 = scmp.eq.s32.totalorder %s30, 1
    %p216 = por %p214, %p215
    %p217 = scmp.ne.s32.totalorder %s208, %s209
    %p218 = scmp.eq.s32.totalorder %s30, 0
    %p219 = por %p217, %p218
    %p220 = scmp.ne.s32.totalorder %s208, %s209
    %p221 = scmp.eq.s32.totalorder %s31, 1
    %p222 = por %p220, %p221
    %p224 = scmp.ne.s32.totalorder %s209, %s223
    %p225 = scmp.eq.s32.totalorder %s31, 0
    %p226 = por %p224, %p225
    %s228 = sadd.s32 %s227, 1
    %p231 = scmp.eq.s32.totalorder %s25, 1
    %p232 = scmp.ne.s32.totalorder %s227, %s229
    %p233 = scmp.eq.s32.totalorder %s25, 0
    %p234 = por %p232, %p233
    %p235 = scmp.ne.s32.totalorder %s227, %s229
    %p236 = scmp.eq.s32.totalorder %s30, 1
    %p237 = por %p235, %p236
    %p238 = scmp.ne.s32.totalorder %s229, %s230
    %p239 = scmp.eq.s32.totalorder %s30, 0
    %p240 = por %p238, %p239
    %p241 = scmp.ne.s32.totalorder %s229, %s230
    %p242 = scmp.eq.s32.totalorder %s31, 1
    %p243 = por %p241, %p242
    %p245 = scmp.ne.s32.totalorder %s230, %s244
    %p246 = scmp.eq.s32.totalorder %s31, 0
    %p247 = por %p245, %p246
    %s249 = sadd.s32 %s248, 1
    %p252 = scmp.eq.s32.totalorder %s25, 1
    %p253 = scmp.ne.s32.totalorder %s248, %s250
    %p254 = scmp.eq.s32.totalorder %s25, 0
    %p255 = por %p253, %p254
    %p256 = scmp.ne.s32.totalorder %s248, %s250
    %p257 = scmp.eq.s32.totalorder %s30, 1
    %p258 = por %p256, %p257
    %p259 = scmp.ne.s32.totalorder %s250, %s251
    %p260 = scmp.eq.s32.totalorder %s30, 0
    %p261 = por %p259, %p260
    %p262 = scmp.ne.s32.totalorder %s250, %s251
    %p263 = scmp.eq.s32.totalorder %s31, 1
    %p264 = por %p262, %p263
    %p266 = scmp.ne.s32.totalorder %s251, %s265
    %p267 = scmp.eq.s32.totalorder %s31, 0
    %p268 = por %p266, %p267
    %s270 = sadd.s32 %s269, 1
    %p273 = scmp.eq.s32.totalorder %s25, 1
    %p274 = scmp.ne.s32.totalorder %s269, %s271
    %p275 = scmp.eq.s32.totalorder %s25, 0
    %p276 = por %p274, %p275
    %p277 = scmp.ne.s32.totalorder %s269, %s271
    %p278 = scmp.eq.s32.totalorder %s30, 1
    %p279 = por %p277, %p278
    %p280 = scmp.ne.s32.totalorder %s271, %s272
    %p281 = scmp.eq.s32.totalorder %s30, 0
    %p282 = por %p280, %p281
    %p283 = scmp.ne.s32.totalorder %s271, %s272
    %p284 = scmp.eq.s32.totalorder %s31, 1
    %p285 = por %p283, %p284
    %p287 = scmp.ne.s32.totalorder %s272, %s286
    %p288 = scmp.eq.s32.totalorder %s31, 0
    %p289 = por %p287, %p288
    %s291 = sadd.s32 %s290, 1
    %p294 = scmp.eq.s32.totalorder %s25, 1
    %p295 = scmp.ne.s32.totalorder %s290, %s292
    %p296 = scmp.eq.s32.totalorder %s25, 0
    %p297 = por %p295, %p296
    %p298 = scmp.ne.s32.totalorder %s290, %s292
    %p299 = scmp.eq.s32.totalorder %s30, 1
    %p300 = por %p298, %p299
    %p301 = scmp.ne.s32.totalorder %s292, %s293
    %p302 = scmp.eq.s32.totalorder %s30, 0
    %p303 = por %p301, %p302
    %p304 = scmp.ne.s32.totalorder %s292, %s293
    %p305 = scmp.eq.s32.totalorder %s31, 1
    %p306 = por %p304, %p305
    %p308 = scmp.ne.s32.totalorder %s293, %s307
    %p309 = scmp.eq.s32.totalorder %s31, 0
    %p310 = por %p308, %p309
    %s312 = sadd.s32 %s311, 1
    %p315 = scmp.eq.s32.totalorder %s25, 1
    %p316 = scmp.ne.s32.totalorder %s311, %s313
    %p317 = scmp.eq.s32.totalorder %s25, 0
    %p318 = por %p316, %p317
    %p319 = scmp.ne.s32.totalorder %s311, %s313
    %p320 = scmp.eq.s32.totalorder %s30, 1
    %p321 = por %p319, %p320
    %p322 = scmp.ne.s32.totalorder %s313, %s314
    %p323 = scmp.eq.s32.totalorder %s30, 0
    %p324 = por %p322, %p323
    %p325 = scmp.ne.s32.totalorder %s313, %s314
    %p326 = scmp.eq.s32.totalorder %s31, 1
    %p327 = por %p325, %p326
    %p329 = scmp.ne.s32.totalorder %s314, %s328
    %p330 = scmp.eq.s32.totalorder %s31, 0
    %p331 = por %p329, %p330
    %s333 = sadd.s32 %s332, 1
    %p336 = scmp.eq.s32.totalorder %s25, 1
    %p337 = scmp.ne.s32.totalorder %s332, %s334
    %p338 = scmp.eq.s32.totalorder %s25, 0
    %p339 = por %p337, %p338
    %p340 = scmp.ne.s32.totalorder %s332, %s334
    %p341 = scmp.eq.s32.totalorder %s30, 1
    %p342 = por %p340, %p341
    %p343 = scmp.ne.s32.totalorder %s334, %s335
    %p344 = scmp.eq.s32.totalorder %s30, 0
    %p345 = por %p343, %p344
    %p346 = scmp.ne.s32.totalorder %s334, %s335
    %p347 = scmp.eq.s32.totalorder %s31, 1
    %p348 = por %p346, %p347
    %p350 = scmp.ne.s32.totalorder %s335, %s349
    %p351 = scmp.eq.s32.totalorder %s31, 0
    %p352 = por %p350, %p351
    %s354 = sadd.s32 %s353, 1
    %p357 = scmp.eq.s32.totalorder %s25, 1
    %p358 = scmp.ne.s32.totalorder %s353, %s355
    %p359 = scmp.eq.s32.totalorder %s25, 0
    %p360 = por %p358, %p359
    %p361 = scmp.ne.s32.totalorder %s353, %s355
    %p362 = scmp.eq.s32.totalorder %s30, 1
    %p363 = por %p361, %p362
    %p364 = scmp.ne.s32.totalorder %s355, %s356
    %p365 = scmp.eq.s32.totalorder %s30, 0
    %p366 = por %p364, %p365
    %p367 = scmp.ne.s32.totalorder %s355, %s356
    %p368 = scmp.eq.s32.totalorder %s31, 1
    %p369 = por %p367, %p368
    %p371 = scmp.ne.s32.totalorder %s356, %s370
    %p372 = scmp.eq.s32.totalorder %s31, 0
    %p373 = por %p371, %p372
    %s375 = sadd.s32 %s374, 1
    %p378 = scmp.eq.s32.totalorder %s25, 1
    %p379 = scmp.ne.s32.totalorder %s374, %s376
    %p380 = scmp.eq.s32.totalorder %s25, 0
    %p381 = por %p379, %p380
    %p382 = scmp.ne.s32.totalorder %s374, %s376
    %p383 = scmp.eq.s32.totalorder %s30, 1
    %p384 = por %p382, %p383
    %p385 = scmp.ne.s32.totalorder %s376, %s377
    %p386 = scmp.eq.s32.totalorder %s30, 0
    %p387 = por %p385, %p386
    %p388 = scmp.ne.s32.totalorder %s376, %s377
    %p389 = scmp.eq.s32.totalorder %s31, 1
    %p390 = por %p388, %p389
    %p392 = scmp.ne.s32.totalorder %s377, %s391
    %p393 = scmp.eq.s32.totalorder %s31, 0
    %p394 = por %p392, %p393
    %s396 = sadd.s32 %s395, 1
    %p399 = scmp.eq.s32.totalorder %s25, 1
    %p400 = scmp.ne.s32.totalorder %s395, %s397
    %p401 = scmp.eq.s32.totalorder %s25, 0
    %p402 = por %p400, %p401
    %p403 = scmp.ne.s32.totalorder %s395, %s397
    %p404 = scmp.eq.s32.totalorder %s30, 1
    %p405 = por %p403, %p404
    %p406 = scmp.ne.s32.totalorder %s397, %s398
    %p407 = scmp.eq.s32.totalorder %s30, 0
    %p408 = por %p406, %p407
    %p409 = scmp.ne.s32.totalorder %s397, %s398
    %p410 = scmp.eq.s32.totalorder %s31, 1
    %p411 = por %p409, %p410
    %p413 = scmp.ne.s32.totalorder %s398, %s412
    %p414 = scmp.eq.s32.totalorder %s31, 0
    %p415 = por %p413, %p414
    %s417 = sadd.s32 %s416, 1
    %p420 = scmp.eq.s32.totalorder %s25, 1
    %p421 = scmp.ne.s32.totalorder %s416, %s418
    %p422 = scmp.eq.s32.totalorder %s25, 0
    %p423 = por %p421, %p422
    %p424 = scmp.ne.s32.totalorder %s416, %s418
    %p425 = scmp.eq.s32.totalorder %s30, 1
    %p426 = por %p424, %p425
    %p427 = scmp.ne.s32.totalorder %s418, %s419
    %p428 = scmp.eq.s32.totalorder %s30, 0
    %p429 = por %p427, %p428
    %p430 = scmp.ne.s32.totalorder %s418, %s419
    %p431 = scmp.eq.s32.totalorder %s31, 1
    %p432 = por %p430, %p431
    %p434 = scmp.ne.s32.totalorder %s419, %s433
    %p435 = scmp.eq.s32.totalorder %s31, 0
    %p436 = por %p434, %p435
    %s437 = ssub.s32 %s25, %s32
    %p438 = scmp.eq.s32.totalorder %s437, 0
    %s440 = sadd.s32 %s439, 1
    %s441 = scalar_select %p438, %s439, %s440
    %p444 = pneg %p438
    %p445 = scmp.eq.s32.totalorder %s25, 1
    %p446 = por %p444, %p445
    %p447 = scmp.ne.s32.totalorder %s439, %s442
    %p448 = scmp.eq.s32.totalorder %s25, 0
    %p449 = por %p447, %p448
    %p450 = scmp.ne.s32.totalorder %s439, %s442
    %p451 = scmp.eq.s32.totalorder %s30, 1
    %p452 = por %p450, %p451
    %p453 = scmp.ne.s32.totalorder %s442, %s443
    %p454 = scmp.eq.s32.totalorder %s30, 0
    %p455 = por %p453, %p454
    %p456 = scmp.ne.s32.totalorder %s442, %s443
    %p457 = scmp.eq.s32.totalorder %s31, 1
    %p458 = por %p456, %p457
    %p460 = scmp.ne.s32.totalorder %s443, %s459
    %p461 = scmp.eq.s32.totalorder %s31, 0
    %p462 = por %p460, %p461
    %p463 = scmp.le.s32.totalorder 1, %s25
    %p464 = scmp.lt.s32.totalorder %s25, 3
    %p465 = pnand %p463, %p464
    %p466 = pneg %p465
    // Predicated region
    $region9: #{segmenter_forward.1} parent=5 // pred_check
      _
    $region10: #{segmenter_forward.1} parent=5 // pred_check_branch
      %468 = sbr.rel (%p465) target = $region12
    $region11: #{segmenter_forward.1} parent=5 // pred_region
      %s469 = ssub.s32 %s25, 1
      // Predicated region
      $region13: #{segmenter_forward.1} parent=11 // pred_check
        %p470 = pneg %p72
      $region14: #{segmenter_forward.1} parent=11 // pred_check_branch
        %472 = sbr.rel (%p470) target = $region16
      $region15: #{segmenter_forward.1} parent=11 // pred_region
        _
      $region16: #{segmenter_forward.1} parent=11 // pred_fallthru
        _
      // Predicated region
      $region17: #{segmenter_forward.1} parent=11 // pred_check
        %p473 = pneg %p93
      $region18: #{segmenter_forward.1} parent=11 // pred_check_branch
        %475 = sbr.rel (%p473) target = $region20
      $region19: #{segmenter_forward.1} parent=11 // pred_region
        _
      $region20: #{segmenter_forward.1} parent=11 // pred_fallthru
        _
      // Predicated region
      $region21: #{segmenter_forward.1} parent=11 // pred_check
        %p476 = pneg %p114
      $region22: #{segmenter_forward.1} parent=11 // pred_check_branch
        %478 = sbr.rel (%p476) target = $region24
      $region23: #{segmenter_forward.1} parent=11 // pred_region
        _
      $region24: #{segmenter_forward.1} parent=11 // pred_fallthru
        _
      // Predicated region
      $region25: #{segmenter_forward.1} parent=11 // pred_check
        %p479 = pneg %p135
      $region26: #{segmenter_forward.1} parent=11 // pred_check_branch
        %481 = sbr.rel (%p479) target = $region28
      $region27: #{segmenter_forward.1} parent=11 // pred_region
        _
      $region28: #{segmenter_forward.1} parent=11 // pred_fallthru
        _
      // Predicated region
      $region29: #{segmenter_forward.1} parent=11 // pred_check
        %p482 = pneg %p156
      $region30: #{segmenter_forward.1} parent=11 // pred_check_branch
        %484 = sbr.rel (%p482) target = $region32
      $region31: #{segmenter_forward.1} parent=11 // pred_region
        _
      $region32: #{segmenter_forward.1} parent=11 // pred_fallthru
        _
      // Predicated region
      $region33: #{segmenter_forward.1} parent=11 // pred_check
        %p485 = pneg %p177
      $region34: #{segmenter_forward.1} parent=11 // pred_check_branch
        %487 = sbr.rel (%p485) target = $region36
      $region35: #{segmenter_forward.1} parent=11 // pred_region
        _
      $region36: #{segmenter_forward.1} parent=11 // pred_fallthru
        _
      // Predicated region
      $region37: #{segmenter_forward.1} parent=11 // pred_check
        %p488 = pneg %p198
      $region38: #{segmenter_forward.1} parent=11 // pred_check_branch
        %490 = sbr.rel (%p488) target = $region40
      $region39: #{segmenter_forward.1} parent=11 // pred_region
        _
      $region40: #{segmenter_forward.1} parent=11 // pred_fallthru
        _
      // Predicated region
      $region41: #{segmenter_forward.1} parent=11 // pred_check
        %p491 = pneg %p219
      $region42: #{segmenter_forward.1} parent=11 // pred_check_branch
        %493 = sbr.rel (%p491) target = $region44
      $region43: #{segmenter_forward.1} parent=11 // pred_region
        _
      $region44: #{segmenter_forward.1} parent=11 // pred_fallthru
        _
      // Predicated region
      $region45: #{segmenter_forward.1} parent=11 // pred_check
        %p494 = pneg %p240
      $region46: #{segmenter_forward.1} parent=11 // pred_check_branch
        %496 = sbr.rel (%p494) target = $region48
      $region47: #{segmenter_forward.1} parent=11 // pred_region
        _
      $region48: #{segmenter_forward.1} parent=11 // pred_fallthru
        _
      // Predicated region
      $region49: #{segmenter_forward.1} parent=11 // pred_check
        %p497 = pneg %p261
      $region50: #{segmenter_forward.1} parent=11 // pred_check_branch
        %499 = sbr.rel (%p497) target = $region52
      $region51: #{segmenter_forward.1} parent=11 // pred_region
        _
      $region52: #{segmenter_forward.1} parent=11 // pred_fallthru
        _
      // Predicated region
      $region53: #{segmenter_forward.1} parent=11 // pred_check
        %p500 = pneg %p282
      $region54: #{segmenter_forward.1} parent=11 // pred_check_branch
        %502 = sbr.rel (%p500) target = $region56
      $region55: #{segmenter_forward.1} parent=11 // pred_region
        _
      $region56: #{segmenter_forward.1} parent=11 // pred_fallthru
        _
      // Predicated region
      $region57: #{segmenter_forward.1} parent=11 // pred_check
        %p503 = pneg %p303
      $region58: #{segmenter_forward.1} parent=11 // pred_check_branch
        %505 = sbr.rel (%p503) target = $region60
      $region59: #{segmenter_forward.1} parent=11 // pred_region
        _
      $region60: #{segmenter_forward.1} parent=11 // pred_fallthru
        _
      // Predicated region
      $region61: #{segmenter_forward.1} parent=11 // pred_check
        %p506 = pneg %p324
      $region62: #{segmenter_forward.1} parent=11 // pred_check_branch
        %508 = sbr.rel (%p506) target = $region64
      $region63: #{segmenter_forward.1} parent=11 // pred_region
        _
      $region64: #{segmenter_forward.1} parent=11 // pred_fallthru
        _
      // Predicated region
      $region65: #{segmenter_forward.1} parent=11 // pred_check
        %p509 = pneg %p345
      $region66: #{segmenter_forward.1} parent=11 // pred_check_branch
        %511 = sbr.rel (%p509) target = $region68
      $region67: #{segmenter_forward.1} parent=11 // pred_region
        _
      $region68: #{segmenter_forward.1} parent=11 // pred_fallthru
        _
      // Predicated region
      $region69: #{segmenter_forward.1} parent=11 // pred_check
        %p512 = pneg %p366
      $region70: #{segmenter_forward.1} parent=11 // pred_check_branch
        %514 = sbr.rel (%p512) target = $region72
      $region71: #{segmenter_forward.1} parent=11 // pred_region
        _
      $region72: #{segmenter_forward.1} parent=11 // pred_fallthru
        _
      // Predicated region
      $region73: #{segmenter_forward.1} parent=11 // pred_check
        %p515 = pneg %p387
      $region74: #{segmenter_forward.1} parent=11 // pred_check_branch
        %517 = sbr.rel (%p515) target = $region76
      $region75: #{segmenter_forward.1} parent=11 // pred_region
        _
      $region76: #{segmenter_forward.1} parent=11 // pred_fallthru
        _
      // Predicated region
      $region77: #{segmenter_forward.1} parent=11 // pred_check
        %p518 = pneg %p408
      $region78: #{segmenter_forward.1} parent=11 // pred_check_branch
        %520 = sbr.rel (%p518) target = $region80
      $region79: #{segmenter_forward.1} parent=11 // pred_region
        _
      $region80: #{segmenter_forward.1} parent=11 // pred_fallthru
        _
      // Predicated region
      $region81: #{segmenter_forward.1} parent=11 // pred_check
        %p521 = pneg %p429
      $region82: #{segmenter_forward.1} parent=11 // pred_check_branch
        %523 = sbr.rel (%p521) target = $region84
      $region83: #{segmenter_forward.1} parent=11 // pred_region
        _
      $region84: #{segmenter_forward.1} parent=11 // pred_fallthru
        _
    $region12: #{segmenter_forward.1} parent=5 // pred_fallthru
      _
    %p524 = scmp.lt.s32.totalorder %s25, 2
    // Predicated region
    $region85: #{segmenter_forward.1} parent=5 // pred_check
      %p525 = pneg %p524
    $region86: #{segmenter_forward.1} parent=5 // pred_check_branch
      %527 = sbr.rel (%p525) target = $region88
    $region87: #{segmenter_forward.1} parent=5 // pred_region
      // Predicated region
      $region89: #{segmenter_forward.1} parent=87 // pred_check
        %p528 = pneg %p45
      $region90: #{segmenter_forward.1} parent=87 // pred_check_branch
        %530 = sbr.rel (%p528) target = $region92
      $region91: #{segmenter_forward.1} parent=87 // pred_region
        %p531 = scmp.lt.s32.totalorder %s25, 1
        %s532 = scalar_select %p531, %s25, 1
        %s533 = smul.addr %s532, 2
        %s534 = smul.addr %s533, 8
        %s535 = scalar_lea.vmem %s0, %s534
      $region92: #{segmenter_forward.1} parent=87 // pred_fallthru
        _
    $region88: #{segmenter_forward.1} parent=5 // pred_fallthru
      _
    %p536 = scmp.le.s32.totalorder 1, %s25
    %p537 = scmp.lt.s32.totalorder %s25, 3
    %p538 = pnand %p536, %p537
    %p539 = pneg %p538
    // Predicated region
    $region93: #{segmenter_forward.1} parent=5 // pred_check
      _
    $region94: #{segmenter_forward.1} parent=5 // pred_check_branch
      %541 = sbr.rel (%p538) target = $region96
    $region95: #{segmenter_forward.1} parent=5 // pred_region
      %s542 = ssub.s32 %s25, 1
      %p543 = scmp.lt.s32.totalorder %s30, 1
      %s544 = scalar_select %p543, %s30, 1
      %s545 = smul.addr %s544, 2
      %s546 = smul.addr %s545, 8
      %s547 = scalar_lea.vmem %s0, %s546
      %p548 = pneg %p51
      %p549 = pneg %p48
      %p550 = pneg %p72
      %p551 = pneg %p69
      %p552 = pneg %p93
      %p553 = pneg %p90
      %p554 = pneg %p114
      %p555 = pneg %p111
      %p556 = pneg %p135
      %p557 = pneg %p132
      %p558 = pneg %p156
      %p559 = pneg %p153
      %p560 = pneg %p177
      %p561 = pneg %p174
      %p562 = pneg %p198
      %p563 = pneg %p195
      %p564 = pneg %p219
      %p565 = pneg %p216
      %p566 = pneg %p240
      %p567 = pneg %p237
      %p568 = pneg %p261
      %p569 = pneg %p258
      %p570 = pneg %p282
      %p571 = pneg %p279
      %p572 = pneg %p303
      %p573 = pneg %p300
      %p574 = pneg %p324
      %p575 = pneg %p321
      %p576 = pneg %p345
      %p577 = pneg %p342
      %p578 = pneg %p366
      %p579 = pneg %p363
      %p580 = pneg %p387
      %p581 = pneg %p384
      %p582 = pneg %p408
      %p583 = pneg %p405
      %p584 = pneg %p429
      %p585 = pneg %p426
      %p586 = pneg %p455
      %p587 = pneg %p452
      %p588 = scmp.lt.s32.totalorder %s30, 1
      %s589 = scalar_select %p588, %s30, 1
      %s590 = smul.addr %s589, 4
      %s591 = scalar_lea.vmem %s19, %s590
      %p592 = scmp.lt.s32.totalorder %s30, 1
      %s593 = scalar_select %p592, %s30, 1
      %s594 = smul.addr %s593, 2
      %s595 = smul.addr %s594, 8
      %s596 = scalar_lea.vmem %s0, %s595
      %p597 = scmp.lt.s32.totalorder %s30, 1
      %s598 = scalar_select %p597, %s30, 1
      %s599 = smul.addr %s598, 4
      %s600 = scalar_lea.vmem %s19, %s599
      %v602 = vld [vmem:[%s596] sm:$0x1f]
      %v603 = vld [vmem:[%s596 + $0x8] sm:$0x1f]
      %v604 = vpack.c.bf16 %v602, %v602
      %v605 = vpack.c.bf16 %v603, %v603
      %v606 = vld [vmem:[%s1] sm:$0xf]
      %v607 = vld [vmem:[%s1 + $0x4] sm:$0xf]
      %v608 = vld [vmem:[%s1 + $0x8] sm:$0xf]
      %v609 = vld [vmem:[%s1 + $0xc] sm:$0xf]
      %v610 = vld [vmem:[%s1 + $0x10] sm:$0xf]
      %v611 = vld [vmem:[%s1 + $0x14] sm:$0xf]
      %v612 = vld [vmem:[%s1 + $0x18] sm:$0xf]
      %v613 = vld [vmem:[%s1 + $0x1c] sm:$0xf]
      %v614 = vld [vmem:[%s1 + $0x20] sm:$0xf]
      %v615 = vld [vmem:[%s1 + $0x24] sm:$0xf]
      %v616 = vld [vmem:[%s1 + $0x28] sm:$0xf]
      %v617 = vld [vmem:[%s1 + $0x2c] sm:$0xf]
      %v618 = vld [vmem:[%s1 + $0x30] sm:$0xf]
      %v619 = vld [vmem:[%s1 + $0x34] sm:$0xf]
      %v620 = vld [vmem:[%s1 + $0x38] sm:$0xf]
      %v621 = vld [vmem:[%s1 + $0x3c] sm:$0xf]
      %v622 = vld [vmem:[%s1 + $0x40] sm:$0xf]
      %v623 = vld [vmem:[%s1 + $0x44] sm:$0xf]
      %v624 = vld [vmem:[%s1 + $0x48] sm:$0xf]
      %v625 = vld [vmem:[%s1 + $0x4c] sm:$0xf]
      %v626 = vld [vmem:[%s1 + $0x50] sm:$0xf]
      %v627 = vld [vmem:[%s1 + $0x54] sm:$0xf]
      %v628 = vld [vmem:[%s1 + $0x58] sm:$0xf]
      %v629 = vld [vmem:[%s1 + $0x5c] sm:$0xf]
      %v630 = vld [vmem:[%s2] sm:$0x1f]
      %v655 = vunpack.c.l.b16 %v606
      %v656 = vunpack.c.l.b16 %v607
      %v657 = vunpack.c.l.b16 %v608
      %v658 = vunpack.c.l.b16 %v609
      %v659 = vunpack.c.l.b16 %v610
      %v660 = vunpack.c.l.b16 %v611
      %v661 = vunpack.c.l.b16 %v612
      %v662 = vunpack.c.l.b16 %v613
      %v663 = vunpack.c.l.b16 %v614
      %v664 = vunpack.c.l.b16 %v615
      %v665 = vunpack.c.l.b16 %v616
      %v666 = vunpack.c.l.b16 %v617
      %v667 = vunpack.c.l.b16 %v618
      %v668 = vunpack.c.l.b16 %v619
      %v669 = vunpack.c.l.b16 %v620
      %v670 = vunpack.c.l.b16 %v621
      %v671 = vunpack.c.l.b16 %v622
      %v672 = vunpack.c.l.b16 %v623
      %v673 = vunpack.c.l.b16 %v624
      %v674 = vunpack.c.l.b16 %v625
      %v675 = vunpack.c.l.b16 %v626
      %v676 = vunpack.c.l.b16 %v627
      %v677 = vunpack.c.l.b16 %v628
      %v678 = vunpack.c.l.b16 %v629
      %v679 = vpack.c.b16 %v656, %v655
      %v680 = vpack.c.b16 %v658, %v657
      %v681 = vpack.c.b16 %v660, %v659
      %v682 = vpack.c.b16 %v662, %v661
      %v683 = vpack.c.b16 %v664, %v663
      %v684 = vpack.c.b16 %v666, %v665
      %v685 = vpack.c.b16 %v668, %v667
      %v686 = vpack.c.b16 %v670, %v669
      %v687 = vpack.c.b16 %v672, %v671
      %v688 = vpack.c.b16 %v674, %v673
      %v689 = vpack.c.b16 %v676, %v675
      %v690 = vpack.c.b16 %v678, %v677
      %vm703 = vcmask 523264
      %v705 = vsel %vm703, %v605, 0
      %707 = vmatprep.subr.bf16.mxu0 0
      %708 = vmatpush1.bf16.msra.mxu0 %v679
      %709 = vmatprep.subr.bf16.mxu0 0
      %710 = vmatpush1.bf16.msra.mxu0 %v680
      %711 = vmatprep.subr.bf16.mxu0 0
      %712 = vmatpush1.bf16.msra.mxu0 %v681
      %713 = vmatprep.subr.bf16.mxu0 0
      %714 = vmatpush1.bf16.msra.mxu0 %v682
      %715 = vmatprep.subr.bf16.mxu0 0
      %716 = vmatpush1.bf16.msra.mxu0 %v683
      %717 = vmatprep.subr.bf16.mxu0 0
      %718 = vmatpush1.bf16.msra.mxu0 %v684
      %719 = vmatprep.subr.bf16.mxu0 0
      %720 = vmatpush1.bf16.msra.mxu0 %v685
      %721 = vmatprep.subr.bf16.mxu0 0
      %722 = vmatpush1.bf16.msra.mxu0 %v686
      %723 = vmatprep.subr.bf16.mxu0 0
      %724 = vmatpush1.bf16.msra.mxu0 %v687
      %725 = vmatprep.subr.bf16.mxu0 0
      %726 = vmatpush1.bf16.msra.mxu0 %v688
      %727 = vmatprep.subr.bf16.mxu0 0
      %728 = vmatpush1.bf16.msra.mxu0 %v689
      %729 = vmatprep.subr.bf16.mxu0 0
      %730 = vmatpush1.bf16.msra.mxu0 %v690
      %731 = vmatprep.subr.bf16.mxu0 0
      %732 = vmatpush1.bf16.msra.mxu0 0
      %733 = vmatprep.subr.bf16.mxu0 0
      %734 = vmatpush1.bf16.msra.mxu0 0
      %735 = vmatprep.subr.bf16.mxu0 0
      %736 = vmatpush1.bf16.msra.mxu0 0
      %737 = vmatprep.subr.bf16.mxu0 0
      %738 = vmatpush1.bf16.msra.mxu0 0
      %739 = vmatprep.mubr.bf16.mxu0 %v705
      %740 = vmatmul.mubr.bf16.gmra.mrb[0].mxu0 %v604
      %v741 = vpop.f32.mrb[0].mxu0
      %v742 = vadd.f32 %v630, %v741
      %v743 = vpop.f32.mrb[0].mxu0
      %v744 = vpop.f32.mrb[0].mxu0
      %v745 = vpop.f32.mrb[0].mxu0
      %746 = vdwg.mxu0
      %v747 = vld [vmem:[%s3] sm:$0x1]
      %v748 = vld [vmem:[%s4] sm:$0x1]
      %vm749 = vcmask 258048
      %v750 = vsel %vm749, %v742, 0.0
      %751 = vadd.xlane.f32.xlu0 %v750
      %v752 = vpop.xlane.xlu0 %751
      %v753 = vrcp.pop 32.0
      %v754 = vmul.f32 %v752, %v753
      %v755 = vmul.f32 %v742, %v742
      %v756 = vsel %vm749, %v755, 0.0
      %757 = vadd.xlane.f32.xlu0 %v756
      %v758 = vpop.xlane.xlu0 %757
      %v759 = vmul.f32 %v758, %v753
      %v760 = vmul.f32 %v754, %v754
      %v761 = vsub.f32 %v759, %v760
      %v762 = vadd.f32 %v761, 1e-06
      %v763 = vrsqrt.pop %v762
      %v764 = vsub.f32 %v742, %v754
      %v765 = vmul.f32 %v764, %v763
      %v767 = vlaneseq
      %v768 = vshrl.u32 %v767, 7
      %v769 = vsub.s32 0, %v768
      %v770 = vrot.slane %v747, %v769
      %v772 = vmul.f32 %v765, %v770
      %v774 = vlaneseq
      %v775 = vshrl.u32 %v774, 7
      %v776 = vsub.s32 0, %v775
      %v777 = vrot.slane %v748, %v776
      %v779 = vadd.f32 %v772, %v777
      %v780 = vpack.c.bf16 %v779, %v779
      %v781 = vld [vmem:[%s5] sm:$0xf]
      %v782 = vld [vmem:[%s5 + $0x4] sm:$0xf]
      %v783 = vld [vmem:[%s5 + $0x8] sm:$0xf]
      %v784 = vld [vmem:[%s5 + $0xc] sm:$0xf]
      %v785 = vld [vmem:[%s6] sm:$0x1]
      %v787 = vlaneseq
      %v788 = vshrl.u32 %v787, 7
      %v789 = vsub.s32 0, %v788
      %v790 = vrot.slane %v785, %v789
      %v796 = vunpack.c.l.b16 %v781
      %v797 = vunpack.c.l.b16 %v782
      %v798 = vunpack.c.l.b16 %v783
      %v799 = vunpack.c.l.b16 %v784
      %v800 = vpack.c.b16 %v797, %v796
      %v801 = vpack.c.b16 %v799, %v798
      %vm804 = vcmask 261120
      %v806 = vsel %vm804, %v780, 0
      %808 = vmatprep.subr.bf16.mxu0 0
      %809 = vmatpush1.bf16.msra.mxu0 %v800
      %810 = vmatprep.subr.bf16.mxu0 0
      %811 = vmatpush1.bf16.msra.mxu0 %v801
      %812 = vmatprep.subr.bf16.mxu0 0
      %813 = vmatpush1.bf16.msra.mxu0 0
      %814 = vmatprep.subr.bf16.mxu0 0
      %815 = vmatpush1.bf16.msra.mxu0 0
      %816 = vmatprep.subr.bf16.mxu0 0
      %817 = vmatpush1.bf16.msra.mxu0 0
      %818 = vmatprep.subr.bf16.mxu0 0
      %819 = vmatpush1.bf16.msra.mxu0 0
      %820 = vmatprep.subr.bf16.mxu0 0
      %821 = vmatpush1.bf16.msra.mxu0 0
      %822 = vmatprep.subr.bf16.mxu0 0
      %823 = vmatpush1.bf16.msra.mxu0 0
      %824 = vmatprep.subr.bf16.mxu0 0
      %825 = vmatpush1.bf16.msra.mxu0 0
      %826 = vmatprep.subr.bf16.mxu0 0
      %827 = vmatpush1.bf16.msra.mxu0 0
      %828 = vmatprep.subr.bf16.mxu0 0
      %829 = vmatpush1.bf16.msra.mxu0 0
      %830 = vmatprep.subr.bf16.mxu0 0
      %831 = vmatpush1.bf16.msra.mxu0 0
      %832 = vmatprep.subr.bf16.mxu0 0
      %833 = vmatpush1.bf16.msra.mxu0 0
      %834 = vmatprep.subr.bf16.mxu0 0
      %835 = vmatpush1.bf16.msra.mxu0 0
      %836 = vmatprep.subr.bf16.mxu0 0
      %837 = vmatpush1.bf16.msra.mxu0 0
      %838 = vmatprep.subr.bf16.mxu0 0
      %839 = vmatpush1.bf16.msra.mxu0 0
      %840 = vmatprep.mubr.bf16.mxu0 0
      %841 = vmatmul.mubr.bf16.gmra.mrb[0].mxu0 %v806
      %v842 = vpop.f32.mrb[0].mxu0
      %v843 = vadd.f32 %v790, %v842
      %v844 = vpop.f32.mrb[0].mxu0
      %v845 = vpop.f32.mrb[0].mxu0
      %v846 = vpop.f32.mrb[0].mxu0
      %847 = vdwg.mxu0
      %v848 = vld [vmem:[%s7] sm:$0xf]
      %v849 = vld [vmem:[%s7 + $0x4] sm:$0xf]
      %v850 = vld [vmem:[%s7 + $0x8] sm:$0xf]
      %v851 = vld [vmem:[%s7 + $0xc] sm:$0xf]
      %v852 = vmul.f32 %v843, 0.25
      %v853 = vpack.c.bf16 %v852, %v852
      %v854 = vpack.c.bf16 %v843, %v843
      %856 = vrot.lane.b32.xlu0 %v854, 96
      %v857 = vpop.permute.xlu0 %856
      %vm858 = vcmask 130048
      %v860 = vsel %vm858, %v853, 0
      %v863 = vsel %vm858, %v857, 0
      %865 = vmatprep.subr.bf16.mxu0 0
      %866 = vmatpush1.bf16.xpose.msra.mxu0 %v863
      %867 = vmatprep.subr.bf16.mxu0 0
      %868 = vmatpush1.bf16.xpose.msra.mxu0 0
      %869 = vmatprep.subr.bf16.mxu0 0
      %870 = vmatpush1.bf16.xpose.msra.mxu0 0
      %871 = vmatprep.subr.bf16.mxu0 0
      %872 = vmatpush1.bf16.xpose.msra.mxu0 0
      %873 = vmatprep.subr.bf16.mxu0 0
      %874 = vmatpush1.bf16.xpose.msra.mxu0 0
      %875 = vmatprep.subr.bf16.mxu0 0
      %876 = vmatpush1.bf16.xpose.msra.mxu0 0
      %877 = vmatprep.subr.bf16.mxu0 0
      %878 = vmatpush1.bf16.xpose.msra.mxu0 0
      %879 = vmatprep.subr.bf16.mxu0 0
      %880 = vmatpush1.bf16.xpose.msra.mxu0 0
      %881 = vmatprep.subr.bf16.mxu0 0
      %882 = vmatpush1.bf16.xpose.msra.mxu0 0
      %883 = vmatprep.subr.bf16.mxu0 0
      %884 = vmatpush1.bf16.xpose.msra.mxu0 0
      %885 = vmatprep.subr.bf16.mxu0 0
      %886 = vmatpush1.bf16.xpose.msra.mxu0 0
      %887 = vmatprep.subr.bf16.mxu0 0
      %888 = vmatpush1.bf16.xpose.msra.mxu0 0
      %889 = vmatprep.subr.bf16.mxu0 0
      %890 = vmatpush1.bf16.xpose.msra.mxu0 0
      %891 = vmatprep.subr.bf16.mxu0 0
      %892 = vmatpush1.bf16.xpose.msra.mxu0 0
      %893 = vmatprep.subr.bf16.mxu0 0
      %894 = vmatpush1.bf16.xpose.msra.mxu0 0
      %895 = vmatprep.subr.bf16.mxu0 0
      %896 = vmatpush1.bf16.xpose.msra.mxu0 0
      %897 = vmatprep.mubr.bf16.mxu0 0
      %898 = vmatmul.mubr.bf16.gmra.mrb[0].mxu0 %v860
      %v899 = vpop.f32.mrb[0].mxu0
      %v900 = vadd.f32 0.0, %v899
      %v901 = vpop.f32.mrb[0].mxu0
      %v902 = vpop.f32.mrb[0].mxu0
      %v903 = vpop.f32.mrb[0].mxu0
      %904 = vdwg.mxu0
      %vm905 = vcmask 36864
      %v906 = vsel %vm905, %v900, -inf
      %907 = vmax.xlane.f32.xlu0 %v906
      %v908 = vpop.xlane.xlu0 %907
      %v909 = vsub.f32 %v900, %v908
      %v910 = vmul.f32 %v909, 1.442695
      %v911 = vpow.pop %v910
      %v912 = vsel %vm905, %v911, 0.0
      %913 = vadd.xlane.f32.xlu0 %v912
      %v914 = vpop.xlane.xlu0 %913
      %v915 = vrcp.pop %v914
      %v916 = vmul.f32 %v911, %v915
      %v917 = vpack.c.bf16 %v916, %v916
      %918 = vrot.lane.b32.xlu0 %v854, 64
      %v919 = vpop.permute.xlu0 %918
      %vm920 = vcmask 39936
      %v922 = vsel %vm920, %v917, 0
      %vm924 = vcmask 1041408
      %vm925 = vcmask 1042432
      %v926 = vsel %vm924, 4294967295, 65535
      %v927 = vsel %vm925, %v926, 0
      %v929 = vand.u32 %v919, %v927
      %931 = vmatprep.subr.bf16.mxu0 0
      %932 = vmatpush1.bf16.msra.mxu0 %v929
      %933 = vmatprep.subr.bf16.mxu0 0
      %934 = vmatpush1.bf16.msra.mxu0 0
      %935 = vmatprep.subr.bf16.mxu0 0
      %936 = vmatpush1.bf16.msra.mxu0 0
      %937 = vmatprep.subr.bf16.mxu0 0
      %938 = vmatpush1.bf16.msra.mxu0 0
      %939 = vmatprep.subr.bf16.mxu0 0
      %940 = vmatpush1.bf16.msra.mxu0 0
      %941 = vmatprep.subr.bf16.mxu0 0
      %942 = vmatpush1.bf16.msra.mxu0 0
      %943 = vmatprep.subr.bf16.mxu0 0
      %944 = vmatpush1.bf16.msra.mxu0 0
      %945 = vmatprep.subr.bf16.mxu0 0
      %946 = vmatpush1.bf16.msra.mxu0 0
      %947 = vmatprep.subr.bf16.mxu0 0
      %948 = vmatpush1.bf16.msra.mxu0 0
      %949 = vmatprep.subr.bf16.mxu0 0
      %950 = vmatpush1.bf16.msra.mxu0 0
      %951 = vmatprep.subr.bf16.mxu0 0
      %952 = vmatpush1.bf16.msra.mxu0 0
      %953 = vmatprep.subr.bf16.mxu0 0
      %954 = vmatpush1.bf16.msra.mxu0 0
      %955 = vmatprep.subr.bf16.mxu0 0
      %956 = vmatpush1.bf16.msra.mxu0 0
      %957 = vmatprep.subr.bf16.mxu0 0
      %958 = vmatpush1.bf16.msra.mxu0 0
      %959 = vmatprep.subr.bf16.mxu0 0
      %960 = vmatpush1.bf16.msra.mxu0 0
      %961 = vmatprep.subr.bf16.mxu0 0
      %962 = vmatpush1.bf16.msra.mxu0 0
      %963 = vmatprep.mubr.bf16.mxu0 0
      %964 = vmatmul.mubr.bf16.gmra.mrb[0].mxu0 %v922
      %v965 = vpop.f32.mrb[0].mxu0
      %v966 = vadd.f32 0.0, %v965
      %v967 = vpop.f32.mrb[0].mxu0
      %v968 = vpop.f32.mrb[0].mxu0
      %v969 = vpop.f32.mrb[0].mxu0
      %970 = vdwg.mxu0
      %v971 = vpack.c.bf16 %v966, %v966
      %973 = vrot.lane.b32.xlu0 %v853, 112
      %v974 = vpop.permute.xlu0 %973
      %975 = vrot.lane.b32.xlu0 %v854, 80
      %v976 = vpop.permute.xlu0 %975
      %v978 = vsel %vm858, %v974, 0
      %v981 = vsel %vm858, %v976, 0
      %983 = vmatprep.subr.bf16.mxu0 0
      %984 = vmatpush1.bf16.xpose.msra.mxu0 %v981
      %985 = vmatprep.subr.bf16.mxu0 0
      %986 = vmatpush1.bf16.xpose.msra.mxu0 0
      %987 = vmatprep.subr.bf16.mxu0 0
      %988 = vmatpush1.bf16.xpose.msra.mxu0 0
      %989 = vmatprep.subr.bf16.mxu0 0
      %990 = vmatpush1.bf16.xpose.msra.mxu0 0
      %991 = vmatprep.subr.bf16.mxu0 0
      %992 = vmatpush1.bf16.xpose.msra.mxu0 0
      %993 = vmatprep.subr.bf16.mxu0 0
      %994 = vmatpush1.bf16.xpose.msra.mxu0 0
      %995 = vmatprep.subr.bf16.mxu0 0
      %996 = vmatpush1.bf16.xpose.msra.mxu0 0
      %997 = vmatprep.subr.bf16.mxu0 0
      %998 = vmatpush1.bf16.xpose.msra.mxu0 0
      %999 = vmatprep.subr.bf16.mxu0 0
      %1000 = vmatpush1.bf16.xpose.msra.mxu0 0
      %1001 = vmatprep.subr.bf16.mxu0 0
      %1002 = vmatpush1.bf16.xpose.msra.mxu0 0
      %1003 = vmatprep.subr.bf16.mxu0 0
      %1004 = vmatpush1.bf16.xpose.msra.mxu0 0
      %1005 = vmatprep.subr.bf16.mxu0 0
      %1006 = vmatpush1.bf16.xpose.msra.mxu0 0
      %1007 = vmatprep.subr.bf16.mxu0 0
      %1008 = vmatpush1.bf16.xpose.msra.mxu0 0
      %1009 = vmatprep.subr.bf16.mxu0 0
      %1010 = vmatpush1.bf16.xpose.msra.mxu0 0
      %1011 = vmatprep.subr.bf16.mxu0 0
      %1012 = vmatpush1.bf16.xpose.msra.mxu0 0
      %1013 = vmatprep.subr.bf16.mxu0 0
      %1014 = vmatpush1.bf16.xpose.msra.mxu0 0
      %1015 = vmatprep.mubr.bf16.mxu0 0
      %1016 = vmatmul.mubr.bf16.gmra.mrb[0].mxu0 %v978
      %v1017 = vpop.f32.mrb[0].mxu0
      %v1018 = vadd.f32 0.0, %v1017
      %v1019 = vpop.f32.mrb[0].mxu0
      %v1020 = vpop.f32.mrb[0].mxu0
      %v1021 = vpop.f32.mrb[0].mxu0
      %1022 = vdwg.mxu0
      %v1023 = vsel %vm905, %v1018, -inf
      %1024 = vmax.xlane.f32.xlu0 %v1023
      %v1025 = vpop.xlane.xlu0 %1024
      %v1026 = vsub.f32 %v1018, %v1025
      %v1027 = vmul.f32 %v1026, 1.442695
      %v1028 = vpow.pop %v1027
      %v1029 = vsel %vm905, %v1028, 0.0
      %1030 = vadd.xlane.f32.xlu0 %v1029
      %v1031 = vpop.xlane.xlu0 %1030
      %v1032 = vrcp.pop %v1031
      %v1033 = vmul.f32 %v1028, %v1032
      %v1034 = vpack.c.bf16 %v1033, %v1033
      %1035 = vrot.lane.b32.xlu0 %v854, 48
      %v1036 = vpop.permute.xlu0 %1035
      %v1038 = vsel %vm920, %v1034, 0
      %v1041 = vand.u32 %v1036, %v927
      %1043 = vmatprep.subr.bf16.mxu0 0
      %1044 = vmatpush1.bf16.msra.mxu0 %v1041
      %1045 = vmatprep.subr.bf16.mxu0 0
      %1046 = vmatpush1.bf16.msra.mxu0 0
      %1047 = vmatprep.subr.bf16.mxu0 0
      %1048 = vmatpush1.bf16.msra.mxu0 0
      %1049 = vmatprep.subr.bf16.mxu0 0
      %1050 = vmatpush1.bf16.msra.mxu0 0
      %1051 = vmatprep.subr.bf16.mxu0 0
      %1052 = vmatpush1.bf16.msra.mxu0 0
      %1053 = vmatprep.subr.bf16.mxu0 0
      %1054 = vmatpush1.bf16.msra.mxu0 0
      %1055 = vmatprep.subr.bf16.mxu0 0
      %1056 = vmatpush1.bf16.msra.mxu0 0
      %1057 = vmatprep.subr.bf16.mxu0 0
      %1058 = vmatpush1.bf16.msra.mxu0 0
      %1059 = vmatprep.subr.bf16.mxu0 0
      %1060 = vmatpush1.bf16.msra.mxu0 0
      %1061 = vmatprep.subr.bf16.mxu0 0
      %1062 = vmatpush1.bf16.msra.mxu0 0
      %1063 = vmatprep.subr.bf16.mxu0 0
      %1064 = vmatpush1.bf16.msra.mxu0 0
      %1065 = vmatprep.subr.bf16.mxu0 0
      %1066 = vmatpush1.bf16.msra.mxu0 0
      %1067 = vmatprep.subr.bf16.mxu0 0
      %1068 = vmatpush1.bf16.msra.mxu0 0
      %1069 = vmatprep.subr.bf16.mxu0 0
      %1070 = vmatpush1.bf16.msra.mxu0 0
      %1071 = vmatprep.subr.bf16.mxu0 0
      %1072 = vmatpush1.bf16.msra.mxu0 0
      %1073 = vmatprep.subr.bf16.mxu0 0
      %1074 = vmatpush1.bf16.msra.mxu0 0
      %1075 = vmatprep.mubr.bf16.mxu0 0
      %1076 = vmatmul.mubr.bf16.gmra.mrb[0].mxu0 %v1038
      %v1077 = vpop.f32.mrb[0].mxu0
      %v1078 = vadd.f32 0.0, %v1077
      %v1079 = vpop.f32.mrb[0].mxu0
      %v1080 = vpop.f32.mrb[0].mxu0
      %v1081 = vpop.f32.mrb[0].mxu0
      %1082 = vdwg.mxu0
      %v1083 = vpack.c.bf16 %v1078, %v1078
      %v1086 = vunpack.c.l.b16 %v850
      %v1087 = vunpack.c.l.b16 %v851
      %v1088 = vpack.c.b16 %v1087, %v1086
      %v1091 = vsel %vm858, %v1083, 0
      %1093 = vmatprep.subr.bf16.mxu0 0
      %1094 = vmatpush1.bf16.msra.mxu0 %v1088
      %1095 = vmatprep.subr.bf16.mxu0 0
      %1096 = vmatpush1.bf16.msra.mxu0 0
      %1097 = vmatprep.subr.bf16.mxu0 0
      %1098 = vmatpush1.bf16.msra.mxu0 0
      %1099 = vmatprep.subr.bf16.mxu0 0
      %1100 = vmatpush1.bf16.msra.mxu0 0
      %1101 = vmatprep.subr.bf16.mxu0 0
      %1102 = vmatpush1.bf16.msra.mxu0 0
      %1103 = vmatprep.subr.bf16.mxu0 0
      %1104 = vmatpush1.bf16.msra.mxu0 0
      %1105 = vmatprep.subr.bf16.mxu0 0
      %1106 = vmatpush1.bf16.msra.mxu0 0
      %1107 = vmatprep.subr.bf16.mxu0 0
      %1108 = vmatpush1.bf16.msra.mxu0 0
      %1109 = vmatprep.subr.bf16.mxu0 0
      %1110 = vmatpush1.bf16.msra.mxu0 0
      %1111 = vmatprep.subr.bf16.mxu0 0
      %1112 = vmatpush1.bf16.msra.mxu0 0
      %1113 = vmatprep.subr.bf16.mxu0 0
      %1114 = vmatpush1.bf16.msra.mxu0 0
      %1115 = vmatprep.subr.bf16.mxu0 0
      %1116 = vmatpush1.bf16.msra.mxu0 0
      %1117 = vmatprep.subr.bf16.mxu0 0
      %1118 = vmatpush1.bf16.msra.mxu0 0
      %1119 = vmatprep.subr.bf16.mxu0 0
      %1120 = vmatpush1.bf16.msra.mxu0 0
      %1121 = vmatprep.subr.bf16.mxu0 0
      %1122 = vmatpush1.bf16.msra.mxu0 0
      %1123 = vmatprep.subr.bf16.mxu0 0
      %1124 = vmatpush1.bf16.msra.mxu0 0
      %1125 = vmatprep.mubr.bf16.mxu0 0
      %1126 = vmatmul.mubr.bf16.gmra.mrb[0].mxu0 %v1091
      %v1127 = vpop.f32.mrb[0].mxu0
      %v1128 = vadd.f32 0.0, %v1127
      %v1129 = vpop.f32.mrb[0].mxu0
      %v1130 = vpop.f32.mrb[0].mxu0
      %v1131 = vpop.f32.mrb[0].mxu0
      %1132 = vdwg.mxu0
      %v1135 = vunpack.c.l.b16 %v848
      %v1136 = vunpack.c.l.b16 %v849
      %v1137 = vpack.c.b16 %v1136, %v1135
      %v1140 = vsel %vm858, %v971, 0
      %1142 = vmatprep.subr.bf16.mxu0 0
      %1143 = vmatpush1.bf16.msra.mxu0 %v1137
      %1144 = vmatprep.subr.bf16.mxu0 0
      %1145 = vmatpush1.bf16.msra.mxu0 0
      %1146 = vmatprep.subr.bf16.mxu0 0
      %1147 = vmatpush1.bf16.msra.mxu0 0
      %1148 = vmatprep.subr.bf16.mxu0 0
      %1149 = vmatpush1.bf16.msra.mxu0 0
      %1150 = vmatprep.subr.bf16.mxu0 0
      %1151 = vmatpush1.bf16.msra.mxu0 0
      %1152 = vmatprep.subr.bf16.mxu0 0
      %1153 = vmatpush1.bf16.msra.mxu0 0
      %1154 = vmatprep.subr.bf16.mxu0 0
      %1155 = vmatpush1.bf16.msra.mxu0 0
      %1156 = vmatprep.subr.bf16.mxu0 0
      %1157 = vmatpush1.bf16.msra.mxu0 0
      %1158 = vmatprep.subr.bf16.mxu0 0
      %1159 = vmatpush1.bf16.msra.mxu0 0
      %1160 = vmatprep.subr.bf16.mxu0 0
      %1161 = vmatpush1.bf16.msra.mxu0 0
      %1162 = vmatprep.subr.bf16.mxu0 0
      %1163 = vmatpush1.bf16.msra.mxu0 0
      %1164 = vmatprep.subr.bf16.mxu0 0
      %1165 = vmatpush1.bf16.msra.mxu0 0
      %1166 = vmatprep.subr.bf16.mxu0 0
      %1167 = vmatpush1.bf16.msra.mxu0 0
      %1168 = vmatprep.subr.bf16.mxu0 0
      %1169 = vmatpush1.bf16.msra.mxu0 0
      %1170 = vmatprep.subr.bf16.mxu0 0
      %1171 = vmatpush1.bf16.msra.mxu0 0
      %1172 = vmatprep.subr.bf16.mxu0 0
      %1173 = vmatpush1.bf16.msra.mxu0 0
      %1174 = vmatprep.mubr.bf16.mxu0 0
      %1175 = vmatmul.mubr.bf16.gmra.mrb[0].mxu0 %v1140
      %v1176 = vpop.f32.mrb[0].mxu0
      %v1177 = vadd.f32 %v1128, %v1176
      %v1178 = vpop.f32.mrb[0].mxu0
      %v1179 = vpop.f32.mrb[0].mxu0
      %v1180 = vpop.f32.mrb[0].mxu0
      %1181 = vdwg.mxu0
      %v1182 = vadd.f32 %v742, %v1177
      %v1183 = vld [vmem:[%s8] sm:$0x1]
      %v1185 = vlaneseq
      %v1186 = vshrl.u32 %v1185, 7
      %v1187 = vsub.s32 0, %v1186
      %v1188 = vrot.slane %v1183, %v1187
      %v1190 = vadd.f32 %v1182, %v1188
      %v1191 = vld [vmem:[%s9] sm:$0x1]
      %v1192 = vld [vmem:[%s10] sm:$0x1]
      %v1193 = vsel %vm749, %v1190, 0.0
      %1194 = vadd.xlane.f32.xlu0 %v1193
      %v1195 = vpop.xlane.xlu0 %1194
      %v1196 = vmul.f32 %v1195, %v753
      %v1197 = vmul.f32 %v1190, %v1190
      %v1198 = vsel %vm749, %v1197, 0.0
      %1199 = vadd.xlane.f32.xlu0 %v1198
      %v1200 = vpop.xlane.xlu0 %1199
      %v1201 = vmul.f32 %v1200, %v753
      %v1202 = vmul.f32 %v1196, %v1196
      %v1203 = vsub.f32 %v1201, %v1202
      %v1204 = vadd.f32 %v1203, 1e-06
      %v1205 = vrsqrt.pop %v1204
      %v1206 = vsub.f32 %v1190, %v1196
      %v1207 = vmul.f32 %v1206, %v1205
      %v1209 = vlaneseq
      %v1210 = vshrl.u32 %v1209, 7
      %v1211 = vsub.s32 0, %v1210
      %v1212 = vrot.slane %v1191, %v1211
      %v1214 = vmul.f32 %v1207, %v1212
      %v1216 = vlaneseq
      %v1217 = vshrl.u32 %v1216, 7
      %v1218 = vsub.s32 0, %v1217
      %v1219 = vrot.slane %v1192, %v1218
      %v1221 = vadd.f32 %v1214, %v1219
      %v1222 = vpack.c.bf16 %v1221, %v1221
      %v1223 = vld [vmem:[%s11] sm:$0xf]
      %v1224 = vld [vmem:[%s11 + $0x4] sm:$0xf]
      %v1225 = vld [vmem:[%s11 + $0x8] sm:$0xf]
      %v1226 = vld [vmem:[%s11 + $0xc] sm:$0xf]
      %v1227 = vld [vmem:[%s12] sm:$0x1]
      %v1229 = vlaneseq
      %v1230 = vshrl.u32 %v1229, 7
      %v1231 = vsub.s32 0, %v1230
      %v1232 = vrot.slane %v1227, %v1231
      %v1238 = vunpack.c.l.b16 %v1223
      %v1239 = vunpack.c.l.b16 %v1224
      %v1240 = vunpack.c.l.b16 %v1225
      %v1241 = vunpack.c.l.b16 %v1226
      %v1242 = vpack.c.b16 %v1239, %v1238
      %v1243 = vpack.c.b16 %v1241, %v1240
      %v1247 = vsel %vm804, %v1222, 0
      %1249 = vmatprep.subr.bf16.mxu0 0
      %1250 = vmatpush1.bf16.msra.mxu0 %v1242
      %1251 = vmatprep.subr.bf16.mxu0 0
      %1252 = vmatpush1.bf16.msra.mxu0 %v1243
      %1253 = vmatprep.subr.bf16.mxu0 0
      %1254 = vmatpush1.bf16.msra.mxu0 0
      %1255 = vmatprep.subr.bf16.mxu0 0
      %1256 = vmatpush1.bf16.msra.mxu0 0
      %1257 = vmatprep.subr.bf16.mxu0 0
      %1258 = vmatpush1.bf16.msra.mxu0 0
      %1259 = vmatprep.subr.bf16.mxu0 0
      %1260 = vmatpush1.bf16.msra.mxu0 0
      %1261 = vmatprep.subr.bf16.mxu0 0
      %1262 = vmatpush1.bf16.msra.mxu0 0
      %1263 = vmatprep.subr.bf16.mxu0 0
      %1264 = vmatpush1.bf16.msra.mxu0 0
      %1265 = vmatprep.subr.bf16.mxu0 0
      %1266 = vmatpush1.bf16.msra.mxu0 0
      %1267 = vmatprep.subr.bf16.mxu0 0
      %1268 = vmatpush1.bf16.msra.mxu0 0
      %1269 = vmatprep.subr.bf16.mxu0 0
      %1270 = vmatpush1.bf16.msra.mxu0 0
      %1271 = vmatprep.subr.bf16.mxu0 0
      %1272 = vmatpush1.bf16.msra.mxu0 0
      %1273 = vmatprep.subr.bf16.mxu0 0
      %1274 = vmatpush1.bf16.msra.mxu0 0
      %1275 = vmatprep.subr.bf16.mxu0 0
      %1276 = vmatpush1.bf16.msra.mxu0 0
      %1277 = vmatprep.subr.bf16.mxu0 0
      %1278 = vmatpush1.bf16.msra.mxu0 0
      %1279 = vmatprep.subr.bf16.mxu0 0
      %1280 = vmatpush1.bf16.msra.mxu0 0
      %1281 = vmatprep.mubr.bf16.mxu0 0
      %1282 = vmatmul.mubr.bf16.gmra.mrb[0].mxu0 %v1247
      %v1283 = vpop.f32.mrb[0].mxu0
      %v1284 = vadd.f32 %v1232, %v1283
      %v1285 = vpop.f32.mrb[0].mxu0
      %v1286 = vpop.f32.mrb[0].mxu0
      %v1287 = vpop.f32.mrb[0].mxu0
      %1288 = vdwg.mxu0
      %v1289 = vmul.f32 %v1284, 0.5
      %v1290 = vmul.f32 %v1284, 0.70710677
      %vm1291 = vcmp.ge.f32.partialorder %v1290, 0.0
      %v1292 = vsel %vm1291, 1.0, -1.0
      %v1293 = vand.u32 2147483647, %v1290
      %v1294 = vmul.f32 %v1293, 0.3275911
      %v1295 = vadd.f32 %v1294, 1.0
      %v1296 = vrcp.pop %v1295
      %v1297 = vmul.f32 1.0, %v1296
      %v1298 = vmul.f32 %v1297, 1.0614054
      %v1299 = vadd.f32 %v1298, -1.4531521
      %v1300 = vmul.f32 %v1299, %v1297
      %v1301 = vadd.f32 %v1300, 1.4214138
      %v1302 = vmul.f32 %v1301, %v1297
      %v1303 = vadd.f32 %v1302, -0.28449672
      %v1304 = vmul.f32 %v1303, %v1297
      %v1305 = vadd.f32 %v1304, 0.2548296
      %v1306 = vmul.f32 %v1305, %v1297
      %v1307 = vmul.f32 %v1293, %v1293
      %v1308 = vsub.f32 0.0, %v1307
      %v1309 = vmul.f32 %v1308, 1.442695
      %v1310 = vpow.pop %v1309
      %v1311 = vmul.f32 %v1306, %v1310
      %v1312 = vsub.f32 1.0, %v1311
      %v1313 = vmul.f32 %v1292, %v1312
      %v1314 = vadd.f32 %v1313, 1.0
      %v1315 = vmul.f32 %v1289, %v1314
      %v1316 = vpack.c.bf16 %v1315, %v1315
      %v1317 = vld [vmem:[%s13] sm:$0xf]
      %v1318 = vld [vmem:[%s13 + $0x4] sm:$0xf]
      %v1319 = vld [vmem:[%s13 + $0x8] sm:$0xf]
      %v1320 = vld [vmem:[%s13 + $0xc] sm:$0xf]
      %v1321 = vld [vmem:[%s13 + $0x10] sm:$0xf]
      %v1322 = vld [vmem:[%s13 + $0x14] sm:$0xf]
      %v1323 = vld [vmem:[%s13 + $0x18] sm:$0xf]
      %v1324 = vld [vmem:[%s13 + $0x1c] sm:$0xf]
      %v1325 = vld [vmem:[%s14] sm:$0x1]
      %v1327 = vlaneseq
      %v1328 = vshrl.u32 %v1327, 7
      %v1329 = vsub.s32 0, %v1328
      %v1330 = vrot.slane %v1325, %v1329
      %v1340 = vunpack.c.l.b16 %v1317
      %v1341 = vunpack.c.l.b16 %v1318
      %v1342 = vunpack.c.l.b16 %v1319
      %v1343 = vunpack.c.l.b16 %v1320
      %v1344 = vunpack.c.l.b16 %v1321
      %v1345 = vunpack.c.l.b16 %v1322
      %v1346 = vunpack.c.l.b16 %v1323
      %v1347 = vunpack.c.l.b16 %v1324
      %v1348 = vpack.c.b16 %v1341, %v1340
      %v1349 = vpack.c.b16 %v1343, %v1342
      %v1350 = vpack.c.b16 %v1345, %v1344
      %v1351 = vpack.c.b16 %v1347, %v1346
      %v1357 = vsel %vm703, %v1316, 0
      %1359 = vmatprep.subr.bf16.mxu0 0
      %1360 = vmatpush1.bf16.msra.mxu0 %v1348
      %1361 = vmatprep.subr.bf16.mxu0 0
      %1362 = vmatpush1.bf16.msra.mxu0 %v1349
      %1363 = vmatprep.subr.bf16.mxu0 0
      %1364 = vmatpush1.bf16.msra.mxu0 %v1350
      %1365 = vmatprep.subr.bf16.mxu0 0
      %1366 = vmatpush1.bf16.msra.mxu0 %v1351
      %1367 = vmatprep.subr.bf16.mxu0 0
      %1368 = vmatpush1.bf16.msra.mxu0 0
      %1369 = vmatprep.subr.bf16.mxu0 0
      %1370 = vmatpush1.bf16.msra.mxu0 0
      %1371 = vmatprep.subr.bf16.mxu0 0
      %1372 = vmatpush1.bf16.msra.mxu0 0
      %1373 = vmatprep.subr.bf16.mxu0 0
      %1374 = vmatpush1.bf16.msra.mxu0 0
      %1375 = vmatprep.subr.bf16.mxu0 0
      %1376 = vmatpush1.bf16.msra.mxu0 0
      %1377 = vmatprep.subr.bf16.mxu0 0
      %1378 = vmatpush1.bf16.msra.mxu0 0
      %1379 = vmatprep.subr.bf16.mxu0 0
      %1380 = vmatpush1.bf16.msra.mxu0 0
      %1381 = vmatprep.subr.bf16.mxu0 0
      %1382 = vmatpush1.bf16.msra.mxu0 0
      %1383 = vmatprep.subr.bf16.mxu0 0
      %1384 = vmatpush1.bf16.msra.mxu0 0
      %1385 = vmatprep.subr.bf16.mxu0 0
      %1386 = vmatpush1.bf16.msra.mxu0 0
      %1387 = vmatprep.subr.bf16.mxu0 0
      %1388 = vmatpush1.bf16.msra.mxu0 0
      %1389 = vmatprep.subr.bf16.mxu0 0
      %1390 = vmatpush1.bf16.msra.mxu0 0
      %1391 = vmatprep.mubr.bf16.mxu0 0
      %1392 = vmatmul.mubr.bf16.gmra.mrb[0].mxu0 %v1357
      %v1393 = vpop.f32.mrb[0].mxu0
      %v1394 = vadd.f32 %v1330, %v1393
      %v1395 = vpop.f32.mrb[0].mxu0
      %v1396 = vpop.f32.mrb[0].mxu0
      %v1397 = vpop.f32.mrb[0].mxu0
      %1398 = vdwg.mxu0
      %v1399 = vadd.f32 %v1190, %v1394
      %s1400 = scalar_lea.vmem %s3, 1
      %v1401 = vld [vmem:[%s1400] sm:$0x1]
      %s1402 = scalar_lea.vmem %s4, 1
      %v1403 = vld [vmem:[%s1402] sm:$0x1]
      %v1404 = vsel %vm749, %v1399, 0.0
      %1405 = vadd.xlane.f32.xlu0 %v1404
      %v1406 = vpop.xlane.xlu0 %1405
      %v1407 = vmul.f32 %v1406, %v753
      %v1408 = vmul.f32 %v1399, %v1399
      %v1409 = vsel %vm749, %v1408, 0.0
      %1410 = vadd.xlane.f32.xlu0 %v1409
      %v1411 = vpop.xlane.xlu0 %1410
      %v1412 = vmul.f32 %v1411, %v753
      %v1413 = vmul.f32 %v1407, %v1407
      %v1414 = vsub.f32 %v1412, %v1413
      %v1415 = vadd.f32 %v1414, 1e-06
      %v1416 = vrsqrt.pop %v1415
      %v1417 = vsub.f32 %v1399, %v1407
      %v1418 = vmul.f32 %v1417, %v1416
      %v1420 = vlaneseq
      %v1421 = vshrl.u32 %v1420, 7
      %v1422 = vsub.s32 0, %v1421
      %v1423 = vrot.slane %v1401, %v1422
      %v1425 = vmul.f32 %v1418, %v1423
      %v1427 = vlaneseq
      %v1428 = vshrl.u32 %v1427, 7
      %v1429 = vsub.s32 0, %v1428
      %v1430 = vrot.slane %v1403, %v1429
      %v1432 = vadd.f32 %v1425, %v1430
      %v1433 = vpack.c.bf16 %v1432, %v1432
      %s1434 = scalar_lea.vmem %s5, 16
      %v1435 = vld [vmem:[%s1434] sm:$0xf]
      %v1436 = vld [vmem:[%s1434 + $0x4] sm:$0xf]
      %v1437 = vld [vmem:[%s1434 + $0x8] sm:$0xf]
      %v1438 = vld [vmem:[%s1434 + $0xc] sm:$0xf]
      %s1439 = scalar_lea.vmem %s6, 1
      %v1440 = vld [vmem:[%s1439] sm:$0x1]
      %v1442 = vlaneseq
      %v1443 = vshrl.u32 %v1442, 7
      %v1444 = vsub.s32 0, %v1443
      %v1445 = vrot.slane %v1440, %v1444
      %v1451 = vunpack.c.l.b16 %v1435
      %v1452 = vunpack.c.l.b16 %v1436
      %v1453 = vunpack.c.l.b16 %v1437
      %v1454 = vunpack.c.l.b16 %v1438
      %v1455 = vpack.c.b16 %v1452, %v1451
      %v1456 = vpack.c.b16 %v1454, %v1453
      %v1460 = vsel %vm804, %v1433, 0
      %1462 = vmatprep.subr.bf16.mxu0 0
      %1463 = vmatpush1.bf16.msra.mxu0 %v1455
      %1464 = vmatprep.subr.bf16.mxu0 0
      %1465 = vmatpush1.bf16.msra.mxu0 %v1456
      %1466 = vmatprep.subr.bf16.mxu0 0
      %1467 = vmatpush1.bf16.msra.mxu0 0
      %1468 = vmatprep.subr.bf16.mxu0 0
      %1469 = vmatpush1.bf16.msra.mxu0 0
      %1470 = vmatprep.subr.bf16.mxu0 0
      %1471 = vmatpush1.bf16.msra.mxu0 0
      %1472 = vmatprep.subr.bf16.mxu0 0
      %1473 = vmatpush1.bf16.msra.mxu0 0
      %1474 = vmatprep.subr.bf16.mxu0 0
      %1475 = vmatpush1.bf16.msra.mxu0 0
      %1476 = vmatprep.subr.bf16.mxu0 0
      %1477 = vmatpush1.bf16.msra.mxu0 0
      %1478 = vmatprep.subr.bf16.mxu0 0
      %1479 = vmatpush1.bf16.msra.mxu0 0
      %1480 = vmatprep.subr.bf16.mxu0 0
      %1481 = vmatpush1.bf16.msra.mxu0 0
      %1482 = vmatprep.subr.bf16.mxu0 0
      %1483 = vmatpush1.bf16.msra.mxu0 0
      %1484 = vmatprep.subr.bf16.mxu0 0
      %1485 = vmatpush1.bf16.msra.mxu0 0
      %1486 = vmatprep.subr.bf16.mxu0 0
      %1487 = vmatpush1.bf16.msra.mxu0 0
      %1488 = vmatprep.subr.bf16.mxu0 0
      %1489 = vmatpush1.bf16.msra.mxu0 0
      %1490 = vmatprep.subr.bf16.mxu0 0
      %1491 = vmatpush1.bf16.msra.mxu0 0
      %1492 = vmatprep.subr.bf16.mxu0 0
      %1493 = vmatpush1.bf16.msra.mxu0 0
      %1494 = vmatprep.mubr.bf16.mxu0 0
      %1495 = vmatmul.mubr.bf16.gmra.mrb[0].mxu0 %v1460
      %v1496 = vpop.f32.mrb[0].mxu0
      %v1497 = vadd.f32 %v1445, %v1496
      %v1498 = vpop.f32.mrb[0].mxu0
      %v1499 = vpop.f32.mrb[0].mxu0
      %v1500 = vpop.f32.mrb[0].mxu0
      %1501 = vdwg.mxu0
      %s1502 = scalar_lea.vmem %s7, 16
      %v1503 = vld [vmem:[%s1502] sm:$0xf]
      %v1504 = vld [vmem:[%s1502 + $0x4] sm:$0xf]
      %v1505 = vld [vmem:[%s1502 + $0x8] sm:$0xf]
      %v1506 = vld [vmem:[%s1502 + $0xc] sm:$0xf]
      %v1507 = vmul.f32 %v1497, 0.25
      %v1508 = vpack.c.bf16 %v1507, %v1507
      %v1509 = vpack.c.bf16 %v1497, %v1497
      %1511 = vrot.lane.b32.xlu0 %v1509, 96
      %v1512 = vpop.permute.xlu0 %1511
      %v1514 = vsel %vm858, %v1508, 0
      %v1517 = vsel %vm858, %v1512, 0
      %1519 = vmatprep.subr.bf16.mxu0 0
      %1520 = vmatpush1.bf16.xpose.msra.mxu0 %v1517
      %1521 = vmatprep.subr.bf16.mxu0 0
      %1522 = vmatpush1.bf16.xpose.msra.mxu0 0
      %1523 = vmatprep.subr.bf16.mxu0 0
      %1524 = vmatpush1.bf16.xpose.msra.mxu0 0
      %1525 = vmatprep.subr.bf16.mxu0 0
      %1526 = vmatpush1.bf16.xpose.msra.mxu0 0
      %1527 = vmatprep.subr.bf16.mxu0 0
      %1528 = vmatpush1.bf16.xpose.msra.mxu0 0
      %1529 = vmatprep.subr.bf16.mxu0 0
      %1530 = vmatpush1.bf16.xpose.msra.mxu0 0
      %1531 = vmatprep.subr.bf16.mxu0 0
      %1532 = vmatpush1.bf16.xpose.msra.mxu0 0
      %1533 = vmatprep.subr.bf16.mxu0 0
      %1534 = vmatpush1.bf16.xpose.msra.mxu0 0
      %1535 = vmatprep.subr.bf16.mxu0 0
      %1536 = vmatpush1.bf16.xpose.msra.mxu0 0
      %1537 = vmatprep.subr.bf16.mxu0 0
      %1538 = vmatpush1.bf16.xpose.msra.mxu0 0
      %1539 = vmatprep.subr.bf16.mxu0 0
      %1540 = vmatpush1.bf16.xpose.msra.mxu0 0
      %1541 = vmatprep.subr.bf16.mxu0 0
      %1542 = vmatpush1.bf16.xpose.msra.mxu0 0
      %1543 = vmatprep.subr.bf16.mxu0 0
      %1544 = vmatpush1.bf16.xpose.msra.mxu0 0
      %1545 = vmatprep.subr.bf16.mxu0 0
      %1546 = vmatpush1.bf16.xpose.msra.mxu0 0
      %1547 = vmatprep.subr.bf16.mxu0 0
      %1548 = vmatpush1.bf16.xpose.msra.mxu0 0
      %1549 = vmatprep.subr.bf16.mxu0 0
      %1550 = vmatpush1.bf16.xpose.msra.mxu0 0
      %1551 = vmatprep.mubr.bf16.mxu0 0
      %1552 = vmatmul.mubr.bf16.gmra.mrb[0].mxu0 %v1514
      %v1553 = vpop.f32.mrb[0].mxu0
      %v1554 = vadd.f32 0.0, %v1553
      %v1555 = vpop.f32.mrb[0].mxu0
      %v1556 = vpop.f32.mrb[0].mxu0
      %v1557 = vpop.f32.mrb[0].mxu0
      %1558 = vdwg.mxu0
      %v1559 = vsel %vm905, %v1554, -inf
      %1560 = vmax.xlane.f32.xlu0 %v1559
      %v1561 = vpop.xlane.xlu0 %1560
      %v1562 = vsub.f32 %v1554, %v1561
      %v1563 = vmul.f32 %v1562, 1.442695
      %v1564 = vpow.pop %v1563
      %v1565 = vsel %vm905, %v1564, 0.0
      %1566 = vadd.xlane.f32.xlu0 %v1565
      %v1567 = vpop.xlane.xlu0 %1566
      %v1568 = vrcp.pop %v1567
      %v1569 = vmul.f32 %v1564, %v1568
      %v1570 = vpack.c.bf16 %v1569, %v1569
      %1571 = vrot.lane.b32.xlu0 %v1509, 64
      %v1572 = vpop.permute.xlu0 %1571
      %v1574 = vsel %vm920, %v1570, 0
      %v1577 = vand.u32 %v1572, %v927
      %1579 = vmatprep.subr.bf16.mxu0 0
      %1580 = vmatpush1.bf16.msra.mxu0 %v1577
      %1581 = vmatprep.subr.bf16.mxu0 0
      %1582 = vmatpush1.bf16.msra.mxu0 0
      %1583 = vmatprep.subr.bf16.mxu0 0
      %1584 = vmatpush1.bf16.msra.mxu0 0
      %1585 = vmatprep.subr.bf16.mxu0 0
      %1586 = vmatpush1.bf16.msra.mxu0 0
      %1587 = vmatprep.subr.bf16.mxu0 0
      %1588 = vmatpush1.bf16.msra.mxu0 0
      %1589 = vmatprep.subr.bf16.mxu0 0
      %1590 = vmatpush1.bf16.msra.mxu0 0
      %1591 = vmatprep.subr.bf16.mxu0 0
      %1592 = vmatpush1.bf16.msra.mxu0 0
      %1593 = vmatprep.subr.bf16.mxu0 0
      %1594 = vmatpush1.bf16.msra.mxu0 0
      %1595 = vmatprep.subr.bf16.mxu0 0
      %1596 = vmatpush1.bf16.msra.mxu0 0
      %1597 = vmatprep.subr.bf16.mxu0 0
      %1598 = vmatpush1.bf16.msra.mxu0 0
      %1599 = vmatprep.subr.bf16.mxu0 0
      %1600 = vmatpush1.bf16.msra.mxu0 0
      %1601 = vmatprep.subr.bf16.mxu0 0
      %1602 = vmatpush1.bf16.msra.mxu0 0
      %1603 = vmatprep.subr.bf16.mxu0 0
      %1604 = vmatpush1.bf16.msra.mxu0 0
      %1605 = vmatprep.subr.bf16.mxu0 0
      %1606 = vmatpush1.bf16.msra.mxu0 0
      %1607 = vmatprep.subr.bf16.mxu0 0
      %1608 = vmatpush1.bf16.msra.mxu0 0
      %1609 = vmatprep.subr.bf16.mxu0 0
      %1610 = vmatpush1.bf16.msra.mxu0 0
      %1611 = vmatprep.mubr.bf16.mxu0 0
      %1612 = vmatmul.mubr.bf16.gmra.mrb[0].mxu0 %v1574
      %v1613 = vpop.f32.mrb[0].mxu0
      %v1614 = vadd.f32 0.0, %v1613
      %v1615 = vpop.f32.mrb[0].mxu0
      %v1616 = vpop.f32.mrb[0].mxu0
      %v1617 = vpop.f32.mrb[0].mxu0
      %1618 = vdwg.mxu0
      %v1619 = vpack.c.bf16 %v1614, %v1614
      %1621 = vrot.lane.b32.xlu0 %v1508, 112
      %v1622 = vpop.permute.xlu0 %1621
      %1623 = vrot.lane.b32.xlu0 %v1509, 80
      %v1624 = vpop.permute.xlu0 %1623
      %v1626 = vsel %vm858, %v1622, 0
      %v1629 = vsel %vm858, %v1624, 0
      %1631 = vmatprep.subr.bf16.mxu0 0
      %1632 = vmatpush1.bf16.xpose.msra.mxu0 %v1629
      %1633 = vmatprep.subr.bf16.mxu0 0
      %1634 = vmatpush1.bf16.xpose.msra.mxu0 0
      %1635 = vmatprep.subr.bf16.mxu0 0
      %1636 = vmatpush1.bf16.xpose.msra.mxu0 0
      %1637 = vmatprep.subr.bf16.mxu0 0
      %1638 = vmatpush1.bf16.xpose.msra.mxu0 0
      %1639 = vmatprep.subr.bf16.mxu0 0
      %1640 = vmatpush1.bf16.xpose.msra.mxu0 0
      %1641 = vmatprep.subr.bf16.mxu0 0
      %1642 = vmatpush1.bf16.xpose.msra.mxu0 0
      %1643 = vmatprep.subr.bf16.mxu0 0
      %1644 = vmatpush1.bf16.xpose.msra.mxu0 0
      %1645 = vmatprep.subr.bf16.mxu0 0
      %1646 = vmatpush1.bf16.xpose.msra.mxu0 0
      %1647 = vmatprep.subr.bf16.mxu0 0
      %1648 = vmatpush1.bf16.xpose.msra.mxu0 0
      %1649 = vmatprep.subr.bf16.mxu0 0
      %1650 = vmatpush1.bf16.xpose.msra.mxu0 0
      %1651 = vmatprep.subr.bf16.mxu0 0
      %1652 = vmatpush1.bf16.xpose.msra.mxu0 0
      %1653 = vmatprep.subr.bf16.mxu0 0
      %1654 = vmatpush1.bf16.xpose.msra.mxu0 0
      %1655 = vmatprep.subr.bf16.mxu0 0
      %1656 = vmatpush1.bf16.xpose.msra.mxu0 0
      %1657 = vmatprep.subr.bf16.mxu0 0
      %1658 = vmatpush1.bf16.xpose.msra.mxu0 0
      %1659 = vmatprep.subr.bf16.mxu0 0
      %1660 = vmatpush1.bf16.xpose.msra.mxu0 0
      %1661 = vmatprep.subr.bf16.mxu0 0
      %1662 = vmatpush1.bf16.xpose.msra.mxu0 0
      %1663 = vmatprep.mubr.bf16.mxu0 0
      %1664 = vmatmul.mubr.bf16.gmra.mrb[0].mxu0 %v1626
      %v1665 = vpop.f32.mrb[0].mxu0
      %v1666 = vadd.f32 0.0, %v1665
      %v1667 = vpop.f32.mrb[0].mxu0
      %v1668 = vpop.f32.mrb[0].mxu0
      %v1669 = vpop.f32.mrb[0].mxu0
      %1670 = vdwg.mxu0
      %v1671 = vsel %vm905, %v1666, -inf
      %1672 = vmax.xlane.f32.xlu0 %v1671
      %v1673 = vpop.xlane.xlu0 %1672
      %v1674 = vsub.f32 %v1666, %v1673
      %v1675 = vmul.f32 %v1674, 1.442695
      %v1676 = vpow.pop %v1675
      %v1677 = vsel %vm905, %v1676, 0.0
      %1678 = vadd.xlane.f32.xlu0 %v1677
      %v1679 = vpop.xlane.xlu0 %1678
      %v1680 = vrcp.pop %v1679
      %v1681 = vmul.f32 %v1676, %v1680
      %v1682 = vpack.c.bf16 %v1681, %v1681
      %1683 = vrot.lane.b32.xlu0 %v1509, 48
      %v1684 = vpop.permute.xlu0 %1683
      %v1686 = vsel %vm920, %v1682, 0
      %v1689 = vand.u32 %v1684, %v927
      %1691 = vmatprep.subr.bf16.mxu0 0
      %1692 = vmatpush1.bf16.msra.mxu0 %v1689
      %1693 = vmatprep.subr.bf16.mxu0 0
      %1694 = vmatpush1.bf16.msra.mxu0 0
      %1695 = vmatprep.subr.bf16.mxu0 0
      %1696 = vmatpush1.bf16.msra.mxu0 0
      %1697 = vmatprep.subr.bf16.mxu0 0
      %1698 = vmatpush1.bf16.msra.mxu0 0
      %1699 = vmatprep.subr.bf16.mxu0 0
      %1700 = vmatpush1.bf16.msra.mxu0 0
      %1701 = vmatprep.subr.bf16.mxu0 0
      %1702 = vmatpush1.bf16.msra.mxu0 0
      %1703 = vmatprep.subr.bf16.mxu0 0
      %1704 = vmatpush1.bf16.msra.mxu0 0
      %1705 = vmatprep.subr.bf16.mxu0 0
      %1706 = vmatpush1.bf16.msra.mxu0 0
      %1707 = vmatprep.subr.bf16.mxu0 0
      %1708 = vmatpush1.bf16.msra.mxu0 0
      %1709 = vmatprep.subr.bf16.mxu0 0
      %1710 = vmatpush1.bf16.msra.mxu0 0
      %1711 = vmatprep.subr.bf16.mxu0 0
      %1712 = vmatpush1.bf16.msra.mxu0 0
      %1713 = vmatprep.subr.bf16.mxu0 0
      %1714 = vmatpush1.bf16.msra.mxu0 0
      %1715 = vmatprep.subr.bf16.mxu0 0
      %1716 = vmatpush1.bf16.msra.mxu0 0
      %1717 = vmatprep.subr.bf16.mxu0 0
      %1718 = vmatpush1.bf16.msra.mxu0 0
      %1719 = vmatprep.subr.bf16.mxu0 0
      %1720 = vmatpush1.bf16.msra.mxu0 0
      %1721 = vmatprep.subr.bf16.mxu0 0
      %1722 = vmatpush1.bf16.msra.mxu0 0
      %1723 = vmatprep.mubr.bf16.mxu0 0
      %1724 = vmatmul.mubr.bf16.gmra.mrb[0].mxu0 %v1686
      %v1725 = vpop.f32.mrb[0].mxu0
      %v1726 = vadd.f32 0.0, %v1725
      %v1727 = vpop.f32.mrb[0].mxu0
      %v1728 = vpop.f32.mrb[0].mxu0
      %v1729 = vpop.f32.mrb[0].mxu0
      %1730 = vdwg.mxu0
      %v1731 = vpack.c.bf16 %v1726, %v1726
      %v1734 = vunpack.c.l.b16 %v1505
      %v1735 = vunpack.c.l.b16 %v1506
      %v1736 = vpack.c.b16 %v1735, %v1734
      %v1739 = vsel %vm858, %v1731, 0
      %1741 = vmatprep.subr.bf16.mxu0 0
      %1742 = vmatpush1.bf16.msra.mxu0 %v1736
      %1743 = vmatprep.subr.bf16.mxu0 0
      %1744 = vmatpush1.bf16.msra.mxu0 0
      %1745 = vmatprep.subr.bf16.mxu0 0
      %1746 = vmatpush1.bf16.msra.mxu0 0
      %1747 = vmatprep.subr.bf16.mxu0 0
      %1748 = vmatpush1.bf16.msra.mxu0 0
      %1749 = vmatprep.subr.bf16.mxu0 0
      %1750 = vmatpush1.bf16.msra.mxu0 0
      %1751 = vmatprep.subr.bf16.mxu0 0
      %1752 = vmatpush1.bf16.msra.mxu0 0
      %1753 = vmatprep.subr.bf16.mxu0 0
      %1754 = vmatpush1.bf16.msra.mxu0 0
      %1755 = vmatprep.subr.bf16.mxu0 0
      %1756 = vmatpush1.bf16.msra.mxu0 0
      %1757 = vmatprep.subr.bf16.mxu0 0
      %1758 = vmatpush1.bf16.msra.mxu0 0
      %1759 = vmatprep.subr.bf16.mxu0 0
      %1760 = vmatpush1.bf16.msra.mxu0 0
      %1761 = vmatprep.subr.bf16.mxu0 0
      %1762 = vmatpush1.bf16.msra.mxu0 0
      %1763 = vmatprep.subr.bf16.mxu0 0
      %1764 = vmatpush1.bf16.msra.mxu0 0
      %1765 = vmatprep.subr.bf16.mxu0 0
      %1766 = vmatpush1.bf16.msra.mxu0 0
      %1767 = vmatprep.subr.bf16.mxu0 0
      %1768 = vmatpush1.bf16.msra.mxu0 0
      %1769 = vmatprep.subr.bf16.mxu0 0
      %1770 = vmatpush1.bf16.msra.mxu0 0
      %1771 = vmatprep.subr.bf16.mxu0 0
      %1772 = vmatpush1.bf16.msra.mxu0 0
      %1773 = vmatprep.mubr.bf16.mxu0 0
      %1774 = vmatmul.mubr.bf16.gmra.mrb[0].mxu0 %v1739
      %v1775 = vpop.f32.mrb[0].mxu0
      %v1776 = vadd.f32 0.0, %v1775
      %v1777 = vpop.f32.mrb[0].mxu0
      %v1778 = vpop.f32.mrb[0].mxu0
      %v1779 = vpop.f32.mrb[0].mxu0
      %1780 = vdwg.mxu0
      %v1783 = vunpack.c.l.b16 %v1503
      %v1784 = vunpack.c.l.b16 %v1504
      %v1785 = vpack.c.b16 %v1784, %v1783
      %v1788 = vsel %vm858, %v1619, 0
      %1790 = vmatprep.subr.bf16.mxu0 0
      %1791 = vmatpush1.bf16.msra.mxu0 %v1785
      %1792 = vmatprep.subr.bf16.mxu0 0
      %1793 = vmatpush1.bf16.msra.mxu0 0
      %1794 = vmatprep.subr.bf16.mxu0 0
      %1795 = vmatpush1.bf16.msra.mxu0 0
      %1796 = vmatprep.subr.bf16.mxu0 0
      %1797 = vmatpush1.bf16.msra.mxu0 0
      %1798 = vmatprep.subr.bf16.mxu0 0
      %1799 = vmatpush1.bf16.msra.mxu0 0
      %1800 = vmatprep.subr.bf16.mxu0 0
      %1801 = vmatpush1.bf16.msra.mxu0 0
      %1802 = vmatprep.subr.bf16.mxu0 0
      %1803 = vmatpush1.bf16.msra.mxu0 0
      %1804 = vmatprep.subr.bf16.mxu0 0
      %1805 = vmatpush1.bf16.msra.mxu0 0
      %1806 = vmatprep.subr.bf16.mxu0 0
      %1807 = vmatpush1.bf16.msra.mxu0 0
      %1808 = vmatprep.subr.bf16.mxu0 0
      %1809 = vmatpush1.bf16.msra.mxu0 0
      %1810 = vmatprep.subr.bf16.mxu0 0
      %1811 = vmatpush1.bf16.msra.mxu0 0
      %1812 = vmatprep.subr.bf16.mxu0 0
      %1813 = vmatpush1.bf16.msra.mxu0 0
      %1814 = vmatprep.subr.bf16.mxu0 0
      %1815 = vmatpush1.bf16.msra.mxu0 0
      %1816 = vmatprep.subr.bf16.mxu0 0
      %1817 = vmatpush1.bf16.msra.mxu0 0
      %1818 = vmatprep.subr.bf16.mxu0 0
      %1819 = vmatpush1.bf16.msra.mxu0 0
      %1820 = vmatprep.subr.bf16.mxu0 0
      %1821 = vmatpush1.bf16.msra.mxu0 0
      %1822 = vmatprep.mubr.bf16.mxu0 0
      %1823 = vmatmul.mubr.bf16.gmra.mrb[0].mxu0 %v1788
      %v1824 = vpop.f32.mrb[0].mxu0
      %v1825 = vadd.f32 %v1776, %v1824
      %v1826 = vpop.f32.mrb[0].mxu0
      %v1827 = vpop.f32.mrb[0].mxu0
      %v1828 = vpop.f32.mrb[0].mxu0
      %1829 = vdwg.mxu0
      %v1830 = vadd.f32 %v1399, %v1825
      %s1831 = scalar_lea.vmem %s8, 1
      %v1832 = vld [vmem:[%s1831] sm:$0x1]
      %v1834 = vlaneseq
      %v1835 = vshrl.u32 %v1834, 7
      %v1836 = vsub.s32 0, %v1835
      %v1837 = vrot.slane %v1832, %v1836
      %v1839 = vadd.f32 %v1830, %v1837
      %s1840 = scalar_lea.vmem %s9, 1
      %v1841 = vld [vmem:[%s1840] sm:$0x1]
      %s1842 = scalar_lea.vmem %s10, 1
      %v1843 = vld [vmem:[%s1842] sm:$0x1]
      %v1844 = vsel %vm749, %v1839, 0.0
      %1845 = vadd.xlane.f32.xlu0 %v1844
      %v1846 = vpop.xlane.xlu0 %1845
      %v1847 = vmul.f32 %v1846, %v753
      %v1848 = vmul.f32 %v1839, %v1839
      %v1849 = vsel %vm749, %v1848, 0.0
      %1850 = vadd.xlane.f32.xlu0 %v1849
      %v1851 = vpop.xlane.xlu0 %1850
      %v1852 = vmul.f32 %v1851, %v753
      %v1853 = vmul.f32 %v1847, %v1847
      %v1854 = vsub.f32 %v1852, %v1853
      %v1855 = vadd.f32 %v1854, 1e-06
      %v1856 = vrsqrt.pop %v1855
      %v1857 = vsub.f32 %v1839, %v1847
      %v1858 = vmul.f32 %v1857, %v1856
      %v1860 = vlaneseq
      %v1861 = vshrl.u32 %v1860, 7
      %v1862 = vsub.s32 0, %v1861
      %v1863 = vrot.slane %v1841, %v1862
      %v1865 = vmul.f32 %v1858, %v1863
      %v1867 = vlaneseq
      %v1868 = vshrl.u32 %v1867, 7
      %v1869 = vsub.s32 0, %v1868
      %v1870 = vrot.slane %v1843, %v1869
      %v1872 = vadd.f32 %v1865, %v1870
      %v1873 = vpack.c.bf16 %v1872, %v1872
      %s1874 = scalar_lea.vmem %s11, 16
      %v1875 = vld [vmem:[%s1874] sm:$0xf]
      %v1876 = vld [vmem:[%s1874 + $0x4] sm:$0xf]
      %v1877 = vld [vmem:[%s1874 + $0x8] sm:$0xf]
      %v1878 = vld [vmem:[%s1874 + $0xc] sm:$0xf]
      %s1879 = scalar_lea.vmem %s12, 1
      %v1880 = vld [vmem:[%s1879] sm:$0x1]
      %v1882 = vlaneseq
      %v1883 = vshrl.u32 %v1882, 7
      %v1884 = vsub.s32 0, %v1883
      %v1885 = vrot.slane %v1880, %v1884
      %v1891 = vunpack.c.l.b16 %v1875
      %v1892 = vunpack.c.l.b16 %v1876
      %v1893 = vunpack.c.l.b16 %v1877
      %v1894 = vunpack.c.l.b16 %v1878
      %v1895 = vpack.c.b16 %v1892, %v1891
      %v1896 = vpack.c.b16 %v1894, %v1893
      %v1900 = vsel %vm804, %v1873, 0
      %1902 = vmatprep.subr.bf16.mxu0 0
      %1903 = vmatpush1.bf16.msra.mxu0 %v1895
      %1904 = vmatprep.subr.bf16.mxu0 0
      %1905 = vmatpush1.bf16.msra.mxu0 %v1896
      %1906 = vmatprep.subr.bf16.mxu0 0
      %1907 = vmatpush1.bf16.msra.mxu0 0
      %1908 = vmatprep.subr.bf16.mxu0 0
      %1909 = vmatpush1.bf16.msra.mxu0 0
      %1910 = vmatprep.subr.bf16.mxu0 0
      %1911 = vmatpush1.bf16.msra.mxu0 0
      %1912 = vmatprep.subr.bf16.mxu0 0
      %1913 = vmatpush1.bf16.msra.mxu0 0
      %1914 = vmatprep.subr.bf16.mxu0 0
      %1915 = vmatpush1.bf16.msra.mxu0 0
      %1916 = vmatprep.subr.bf16.mxu0 0
      %1917 = vmatpush1.bf16.msra.mxu0 0
      %1918 = vmatprep.subr.bf16.mxu0 0
      %1919 = vmatpush1.bf16.msra.mxu0 0
      %1920 = vmatprep.subr.bf16.mxu0 0
      %1921 = vmatpush1.bf16.msra.mxu0 0
      %1922 = vmatprep.subr.bf16.mxu0 0
      %1923 = vmatpush1.bf16.msra.mxu0 0
      %1924 = vmatprep.subr.bf16.mxu0 0
      %1925 = vmatpush1.bf16.msra.mxu0 0
      %1926 = vmatprep.subr.bf16.mxu0 0
      %1927 = vmatpush1.bf16.msra.mxu0 0
      %1928 = vmatprep.subr.bf16.mxu0 0
      %1929 = vmatpush1.bf16.msra.mxu0 0
      %1930 = vmatprep.subr.bf16.mxu0 0
      %1931 = vmatpush1.bf16.msra.mxu0 0
      %1932 = vmatprep.subr.bf16.mxu0 0
      %1933 = vmatpush1.bf16.msra.mxu0 0
      %1934 = vmatprep.mubr.bf16.mxu0 0
      %1935 = vmatmul.mubr.bf16.gmra.mrb[0].mxu0 %v1900
      %v1936 = vpop.f32.mrb[0].mxu0
      %v1937 = vadd.f32 %v1885, %v1936
      %v1938 = vpop.f32.mrb[0].mxu0
      %v1939 = vpop.f32.mrb[0].mxu0
      %v1940 = vpop.f32.mrb[0].mxu0
      %1941 = vdwg.mxu0
      %v1942 = vmul.f32 %v1937, 0.5
      %v1943 = vmul.f32 %v1937, 0.70710677
      %vm1944 = vcmp.ge.f32.partialorder %v1943, 0.0
      %v1945 = vsel %vm1944, 1.0, -1.0
      %v1946 = vand.u32 2147483647, %v1943
      %v1947 = vmul.f32 %v1946, 0.3275911
      %v1948 = vadd.f32 %v1947, 1.0
      %v1949 = vrcp.pop %v1948
      %v1950 = vmul.f32 1.0, %v1949
      %v1951 = vmul.f32 %v1950, 1.0614054
      %v1952 = vadd.f32 %v1951, -1.4531521
      %v1953 = vmul.f32 %v1952, %v1950
      %v1954 = vadd.f32 %v1953, 1.4214138
      %v1955 = vmul.f32 %v1954, %v1950
      %v1956 = vadd.f32 %v1955, -0.28449672
      %v1957 = vmul.f32 %v1956, %v1950
      %v1958 = vadd.f32 %v1957, 0.2548296
      %v1959 = vmul.f32 %v1958, %v1950
      %v1960 = vmul.f32 %v1946, %v1946
      %v1961 = vsub.f32 0.0, %v1960
      %v1962 = vmul.f32 %v1961, 1.442695
      %v1963 = vpow.pop %v1962
      %v1964 = vmul.f32 %v1959, %v1963
      %v1965 = vsub.f32 1.0, %v1964
      %v1966 = vmul.f32 %v1945, %v1965
      %v1967 = vadd.f32 %v1966, 1.0
      %v1968 = vmul.f32 %v1942, %v1967
      %v1969 = vpack.c.bf16 %v1968, %v1968
      %s1970 = scalar_lea.vmem %s13, 32
      %v1971 = vld [vmem:[%s1970] sm:$0xf]
      %v1972 = vld [vmem:[%s1970 + $0x4] sm:$0xf]
      %v1973 = vld [vmem:[%s1970 + $0x8] sm:$0xf]
      %v1974 = vld [vmem:[%s1970 + $0xc] sm:$0xf]
      %v1975 = vld [vmem:[%s1970 + $0x10] sm:$0xf]
      %v1976 = vld [vmem:[%s1970 + $0x14] sm:$0xf]
      %v1977 = vld [vmem:[%s1970 + $0x18] sm:$0xf]
      %v1978 = vld [vmem:[%s1970 + $0x1c] sm:$0xf]
      %s1979 = scalar_lea.vmem %s14, 1
      %v1980 = vld [vmem:[%s1979] sm:$0x1]
      %v1982 = vlaneseq
      %v1983 = vshrl.u32 %v1982, 7
      %v1984 = vsub.s32 0, %v1983
      %v1985 = vrot.slane %v1980, %v1984
      %v1995 = vunpack.c.l.b16 %v1971
      %v1996 = vunpack.c.l.b16 %v1972
      %v1997 = vunpack.c.l.b16 %v1973
      %v1998 = vunpack.c.l.b16 %v1974
      %v1999 = vunpack.c.l.b16 %v1975
      %v2000 = vunpack.c.l.b16 %v1976
      %v2001 = vunpack.c.l.b16 %v1977
      %v2002 = vunpack.c.l.b16 %v1978
      %v2003 = vpack.c.b16 %v1996, %v1995
      %v2004 = vpack.c.b16 %v1998, %v1997
      %v2005 = vpack.c.b16 %v2000, %v1999
      %v2006 = vpack.c.b16 %v2002, %v2001
      %v2012 = vsel %vm703, %v1969, 0
      %2014 = vmatprep.subr.bf16.mxu0 0
      %2015 = vmatpush1.bf16.msra.mxu0 %v2003
      %2016 = vmatprep.subr.bf16.mxu0 0
      %2017 = vmatpush1.bf16.msra.mxu0 %v2004
      %2018 = vmatprep.subr.bf16.mxu0 0
      %2019 = vmatpush1.bf16.msra.mxu0 %v2005
      %2020 = vmatprep.subr.bf16.mxu0 0
      %2021 = vmatpush1.bf16.msra.mxu0 %v2006
      %2022 = vmatprep.subr.bf16.mxu0 0
      %2023 = vmatpush1.bf16.msra.mxu0 0
      %2024 = vmatprep.subr.bf16.mxu0 0
      %2025 = vmatpush1.bf16.msra.mxu0 0
      %2026 = vmatprep.subr.bf16.mxu0 0
      %2027 = vmatpush1.bf16.msra.mxu0 0
      %2028 = vmatprep.subr.bf16.mxu0 0
      %2029 = vmatpush1.bf16.msra.mxu0 0
      %2030 = vmatprep.subr.bf16.mxu0 0
      %2031 = vmatpush1.bf16.msra.mxu0 0
      %2032 = vmatprep.subr.bf16.mxu0 0
      %2033 = vmatpush1.bf16.msra.mxu0 0
      %2034 = vmatprep.subr.bf16.mxu0 0
      %2035 = vmatpush1.bf16.msra.mxu0 0
      %2036 = vmatprep.subr.bf16.mxu0 0
      %2037 = vmatpush1.bf16.msra.mxu0 0
      %2038 = vmatprep.subr.bf16.mxu0 0
      %2039 = vmatpush1.bf16.msra.mxu0 0
      %2040 = vmatprep.subr.bf16.mxu0 0
      %2041 = vmatpush1.bf16.msra.mxu0 0
      %2042 = vmatprep.subr.bf16.mxu0 0
      %2043 = vmatpush1.bf16.msra.mxu0 0
      %2044 = vmatprep.subr.bf16.mxu0 0
      %2045 = vmatpush1.bf16.msra.mxu0 0
      %2046 = vmatprep.mubr.bf16.mxu0 0
      %2047 = vmatmul.mubr.bf16.gmra.mrb[0].mxu0 %v2012
      %v2048 = vpop.f32.mrb[0].mxu0
      %v2049 = vadd.f32 %v1985, %v2048
      %v2050 = vpop.f32.mrb[0].mxu0
      %v2051 = vpop.f32.mrb[0].mxu0
      %v2052 = vpop.f32.mrb[0].mxu0
      %2053 = vdwg.mxu0
      %v2054 = vadd.f32 %v1839, %v2049
      %v2055 = vld [vmem:[%s15] sm:$0x1]
      %v2056 = vld [vmem:[%s16] sm:$0x1]
      %v2057 = vsel %vm749, %v2054, 0.0
      %2058 = vadd.xlane.f32.xlu0 %v2057
      %v2059 = vpop.xlane.xlu0 %2058
      %v2060 = vmul.f32 %v2059, %v753
      %v2061 = vmul.f32 %v2054, %v2054
      %v2062 = vsel %vm749, %v2061, 0.0
      %2063 = vadd.xlane.f32.xlu0 %v2062
      %v2064 = vpop.xlane.xlu0 %2063
      %v2065 = vmul.f32 %v2064, %v753
      %v2066 = vmul.f32 %v2060, %v2060
      %v2067 = vsub.f32 %v2065, %v2066
      %v2068 = vadd.f32 %v2067, 1e-06
      %v2069 = vrsqrt.pop %v2068
      %v2070 = vsub.f32 %v2054, %v2060
      %v2071 = vmul.f32 %v2070, %v2069
      %v2073 = vlaneseq
      %v2074 = vshrl.u32 %v2073, 7
      %v2075 = vsub.s32 0, %v2074
      %v2076 = vrot.slane %v2055, %v2075
      %v2078 = vmul.f32 %v2071, %v2076
      %v2080 = vlaneseq
      %v2081 = vshrl.u32 %v2080, 7
      %v2082 = vsub.s32 0, %v2081
      %v2083 = vrot.slane %v2056, %v2082
      %v2085 = vadd.f32 %v2078, %v2083
      %v2086 = vpack.c.bf16 %v2085, %v2085
      %v2087 = vld [vmem:[%s17] sm:$0xf]
      %v2088 = vld [vmem:[%s17 + $0x4] sm:$0xf]
      %v2089 = vld [vmem:[%s17 + $0x8] sm:$0xf]
      %v2090 = vld [vmem:[%s17 + $0xc] sm:$0xf]
      %v2091 = vld [vmem:[%s18] sm:$0x1]
      %v2093 = vlaneseq
      %v2094 = vshrl.u32 %v2093, 7
      %v2095 = vsub.s32 0, %v2094
      %v2096 = vrot.slane %v2091, %v2095
      %v2099 = vshrl.u32 %v2086, 16
      %v2101 = vshll.u32 %v2086, 16
      %v2103 = vrot.slane %v2101, 1
      %v2104 = vor.u32 %v2099, %v2103
      %v2109 = vunpack.c.l.b16 %v2087
      %v2110 = vunpack.c.l.b16 %v2088
      %v2111 = vunpack.c.l.b16 %v2089
      %v2112 = vunpack.c.l.b16 %v2090
      %v2113 = vpack.c.b16 %v2110, %v2109
      %v2114 = vpack.c.b16 %v2112, %v2111
      %v2118 = vsel %vm804, %v2104, 0
      %2120 = vmatprep.subr.bf16.mxu0 0
      %2121 = vmatpush1.bf16.msra.mxu0 %v2113
      %2122 = vmatprep.subr.bf16.mxu0 0
      %2123 = vmatpush1.bf16.msra.mxu0 %v2114
      %2124 = vmatprep.subr.bf16.mxu0 0
      %2125 = vmatpush1.bf16.msra.mxu0 0
      %2126 = vmatprep.subr.bf16.mxu0 0
      %2127 = vmatpush1.bf16.msra.mxu0 0
      %2128 = vmatprep.subr.bf16.mxu0 0
      %2129 = vmatpush1.bf16.msra.mxu0 0
      %2130 = vmatprep.subr.bf16.mxu0 0
      %2131 = vmatpush1.bf16.msra.mxu0 0
      %2132 = vmatprep.subr.bf16.mxu0 0
      %2133 = vmatpush1.bf16.msra.mxu0 0
      %2134 = vmatprep.subr.bf16.mxu0 0
      %2135 = vmatpush1.bf16.msra.mxu0 0
      %2136 = vmatprep.subr.bf16.mxu0 0
      %2137 = vmatpush1.bf16.msra.mxu0 0
      %2138 = vmatprep.subr.bf16.mxu0 0
      %2139 = vmatpush1.bf16.msra.mxu0 0
      %2140 = vmatprep.subr.bf16.mxu0 0
      %2141 = vmatpush1.bf16.msra.mxu0 0
      %2142 = vmatprep.subr.bf16.mxu0 0
      %2143 = vmatpush1.bf16.msra.mxu0 0
      %2144 = vmatprep.subr.bf16.mxu0 0
      %2145 = vmatpush1.bf16.msra.mxu0 0
      %2146 = vmatprep.subr.bf16.mxu0 0
      %2147 = vmatpush1.bf16.msra.mxu0 0
      %2148 = vmatprep.subr.bf16.mxu0 0
      %2149 = vmatpush1.bf16.msra.mxu0 0
      %2150 = vmatprep.subr.bf16.mxu0 0
      %2151 = vmatpush1.bf16.msra.mxu0 0
      %2152 = vmatprep.mubr.bf16.mxu0 0
      %2153 = vmatmul.mubr.bf16.gmra.mrb[0].mxu0 %v2118
      %v2154 = vpop.f32.mrb[0].mxu0
      %v2155 = vadd.f32 %v2096, %v2154
      %v2156 = vpop.f32.mrb[0].mxu0
      %v2157 = vpop.f32.mrb[0].mxu0
      %v2158 = vpop.f32.mrb[0].mxu0
      %2159 = vdwg.mxu0
      %2160 = vst [vmem:[%s600] sm:$0xf] %v2155
      %p2161 = scmp.lt.s32.totalorder %s30, 1
      %s2162 = scalar_select %p2161, %s30, 1
      %s2163 = smul.addr %s2162, 4
      %s2164 = scalar_lea.vmem %s19, %s2163
      // Predicated region
      $region97: #{segmenter_forward.1} parent=95 // pred_check
        %p2165 = pneg %p452
      $region98: #{segmenter_forward.1} parent=95 // pred_check_branch
        %2167 = sbr.rel (%p2165) target = $region100
      $region99: #{segmenter_forward.1} parent=95 // pred_region
        _
      $region100: #{segmenter_forward.1} parent=95 // pred_fallthru
        _
    $region96: #{segmenter_forward.1} parent=5 // pred_fallthru
      _
    %p2168 = scmp.le.s32.totalorder 2, %s25
    // Predicated region
    $region101: #{segmenter_forward.1} parent=5 // pred_check
      %p2169 = pneg %p2168
    $region102: #{segmenter_forward.1} parent=5 // pred_check_branch
      %2171 = sbr.rel (%p2169) target = $region104
    $region103: #{segmenter_forward.1} parent=5 // pred_region
      %s2172 = ssub.s32 %s25, 2
      // Predicated region
      $region105: #{segmenter_forward.1} parent=103 // pred_check
        %p2173 = pneg %p458
      $region106: #{segmenter_forward.1} parent=103 // pred_check_branch
        %2175 = sbr.rel (%p2173) target = $region108
      $region107: #{segmenter_forward.1} parent=103 // pred_region
        %p2176 = scmp.lt.s32.totalorder %s31, 1
        %s2177 = scalar_select %p2176, %s31, 1
        %s2178 = smul.addr %s2177, 4
        %s2179 = scalar_lea.vmem %s19, %s2178
      $region108: #{segmenter_forward.1} parent=103 // pred_fallthru
        _
    $region104: #{segmenter_forward.1} parent=5 // pred_fallthru
      _
  $region6: #{segmenter_forward.1} parent=0 // loop_footer
    %s29 = sadd.s32 1, %s25
  $region7: #{segmenter_forward.1} parent=0 // loop_footer_branch
    %24 = sbr.rel target = $region3
  $region8: #{segmenter_forward.1} parent=0 // loop_exit
    _

</llo_original>
